<compile_context>
chip_gen: v7x
topology: tpu7x:2x2x1
jax: 0.10.0
libtpu: 0.0.40
codegen_flags: <defaults>
</compile_context>

<pallas_src>
import functools
import math

import jax
import jax.numpy as jnp
from jax.experimental import pallas as pl
from jax.experimental.pallas import tpu as pltpu

_MASK_NEG = -1e38          # masked-score value: exp underflows to exactly 0
_INIT_NEG = -1e30          # running-max init: finite, so alpha=exp(old-new) is never NaN
_REF_NEG = -1e30           # used only by the pure-JAX reference
_VMEM_LIMIT = 32 * 1024 * 1024   # generous for these tile sizes on v5e/v6e/v7x


def _round_up(n, m):
    return ((n + m - 1) // m) * m


def _choose_tile(npad):
    """Node tile: multiple of 128 dividing npad, preferring >=2 grid steps."""
    for t in (512, 256, 128):
        if npad % t == 0 and npad // t >= 2:
            return t
    return 128 if npad % 128 == 0 else npad


# ---------------------------------------------------------------------------
# Kernel 1: homogeneous GATConv (same-type metapath, e.g. ('ui','iu') user->user)
#   grid = (dst tiles, src tiles); online softmax across src tiles.
# ---------------------------------------------------------------------------
def _gat_kernel(hdT_ref, hsT_ref, al_ref, ar_ref, adj_ref, out_ref,
                m_sc, l_sc, acc_sc, *, H, D, slope):
    j = pl.program_id(1)
    F = H * D
    TM = out_ref.shape[1]
    TN = hsT_ref.shape[1]

    @pl.when(j == 0)
    def _():
        m_sc[...] = jnp.full_like(m_sc, _INIT_NEG)
        l_sc[...] = jnp.zeros_like(l_sc)
        acc_sc[...] = jnp.zeros_like(acc_sc)

    # transposed feature tiles -> free reshape to (H, D, tile); lanes = node tile
    hd_t = hdT_ref[...].reshape(H, D, TM)                 # (H, D, TM)
    hs_t = hsT_ref[...].reshape(H, D, TN)                 # (H, D, TN)
    er = jnp.sum(hd_t * ar_ref[...][:, :, None], axis=1)  # (H, TM) dst scores
    el = jnp.sum(hs_t * al_ref[...][:, :, None], axis=1)  # (H, TN) src scores

    e = er[:, :, None] + el[:, None, :]                   # (H, TM, TN)
    e = jnp.where(e > 0, e, slope * e)                    # LeakyReLU
    adj = adj_ref[...]                                    # (TM, TN) bf16 0/1
    s = jnp.where(adj[None, :, :] > 0, e, _MASK_NEG)      # single masking pass

    # --- online softmax update -------------------------------------------
    m_tile = jnp.max(s, axis=-1)                          # (H, TM)
    m_new = jnp.maximum(m_sc[...], m_tile)
    alpha = jnp.exp(m_sc[...] - m_new)                    # correction for old acc
    p = jnp.exp(s - m_new[:, :, None])                    # masked entries -> 0.0

    l_sc[...] = alpha * l_sc[...] + jnp.sum(p, axis=-1)
    # aggregation with node tile in the output-lane dim (lane-dense MXU result)
    acc_sc[...] = alpha[:, None, :] * acc_sc[...] + jnp.einsum(
        "hdn,hmn->hdm", hs_t, p, preferred_element_type=jnp.float32)
    m_sc[...] = m_new

    @pl.when(j == pl.num_programs(1) - 1)
    def _():
        r = acc_sc[...] / jnp.maximum(l_sc[...], 1e-30)[:, None, :]   # 0-degree guard
        r = r.reshape(F, TM)
        out_ref[...] = jnp.where(r > 0, r, jnp.exp(jnp.minimum(r, 0.0)) - 1.0)  # ELU


def gat_conv(h, attn_l, attn_r, adj, *, num_heads, in_size, slope=0.2):
    N = h.shape[0]
    H, D = num_heads, in_size
    F = H * D
    Np = _round_up(N, 128)
    tm = tn = _choose_tile(Np)

    hT = jnp.pad(h, ((0, Np - N), (0, 0))).T                               # (F, Np)
    adj_p = jnp.pad(adj, ((0, Np - N), (0, Np - N))).astype(jnp.bfloat16)  # 0/1 exact

    kern = functools.partial(_gat_kernel, H=H, D=D, slope=slope)
    outT = pl.pallas_call(
        kern,
        out_shape=jax.ShapeDtypeStruct((F, Np), jnp.float32),
        grid=(Np // tm, Np // tn),
        in_specs=[
            pl.BlockSpec((F, tm), lambda i, j: (0, i)),    # dst feature tile (transposed)
            pl.BlockSpec((F, tn), lambda i, j: (0, j)),    # src feature tile (transposed)
            pl.BlockSpec((H, D), lambda i, j: (0, 0)),
            pl.BlockSpec((H, D), lambda i, j: (0, 0)),
            pl.BlockSpec((tm, tn), lambda i, j: (i, j)),   # adjacency tile (bf16)
        ],
        out_specs=pl.BlockSpec((F, tm), lambda i, j: (0, i)),
        scratch_shapes=[
            pltpu.VMEM((H, tm), jnp.float32),              # running max
            pltpu.VMEM((H, tm), jnp.float32),              # running sum
            pltpu.VMEM((H, D, tm), jnp.float32),           # running aggregate
        ],
        compiler_params=pltpu.CompilerParams(
            dimension_semantics=("parallel", "arbitrary"),
            vmem_limit_bytes=_VMEM_LIMIT),
    )(hT, hT, attn_l, attn_r, adj_p)
    return outT[:, :N].T                                    # back to (N, F)


# ---------------------------------------------------------------------------
# Kernel 2: HetGCNLayer, aggre_type='attention' (bipartite metapath ('ui',)/('iu',))
#   source weights hoisted + folded into features; one accumulated MXU matmul
#   per tile computes numerator and denominator together.
# ---------------------------------------------------------------------------
def _het_kernel(rhsT_ref, adjT_ref, out_ref, acc_sc, *, H, D):
    j = pl.program_id(1)
    F = H * D
    TM = out_ref.shape[1]

    @pl.when(j == 0)
    def _():
        acc_sc[...] = jnp.zeros_like(acc_sc)

    # acc[f, m] += sum_n rhs_T[f, n] * adj[m, n]   (rows 0..F-1: numerator,
    #                                               rows F..F+H-1: denominator)
    acc_sc[...] += jnp.dot(rhsT_ref[...], adjT_ref[...].astype(jnp.float32),
                           preferred_element_type=jnp.float32)

    @pl.when(j == pl.num_programs(1) - 1)
    def _():
        acc = acc_sc[...]
        num = acc[:F, :].reshape(H, D, TM)
        den = acc[F:, :]                                   # (H, TM)
        r = (num / jnp.maximum(den, 1e-30)[:, None, :]).reshape(F, TM)
        out_ref[...] = jnp.where(r > 0, r, jnp.exp(jnp.minimum(r, 0.0)) - 1.0)  # ELU


def het_gcn(h_src, attn_l, adj, *, num_heads, in_size, slope=0.2):
    Nd, Ns = adj.shape
    H, D = num_heads, in_size
    F = H * D

    # grid-invariant source softmax weights, hoisted to XLA (tiny O(Ns*H) op)
    el = jnp.einsum("nhd,hd->nh", h_src.reshape(Ns, H, D), attn_l)     # (Ns, H)
    el = jnp.where(el > 0, el, slope * el)                             # LeakyReLU
    w = jnp.exp(el - jnp.max(el, axis=0, keepdims=True))               # global shift
    hsw = h_src * jnp.repeat(w, D, axis=1)                             # fold weights
    rhs = jnp.concatenate([hsw, w], axis=1)                            # (Ns, F + H)

    Ndp = _round_up(Nd, 128)
    Nsp = _round_up(Ns, 128)
    tm = _choose_tile(Ndp)
    tn = _choose_tile(Nsp)

    rhsT = jnp.pad(rhs, ((0, Nsp - Ns), (0, 0))).T                      # (F+H, Nsp)
    adjT = jnp.pad(adj, ((0, Ndp - Nd), (0, Nsp - Ns))).T.astype(jnp.bfloat16)

    kern = functools.partial(_het_kernel, H=H, D=D)
    outT = pl.pallas_call(
        kern,
        out_shape=jax.ShapeDtypeStruct((F, Ndp), jnp.float32),
        grid=(Ndp // tm, Nsp // tn),
        in_specs=[
            pl.BlockSpec((F + H, tn), lambda i, j: (0, j)),   # packed weighted sources
            pl.BlockSpec((tn, tm), lambda i, j: (j, i)),      # adjacency (src, dst) tile
        ],
        out_specs=pl.BlockSpec((F, tm), lambda i, j: (0, i)),
        scratch_shapes=[pltpu.VMEM((F + H, tm), jnp.float32)],
        compiler_params=pltpu.CompilerParams(
            dimension_semantics=("parallel", "arbitrary"),
            vmem_limit_bytes=_VMEM_LIMIT),
    )(rhsT, adjT)
    return outT[:, :Nd].T


# ---------------------------------------------------------------------------
# Kernel 3: SemanticAttention, tiled over N.
#   pass A (reduction grid): per-metapath sum of tanh(z @ w1 + b1)  -> (M, K)
#   tiny mean / w2 / softmax in XLA
#   pass B (parallel grid):  out = sum_m beta[m] * z[m]
# ---------------------------------------------------------------------------
def _sem_score_kernel(z_ref, w1_ref, b1_ref, out_ref, *, M):
    i = pl.program_id(0)

    @pl.when(i == 0)
    def _():
        out_ref[...] = jnp.zeros_like(out_ref)

    TN, F = z_ref.shape[1], z_ref.shape[2]
    z2 = z_ref[...].reshape(M * TN, F)                       # leading-dim merge (free)
    t = jnp.tanh(jnp.dot(z2, w1_ref[...], preferred_element_type=jnp.float32)
                 + b1_ref[...])                              # (M*TN, K)
    out_ref[...] += jnp.sum(t.reshape(M, TN, -1), axis=1)    # (M, K)


def _sem_mix_kernel(beta_ref, z_ref, out_ref):
    out_ref[...] = jnp.sum(z_ref[...] * beta_ref[...][:, :, None], axis=0)


def semantic_attention(z_mnf, w1, b1, w2):
    M, N, F = z_mnf.shape
    K = w1.shape[1]
    Np = _round_up(N, 128)
    tn = _choose_tile(Np)
    z_p = jnp.pad(z_mnf, ((0, 0), (0, Np - N), (0, 0)))

    score_kern = functools.partial(_sem_score_kernel, M=M)
    acc = pl.pallas_call(
        score_kern,
        out_shape=jax.ShapeDtypeStruct((M, K), jnp.float32),
        grid=(Np // tn,),
        in_specs=[
            pl.BlockSpec((M, tn, F), lambda i: (0, i, 0)),
            pl.BlockSpec((F, K), lambda i: (0, 0)),
            pl.BlockSpec((1, K), lambda i: (0, 0)),
        ],
        out_specs=pl.BlockSpec((M, K), lambda i: (0, 0)),
        compiler_params=pltpu.CompilerParams(
            dimension_semantics=("arbitrary",),
            vmem_limit_bytes=_VMEM_LIMIT),
    )(z_p, w1, b1)

    # padded zero rows each contributed exactly tanh(b1); remove, then mean/w2/softmax
    acc = acc - (Np - N) * jnp.tanh(b1)
    scores = (acc / N) @ w2                                  # (M, 1)
    beta = jax.nn.softmax(scores, axis=0)                    # (M, 1)

    out_p = pl.pallas_call(
        _sem_mix_kernel,
        out_shape=jax.ShapeDtypeStruct((Np, F), jnp.float32),
        grid=(Np // tn,),
        in_specs=[
            pl.BlockSpec((M, 1), lambda i: (0, 0)),
            pl.BlockSpec((M, tn, F), lambda i: (0, i, 0)),
        ],
        out_specs=pl.BlockSpec((tn, F), lambda i: (i, 0)),
        compiler_params=pltpu.CompilerParams(
            dimension_semantics=("parallel",),
            vmem_limit_bytes=_VMEM_LIMIT),
    )(beta, z_p)
    return out_p[:N]


# ---------------------------------------------------------------------------
# HMSGLayer forward.  meta_paths = [('ui','iu'), ('iu','ui'), ('iu',), ('ui',)]
#   ('ui','iu') -> user-user   GATConv  -> semantic_embeddings['user'][0]
#   ('iu','ui') -> item-item   GATConv  -> semantic_embeddings['item'][0]
#   ('iu',)     -> item->user  HetGCN   -> semantic_embeddings['user'][1]
#   ('ui',)     -> user->item  HetGCN   -> semantic_embeddings['item'][1]
# ---------------------------------------------------------------------------
def hmsg_forward(params, h_user, h_item, adj_uu, adj_ii, adj_ui, adj_iu,
                 *, num_heads, in_size):
    e_user_gat = gat_conv(h_user, params["gat_u"]["attn_l"], params["gat_u"]["attn_r"],
                          adj_uu, num_heads=num_heads, in_size=in_size)
    e_user_het = het_gcn(h_item, params["het_iu"]["attn_l"], adj_iu,
                         num_heads=num_heads, in_size=in_size)
    z_user = jnp.stack([e_user_gat, e_user_het], axis=0)        # (2, Nu, F)
    out_user = semantic_attention(z_user, params["sem_u"]["w1"],
                                  params["sem_u"]["b1"], params["sem_u"]["w2"])

    e_item_gat = gat_conv(h_item, params["gat_i"]["attn_l"], params["gat_i"]["attn_r"],
                          adj_ii, num_heads=num_heads, in_size=in_size)
    e_item_het = het_gcn(h_user, params["het_ui"]["attn_l"], adj_ui,
                         num_heads=num_heads, in_size=in_size)
    z_item = jnp.stack([e_item_gat, e_item_het], axis=0)        # (2, Ni, F)
    out_item = semantic_attention(z_item, params["sem_i"]["w1"],
                                  params["sem_i"]["b1"], params["sem_i"]["w2"])

    return {"user": out_user, "item": out_item}


# ---------------------------------------------------------------------------
# Pure-JAX reference (faithful per-head math) for correctness checking
# ---------------------------------------------------------------------------
def _ref_gat(h, al, ar, adj, H, D, slope=0.2):
    outs = []
    for hh in range(H):
        h_h = h[:, hh * D:(hh + 1) * D]
        el = jnp.sum(h_h * al[hh:hh + 1], axis=-1, keepdims=True)
        er = jnp.sum(h_h * ar[hh:hh + 1], axis=-1, keepdims=True)
        e = el.T + er
        e = jnp.where(e > 0, e, slope * e)
        scores = jnp.where(adj > 0, e, _REF_NEG)
        p = jnp.exp(scores - jnp.max(scores, axis=1, keepdims=True)) * adj
        a = p / jnp.sum(p, axis=1, keepdims=True)
        r = a @ h_h
        outs.append(jnp.where(r > 0, r, jnp.exp(jnp.minimum(r, 0.0)) - 1.0))
    return jnp.concatenate(outs, axis=-1)


def _ref_het(h_src, al, adj, H, D, slope=0.2):
    outs = []
    for hh in range(H):
        h_h = h_src[:, hh * D:(hh + 1) * D]
        el = jnp.sum(h_h * al[hh:hh + 1], axis=-1, keepdims=True)
        el = jnp.where(el > 0, el, slope * el)
        scores = jnp.where(adj > 0, el.T, _REF_NEG)
        p = jnp.exp(scores - jnp.max(scores, axis=1, keepdims=True)) * adj
        a = p / jnp.sum(p, axis=1, keepdims=True)
        r = a @ h_h
        outs.append(jnp.where(r > 0, r, jnp.exp(jnp.minimum(r, 0.0)) - 1.0))
    return jnp.concatenate(outs, axis=-1)


def _ref_sem(z_mnf, w1, b1, w2):
    M, N, F = z_mnf.shape
    proj = jnp.tanh(z_mnf.reshape(M * N, F) @ w1 + b1) @ w2      # (M*N, 1)
    w = proj.reshape(M, N).mean(axis=1)                          # (M,)
    beta = jax.nn.softmax(w)
    return jnp.einsum("m,mnf->nf", beta, z_mnf)


def _ref_forward(params, h_user, h_item, adj_uu, adj_ii, adj_ui, adj_iu, H, D):
    zu = jnp.stack([_ref_gat(h_user, params["gat_u"]["attn_l"], params["gat_u"]["attn_r"], adj_uu, H, D),
                    _ref_het(h_item, params["het_iu"]["attn_l"], adj_iu, H, D)], axis=0)
    zi = jnp.stack([_ref_gat(h_item, params["gat_i"]["attn_l"], params["gat_i"]["attn_r"], adj_ii, H, D),
                    _ref_het(h_user, params["het_ui"]["attn_l"], adj_ui, H, D)], axis=0)
    return {"user": _ref_sem(zu, params["sem_u"]["w1"], params["sem_u"]["b1"], params["sem_u"]["w2"]),
            "item": _ref_sem(zi, params["sem_i"]["w1"], params["sem_i"]["b1"], params["sem_i"]["w2"])}


# ---------------------------------------------------------------------------
# Deterministic parameter init (shapes follow the PyTorch module __init__)
# ---------------------------------------------------------------------------
def _xavier_normal(key, shape, fan_in, fan_out, gain):
    std = gain * math.sqrt(2.0 / (fan_in + fan_out))
    return std * jax.random.normal(key, shape, dtype=jnp.float32)


def init_params(key, num_heads, in_size, hidden=128):
    H, D = num_heads, in_size
    F = H * D
    ks = jax.random.split(key, 12)
    g = 1.414
    bnd = 1.0 / math.sqrt(F)
    return {
        # GATConv attn params: torch shape (1, H, D) -> stored as (H, D)
        "gat_u": {"attn_l": _xavier_normal(ks[0], (H, D), H * D, D, g),
                  "attn_r": _xavier_normal(ks[1], (H, D), H * D, D, g)},
        "gat_i": {"attn_l": _xavier_normal(ks[2], (H, D), H * D, D, g),
                  "attn_r": _xavier_normal(ks[3], (H, D), H * D, D, g)},
        # HetGCNLayer attn_l params
        "het_ui": {"attn_l": _xavier_normal(ks[4], (H, D), H * D, D, g)},
        "het_iu": {"attn_l": _xavier_normal(ks[5], (H, D), H * D, D, g)},
        # SemanticAttention: Linear(F, hidden) + Tanh + Linear(hidden, 1, bias=False)
        "sem_u": {"w1": _xavier_normal(ks[6], (F, hidden), F, hidden, 1.0),
                  "b1": jax.random.uniform(ks[10], (1, hidden), jnp.float32, -bnd, bnd),
                  "w2": _xavier_normal(ks[7], (hidden, 1), hidden, 1, 1.0)},
        "sem_i": {"w1": _xavier_normal(ks[8], (F, hidden), F, hidden, 1.0),
                  "b1": jax.random.uniform(ks[11], (1, hidden), jnp.float32, -bnd, bnd),
                  "w2": _xavier_normal(ks[9], (hidden, 1), hidden, 1, 1.0)},
    }


if __name__ == "__main__":
    key = jax.random.PRNGKey(0)
    Nu, Ni = 256, 384        # user / item node counts -> multi-tile grids (128-tiles)
    H, D = 4, 8              # layer_num_heads, in_size -> per-node feature dim 32
    F = H * D

    k_hu, k_hi, k_adj, k_par = jax.random.split(key, 4)
    h_user = jax.random.normal(k_hu, (Nu, F), dtype=jnp.float32)
    h_item = jax.random.normal(k_hi, (Ni, F), dtype=jnp.float32)

    # bipartite user->item edges; ensure every node has at least one edge
    M_ui = jax.random.bernoulli(k_adj, 0.03, (Nu, Ni)).astype(jnp.float32)
    M_ui = M_ui.at[jnp.arange(Nu), jnp.arange(Nu) % Ni].set(1.0)
    M_ui = M_ui.at[jnp.arange(Ni) % Nu, jnp.arange(Ni)].set(1.0)

    # adj[dst, src] masks replacing the DGL graphs
    adj_ui = M_ui.T                                             # ('ui',): user -> item
    adj_iu = M_ui                                               # ('iu',): item -> user
    adj_uu = (M_ui @ M_ui.T > 0).astype(jnp.float32)            # ('ui','iu') metapath-reachable
    adj_ii = (M_ui.T @ M_ui > 0).astype(jnp.float32)            # ('iu','ui') metapath-reachable
    # TODO(synk): dgl.metapath_reachable_graph / edge_type_subgraph have no Pallas
    # equivalent; they are represented here as precomputed dense adjacency masks.

    params = init_params(k_par, H, D)

    out = hmsg_forward(params, h_user, h_item, adj_uu, adj_ii, adj_ui, adj_iu,
                       num_heads=H, in_size=D)
    jax.block_until_ready(out)

    ref = _ref_forward(params, h_user, h_item, adj_uu, adj_ii, adj_ui, adj_iu, H, D)
    assert out["user"].shape == (Nu, F) and out["item"].shape == (Ni, F)
    assert jnp.allclose(out["user"], ref["user"], rtol=1e-3, atol=1e-4)
    assert jnp.allclose(out["item"], ref["item"], rtol=1e-3, atol=1e-4)

    print("KERNEL_OK")
</pallas_src>

<mosaic_0001>
module attributes {stable_mosaic.version = 11 : i64} {
  func.func @_gat_kernel(%arg0: i32, %arg1: i32, %arg2: memref<32x128xf32, #tpu.memory_space<vmem>>, %arg3: memref<32x128xf32, #tpu.memory_space<vmem>>, %arg4: memref<4x8xf32, #tpu.memory_space<vmem>>, %arg5: memref<4x8xf32, #tpu.memory_space<vmem>>, %arg6: memref<128x128xbf16, #tpu.memory_space<vmem>>, %arg7: memref<32x128xf32, #tpu.memory_space<vmem>>, %arg8: memref<4x128xf32, #tpu.memory_space<vmem>>, %arg9: memref<4x128xf32, #tpu.memory_space<vmem>>, %arg10: memref<4x8x128xf32, #tpu.memory_space<vmem>>) attributes {dimension_semantics = [#tpu.dimension_semantics<parallel>, #tpu.dimension_semantics<arbitrary>], iteration_bounds = array<i64: 2, 2>, scalar_prefetch = 0 : i64, scratch_operands = 3 : i64, tpu.core_type = #tpu.core_type<tc>, window_params = [{transform_indices = @transform_0, window_bounds = array<i64: 32, 128>}, {transform_indices = @transform_1, window_bounds = array<i64: 32, 128>}, {pipeline_mode = #tpu.pipeline_mode<synchronous>, transform_indices = @transform_2, window_bounds = array<i64: 4, 8>}, {pipeline_mode = #tpu.pipeline_mode<synchronous>, transform_indices = @transform_3, window_bounds = array<i64: 4, 8>}, {transform_indices = @transform_4, window_bounds = array<i64: 128, 128>}, {transform_indices = @transform_5, window_bounds = array<i64: 32, 128>}]} {
    %c0_i32 = arith.constant 0 : i32
    %0 = arith.cmpi eq, %arg1, %c0_i32 : i32
    %1 = arith.extui %0 : i1 to i32
    %c0_i32_0 = arith.constant 0 : i32
    %2 = arith.cmpi ne, %1, %c0_i32_0 : i32
    scf.if %2 {
      %cst_35 = arith.constant -1.000000e+30 : f32
      %61 = vector.broadcast %cst_35 : f32 to vector<4x128xf32>
      %c0_36 = arith.constant 0 : index
      %c0_37 = arith.constant 0 : index
      %62 = vector.load %arg8[%c0_36, %c0_37] : memref<4x128xf32, #tpu.memory_space<vmem>>, vector<4x128xf32>
      tpu.vector_store %arg8[%c0_36, %c0_37], %61 {strides = array<i32>} : memref<4x128xf32, #tpu.memory_space<vmem>>, vector<4x128xf32>,
      %cst_38 = arith.constant 0.000000e+00 : f32
      %63 = vector.broadcast %cst_38 : f32 to vector<4x128xf32>
      %c0_39 = arith.constant 0 : index
      %c0_40 = arith.constant 0 : index
      %64 = vector.load %arg9[%c0_39, %c0_40] : memref<4x128xf32, #tpu.memory_space<vmem>>, vector<4x128xf32>
      tpu.vector_store %arg9[%c0_39, %c0_40], %63 {strides = array<i32>} : memref<4x128xf32, #tpu.memory_space<vmem>>, vector<4x128xf32>,
      %cst_41 = arith.constant 0.000000e+00 : f32
      %65 = vector.broadcast %cst_41 : f32 to vector<4x8x128xf32>
      %c0_42 = arith.constant 0 : index
      %c0_43 = arith.constant 0 : index
      %c0_44 = arith.constant 0 : index
      %66 = vector.load %arg10[%c0_42, %c0_43, %c0_44] : memref<4x8x128xf32, #tpu.memory_space<vmem>>, vector<4x8x128xf32>
      tpu.vector_store %arg10[%c0_42, %c0_43, %c0_44], %65 {strides = array<i32>} : memref<4x8x128xf32, #tpu.memory_space<vmem>>, vector<4x8x128xf32>,
    } else {
    }
    %c0 = arith.constant 0 : index
    %c0_1 = arith.constant 0 : index
    %3 = vector.load %arg2[%c0, %c0_1] : memref<32x128xf32, #tpu.memory_space<vmem>>, vector<32x128xf32>
    %4 = vector.shape_cast %3 : vector<32x128xf32> to vector<4x8x128xf32>
    %c0_2 = arith.constant 0 : index
    %c0_3 = arith.constant 0 : index
    %5 = vector.load %arg3[%c0_2, %c0_3] : memref<32x128xf32, #tpu.memory_space<vmem>>, vector<32x128xf32>
    %6 = vector.shape_cast %5 : vector<32x128xf32> to vector<4x8x128xf32>
    %c0_4 = arith.constant 0 : index
    %c0_5 = arith.constant 0 : index
    %7 = vector.load %arg5[%c0_4, %c0_5] : memref<4x8xf32, #tpu.memory_space<vmem>>, vector<4x8xf32>
    %8 = vector.shape_cast %7 : vector<4x8xf32> to vector<4x8x1xf32>
    %9 = vector.broadcast %8 : vector<4x8x1xf32> to vector<4x8x128xf32>
    %10 = arith.mulf %4, %9 : vector<4x8x128xf32>
    %cst = arith.constant dense<0.000000e+00> : vector<4x128xf32>
    %11 = vector.multi_reduction <add>, %10, %cst [1] : vector<4x8x128xf32> to vector<4x128xf32>
    %c0_6 = arith.constant 0 : index
    %c0_7 = arith.constant 0 : index
    %12 = vector.load %arg4[%c0_6, %c0_7] : memref<4x8xf32, #tpu.memory_space<vmem>>, vector<4x8xf32>
    %13 = vector.shape_cast %12 : vector<4x8xf32> to vector<4x8x1xf32>
    %14 = vector.broadcast %13 : vector<4x8x1xf32> to vector<4x8x128xf32>
    %15 = arith.mulf %6, %14 : vector<4x8x128xf32>
    %cst_8 = arith.constant dense<0.000000e+00> : vector<4x128xf32>
    %16 = vector.multi_reduction <add>, %15, %cst_8 [1] : vector<4x8x128xf32> to vector<4x128xf32>
    %17 = vector.shape_cast %11 : vector<4x128xf32> to vector<4x128x1xf32>
    %18 = vector.shape_cast %16 : vector<4x128xf32> to vector<4x1x128xf32>
    %19 = vector.broadcast %17 : vector<4x128x1xf32> to vector<4x128x128xf32>
    %20 = vector.broadcast %18 : vector<4x1x128xf32> to vector<4x128x128xf32>
    %21 = arith.addf %19, %20 : vector<4x128x128xf32>
    %cst_9 = arith.constant 0.000000e+00 : f32
    %22 = vector.broadcast %cst_9 : f32 to vector<4x128x128xf32>
    %23 = arith.cmpf ogt, %21, %22 : vector<4x128x128xf32>
    %cst_10 = arith.constant 2.000000e-01 : f32
    %24 = vector.broadcast %cst_10 : f32 to vector<4x128x128xf32>
    %25 = arith.mulf %24, %21 : vector<4x128x128xf32>
    %26 = arith.select %23, %21, %25 : vector<4x128x128xi1>, vector<4x128x128xf32>
    %c0_11 = arith.constant 0 : index
    %c0_12 = arith.constant 0 : index
    %27 = vector.load %arg6[%c0_11, %c0_12] : memref<128x128xbf16, #tpu.memory_space<vmem>>, vector<128x128xbf16>
    %28 = vector.shape_cast %27 : vector<128x128xbf16> to vector<1x128x128xbf16>
    %cst_13 = arith.constant 0.000000e+00 : bf16
    %29 = vector.broadcast %cst_13 : bf16 to vector<1x128x128xbf16>
    %30 = arith.cmpf ogt, %28, %29 : vector<1x128x128xbf16>
    %cst_14 = arith.constant -9.99999968E+37 : f32
    %31 = vector.shape_cast %30 : vector<1x128x128xi1> to vector<1x128x128xi1>
    %32 = vector.broadcast %31 : vector<1x128x128xi1> to vector<4x128x128xi1>
    %33 = vector.broadcast %cst_14 : f32 to vector<4x128x128xf32>
    %34 = arith.select %32, %26, %33 : vector<4x128x128xi1>, vector<4x128x128xf32>
    %cst_15 = arith.constant dense<0xFF800000> : vector<4x128xf32>
    %35 = vector.multi_reduction <maximumf>, %34, %cst_15 [2] : vector<4x128x128xf32> to vector<4x128xf32>
    %c0_16 = arith.constant 0 : index
    %c0_17 = arith.constant 0 : index
    %36 = vector.load %arg8[%c0_16, %c0_17] : memref<4x128xf32, #tpu.memory_space<vmem>>, vector<4x128xf32>
    %37 = arith.maximumf %36, %35 : vector<4x128xf32>
    %c0_18 = arith.constant 0 : index
    %c0_19 = arith.constant 0 : index
    %38 = vector.load %arg8[%c0_18, %c0_19] : memref<4x128xf32, #tpu.memory_space<vmem>>, vector<4x128xf32>
    %39 = arith.subf %38, %37 : vector<4x128xf32>
    %40 = math.exp %39 : vector<4x128xf32>
    %41 = vector.shape_cast %37 : vector<4x128xf32> to vector<4x128x1xf32>
    %42 = vector.broadcast %41 : vector<4x128x1xf32> to vector<4x128x128xf32>
    %43 = arith.subf %34, %42 : vector<4x128x128xf32>
    %44 = math.exp %43 : vector<4x128x128xf32>
    %c0_20 = arith.constant 0 : index
    %c0_21 = arith.constant 0 : index
    %45 = vector.load %arg9[%c0_20, %c0_21] : memref<4x128xf32, #tpu.memory_space<vmem>>, vector<4x128xf32>
    %46 = arith.mulf %40, %45 : vector<4x128xf32>
    %cst_22 = arith.constant dense<0.000000e+00> : vector<4x128xf32>
    %47 = vector.multi_reduction <add>, %44, %cst_22 [2] : vector<4x128x128xf32> to vector<4x128xf32>
    %48 = arith.addf %46, %47 : vector<4x128xf32>
    %c0_23 = arith.constant 0 : index
    %c0_24 = arith.constant 0 : index
    %49 = vector.load %arg9[%c0_23, %c0_24] : memref<4x128xf32, #tpu.memory_space<vmem>>, vector<4x128xf32>
    tpu.vector_store %arg9[%c0_23, %c0_24], %48 {strides = array<i32>} : memref<4x128xf32, #tpu.memory_space<vmem>>, vector<4x128xf32>,
    %50 = vector.shape_cast %40 : vector<4x128xf32> to vector<4x1x128xf32>
    %c0_25 = arith.constant 0 : index
    %c0_26 = arith.constant 0 : index
    %c0_27 = arith.constant 0 : index
    %51 = vector.load %arg10[%c0_25, %c0_26, %c0_27] : memref<4x8x128xf32, #tpu.memory_space<vmem>>, vector<4x8x128xf32>
    %52 = vector.broadcast %50 : vector<4x1x128xf32> to vector<4x8x128xf32>
    %53 = arith.mulf %52, %51 : vector<4x8x128xf32>
    "tpu.trace_start"() <{level = 10 : i32, message = "hdn,hmn->hdm"}> : () -> ()
    %cst_28 = arith.constant dense<0.000000e+00> : vector<4x8x128xf32>
    %54 = tpu.matmul %6, %44, %cst_28 {dimension_numbers = #tpu.dot_dimension_numbers<[2], [2], [1], [1], [0, 0, 0, 1, 1, 1], [0], [0]>} : vector<4x8x128xf32>, vector<4x128x128xf32>, vector<4x8x128xf32> -> vector<4x8x128xf32>
    "tpu.trace_stop"() : () -> ()
    %55 = arith.addf %53, %54 : vector<4x8x128xf32>
    %c0_29 = arith.constant 0 : index
    %c0_30 = arith.constant 0 : index
    %c0_31 = arith.constant 0 : index
    %56 = vector.load %arg10[%c0_29, %c0_30, %c0_31] : memref<4x8x128xf32, #tpu.memory_space<vmem>>, vector<4x8x128xf32>
    tpu.vector_store %arg10[%c0_29, %c0_30, %c0_31], %55 {strides = array<i32>} : memref<4x8x128xf32, #tpu.memory_space<vmem>>, vector<4x8x128xf32>,
    %c0_32 = arith.constant 0 : index
    %c0_33 = arith.constant 0 : index
    %57 = vector.load %arg8[%c0_32, %c0_33] : memref<4x128xf32, #tpu.memory_space<vmem>>, vector<4x128xf32>
    tpu.vector_store %arg8[%c0_32, %c0_33], %37 {strides = array<i32>} : memref<4x128xf32, #tpu.memory_space<vmem>>, vector<4x128xf32>,
    %c1_i32 = arith.constant 1 : i32
    %58 = arith.cmpi eq, %arg1, %c1_i32 : i32
    %59 = arith.extui %58 : i1 to i32
    %c0_i32_34 = arith.constant 0 : i32
    %60 = arith.cmpi ne, %59, %c0_i32_34 : i32
    scf.if %60 {
      %c0_35 = arith.constant 0 : index
      %c0_36 = arith.constant 0 : index
      %c0_37 = arith.constant 0 : index
      %61 = vector.load %arg10[%c0_35, %c0_36, %c0_37] : memref<4x8x128xf32, #tpu.memory_space<vmem>>, vector<4x8x128xf32>
      %c0_38 = arith.constant 0 : index
      %c0_39 = arith.constant 0 : index
      %62 = vector.load %arg9[%c0_38, %c0_39] : memref<4x128xf32, #tpu.memory_space<vmem>>, vector<4x128xf32>
      %cst_40 = arith.constant 1.000000e-30 : f32
      %63 = vector.broadcast %cst_40 : f32 to vector<4x128xf32>
      %64 = arith.maximumf %62, %63 : vector<4x128xf32>
      %65 = vector.shape_cast %64 : vector<4x128xf32> to vector<4x1x128xf32>
      %66 = vector.broadcast %65 : vector<4x1x128xf32> to vector<4x8x128xf32>
      %67 = arith.divf %61, %66 : vector<4x8x128xf32>
      %68 = vector.shape_cast %67 : vector<4x8x128xf32> to vector<32x128xf32>
      %cst_41 = arith.constant 0.000000e+00 : f32
      %69 = vector.broadcast %cst_41 : f32 to vector<32x128xf32>
      %70 = arith.cmpf ogt, %68, %69 : vector<32x128xf32>
      %cst_42 = arith.constant 0.000000e+00 : f32
      %71 = vector.broadcast %cst_42 : f32 to vector<32x128xf32>
      %72 = arith.minimumf %68, %71 : vector<32x128xf32>
      %73 = math.exp %72 : vector<32x128xf32>
      %cst_43 = arith.constant 1.000000e+00 : f32
      %74 = vector.broadcast %cst_43 : f32 to vector<32x128xf32>
      %75 = arith.subf %73, %74 : vector<32x128xf32>
      %76 = arith.select %70, %68, %75 : vector<32x128xi1>, vector<32x128xf32>
      %c0_44 = arith.constant 0 : index
      %c0_45 = arith.constant 0 : index
      %77 = vector.load %arg7[%c0_44, %c0_45] : memref<32x128xf32, #tpu.memory_space<vmem>>, vector<32x128xf32>
      tpu.vector_store %arg7[%c0_44, %c0_45], %76 {strides = array<i32>} : memref<32x128xf32, #tpu.memory_space<vmem>>, vector<32x128xf32>,
    } else {
    }
    return
  }
  func.func @transform_0(%arg0: i32, %arg1: i32) -> (i32, i32) {
    %c0_i32 = arith.constant 0 : i32
    %c0_i32_0 = arith.constant 0 : i32
    return %c0_i32, %arg0 : i32, i32
  }
  func.func @transform_1(%arg0: i32, %arg1: i32) -> (i32, i32) {
    %c0_i32 = arith.constant 0 : i32
    %c0_i32_0 = arith.constant 0 : i32
    return %c0_i32, %arg1 : i32, i32
  }
  func.func @transform_2(%arg0: i32, %arg1: i32) -> (i32, i32) {
    %c0_i32 = arith.constant 0 : i32
    %c0_i32_0 = arith.constant 0 : i32
    %c0_i32_1 = arith.constant 0 : i32
    return %c0_i32, %c0_i32_0 : i32, i32
  }
  func.func @transform_3(%arg0: i32, %arg1: i32) -> (i32, i32) {
    %c0_i32 = arith.constant 0 : i32
    %c0_i32_0 = arith.constant 0 : i32
    %c0_i32_1 = arith.constant 0 : i32
    return %c0_i32, %c0_i32_0 : i32, i32
  }
  func.func @transform_4(%arg0: i32, %arg1: i32) -> (i32, i32) {
    %c0_i32 = arith.constant 0 : i32
    return %arg0, %arg1 : i32, i32
  }
  func.func @transform_5(%arg0: i32, %arg1: i32) -> (i32, i32) {
    %c0_i32 = arith.constant 0 : i32
    %c0_i32_0 = arith.constant 0 : i32
    return %c0_i32, %arg0 : i32, i32
  }
}

</mosaic_0001>

<llo_original>
// kernel: tpu_custom_call.1
$region0: #{tpu_custom_call.1}
  #allocation0 [shape = 'u32[]', space=smem, size = 0x4, offset = 0x4, fixed_abs, tag = 'smem constant byte address 0x4 - core index']
  #allocation1 [shape = 'u32[144,128]{1,0:T(1,128)}', space=vmem, size = 0x12000, scoped, tag = 'internal scratch']
  #allocation2 [shape = 'f32[4,128]{1,0:T(4,128)}', space=vmem, size = 0x800, scoped, tag = 'scratch operand']
  #allocation3 [shape = 'f32[4,128]{1,0:T(4,128)}', space=vmem, size = 0x800, scoped, tag = 'scratch operand']
  #allocation4 [shape = 'f32[4,8,128]{2,1,0:T(8,128)}', space=vmem, size = 0x4000, scoped, tag = 'scratch operand']
  %s0 = inlined_call_operand.hbm [shape: f32[32,256], index: 0, kind: input, shape index: {}]
  %s1 = inlined_call_operand.hbm [shape: f32[32,256], index: 1, kind: input, shape index: {}]
  %s2 = inlined_call_operand.vmem [shape: f32[4,8], index: 2, kind: input, shape index: {}]
  %s3 = inlined_call_operand.vmem [shape: f32[4,8], index: 3, kind: input, shape index: {}]
  %s4 = inlined_call_operand.hbm [shape: bf16[256,256], index: 4, kind: input, shape index: {}]
  %s5 = inlined_call_operand.hbm [shape: f32[32,256], index: 5, kind: output, shape index: {}]
  %s6 = sld [smem:[#allocation0]]
  $region73: #{tpu_custom_call.1} parent=0
    _
  %s8 = ssub.s32 1, %s6
  %s9 = scalar_select 0, %s8, %s6
  $region1: #{tpu_custom_call.1} parent=0
    #allocation5 [shape = 'u8[32768]{0}', space=vmem, size = 0x8000, scoped, tag = 'input window, operand 0']
    #allocation6 [shape = 's32[2]{0}', space=sflag, size = 0x8, scoped, tag = 'scoped memory for tpu_custom_call.1']
    #allocation7 [shape = 's32[2]{0}', space=sflag, size = 0x8, scoped, tag = 'scoped memory for tpu_custom_call.1']
    #allocation8 [shape = 'u8[32768]{0}', space=vmem, size = 0x8000, scoped, tag = 'input window, operand 1']
    #allocation9 [shape = 's32[2]{0}', space=sflag, size = 0x8, scoped, tag = 'scoped memory for tpu_custom_call.1']
    #allocation10 [shape = 'u8[65536]{0}', space=vmem, size = 0x10000, scoped, tag = 'input window, operand 4']
    #allocation11 [shape = 'u8[32768]{0}', space=vmem, size = 0x8000, scoped, tag = 'output window, operand 0']
    %10 = vsyncpa [#allocation6], 0
    %s11 = scalar_lea.sflag [#allocation6], 1
    %12 = vsyncpa %s11, 0
    %13 = vsyncpa [#allocation9], 0
    %s14 = scalar_lea.sflag [#allocation9], 1
    %15 = vsyncpa %s14, 0
    %16 = vsyncpa [#allocation7], 0
    %s17 = scalar_lea.sflag [#allocation7], 1
    %18 = vsyncpa %s17, 0
    loop: start=0, step=1, limit=6
    $region2: #{tpu_custom_call.1} parent=1 // loop_pre_header
      _
    $region3: #{tpu_custom_call.1} parent=1 // loop_header
      %s20 = sphi 0, %s24
      %p21 = scmp.ge.s32.totalorder %s20, 6
      %s27 = sphi 0, %s39
      %s28 = sphi 0, %s35
      %s29 = sphi 0, %s27
      %s30 = sphi 0, %s28
      %s31 = sphi 0, %s29
      %s32 = sphi 0, %s30
      %s42 = sphi 0, %s44
      %s45 = sphi 0, %s42
      %s46 = sphi 0, %s45
      %s62 = sphi 0, %s46
      %s68 = sphi 0, %s70
      %s71 = sphi 0, %s68
      %s72 = sphi 0, %s71
      %s88 = sphi 0, %s72
      %s92 = sphi 0, %s92
      %s94 = sphi 0, %s92
      %s95 = sphi 0, %s94
      %s109 = sphi 0, %s95
      %s113 = sphi 0, %s113
      %s115 = sphi 0, %s113
      %s116 = sphi 0, %s115
      %s130 = sphi 0, %s116
      %s138 = sphi 0, %s140
      %s141 = sphi 0, %s138
      %s142 = sphi 0, %s141
      %s158 = sphi 0, %s142
      %s164 = sphi 0, %s166
      %s167 = sphi 0, %s164
      %s168 = sphi 0, %s167
      %s184 = sphi 0, %s168
    $region4: #{tpu_custom_call.1} parent=1 // loop_header_branch
      %23 = sbr.rel (%p21) target = $region8
    $region5: #{tpu_custom_call.1} parent=1 // loop_body
      %s25 = ssub.s32 %s20, 1
      %s26 = ssub.s32 %s20, 2
      %s33 = sadd.s32 1, %s28
      %p34 = scmp.ge.s32.totalorder %s33, 2
      %s35 = scalar_select %p34, 0, %s33
      %s36 = sadd.s32 1, %s27
      %s37 = scalar_select %p34, %s36, %s27
      %p38 = scmp.ge.s32.totalorder %s37, 2
      %s39 = scalar_select %p38, 0, %s37
      %s40 = ssub.s32 %s27, %s39
      %p41 = scmp.eq.s32.totalorder %s40, 0
      %s43 = sadd.s32 %s42, 1
      %s44 = scalar_select %p41, %s42, %s43
      %p47 = pneg %p41
      %p48 = scmp.eq.s32.totalorder %s20, 3
      %p49 = por %p47, %p48
      %p50 = scmp.ne.s32.totalorder %s42, %s45
      %p51 = scmp.eq.s32.totalorder %s20, 0
      %p52 = por %p50, %p51
      %p53 = scmp.ne.s32.totalorder %s42, %s45
      %p54 = scmp.eq.s32.totalorder %s25, 3
      %p55 = por %p53, %p54
      %p56 = scmp.ne.s32.totalorder %s45, %s46
      %p57 = scmp.eq.s32.totalorder %s25, 0
      %p58 = por %p56, %p57
      %p59 = scmp.ne.s32.totalorder %s45, %s46
      %p60 = scmp.eq.s32.totalorder %s26, 3
      %p61 = por %p59, %p60
      %p63 = scmp.ne.s32.totalorder %s46, %s62
      %p64 = scmp.eq.s32.totalorder %s26, 0
      %p65 = por %p63, %p64
      %s66 = ssub.s32 %s28, %s35
      %p67 = scmp.eq.s32.totalorder %s66, 0
      %s69 = sadd.s32 %s68, 1
      %s70 = scalar_select %p67, %s68, %s69
      %p73 = pneg %p67
      %p74 = scmp.eq.s32.totalorder %s20, 3
      %p75 = por %p73, %p74
      %p76 = scmp.ne.s32.totalorder %s68, %s71
      %p77 = scmp.eq.s32.totalorder %s20, 0
      %p78 = por %p76, %p77
      %p79 = scmp.ne.s32.totalorder %s68, %s71
      %p80 = scmp.eq.s32.totalorder %s25, 3
      %p81 = por %p79, %p80
      %p82 = scmp.ne.s32.totalorder %s71, %s72
      %p83 = scmp.eq.s32.totalorder %s25, 0
      %p84 = por %p82, %p83
      %p85 = scmp.ne.s32.totalorder %s71, %s72
      %p86 = scmp.eq.s32.totalorder %s26, 3
      %p87 = por %p85, %p86
      %p89 = scmp.ne.s32.totalorder %s72, %s88
      %p90 = scmp.eq.s32.totalorder %s26, 0
      %p91 = por %p89, %p90
      %s93 = sadd.s32 %s92, 1
      %p96 = scmp.eq.s32.totalorder %s20, 3
      %p97 = scmp.ne.s32.totalorder %s92, %s94
      %p98 = scmp.eq.s32.totalorder %s20, 0
      %p99 = por %p97, %p98
      %p100 = scmp.ne.s32.totalorder %s92, %s94
      %p101 = scmp.eq.s32.totalorder %s25, 3
      %p102 = por %p100, %p101
      %p103 = scmp.ne.s32.totalorder %s94, %s95
      %p104 = scmp.eq.s32.totalorder %s25, 0
      %p105 = por %p103, %p104
      %p106 = scmp.ne.s32.totalorder %s94, %s95
      %p107 = scmp.eq.s32.totalorder %s26, 3
      %p108 = por %p106, %p107
      %p110 = scmp.ne.s32.totalorder %s95, %s109
      %p111 = scmp.eq.s32.totalorder %s26, 0
      %p112 = por %p110, %p111
      %s114 = sadd.s32 %s113, 1
      %p117 = scmp.eq.s32.totalorder %s20, 3
      %p118 = scmp.ne.s32.totalorder %s113, %s115
      %p119 = scmp.eq.s32.totalorder %s20, 0
      %p120 = por %p118, %p119
      %p121 = scmp.ne.s32.totalorder %s113, %s115
      %p122 = scmp.eq.s32.totalorder %s25, 3
      %p123 = por %p121, %p122
      %p124 = scmp.ne.s32.totalorder %s115, %s116
      %p125 = scmp.eq.s32.totalorder %s25, 0
      %p126 = por %p124, %p125
      %p127 = scmp.ne.s32.totalorder %s115, %s116
      %p128 = scmp.eq.s32.totalorder %s26, 3
      %p129 = por %p127, %p128
      %p131 = scmp.ne.s32.totalorder %s116, %s130
      %p132 = scmp.eq.s32.totalorder %s26, 0
      %p133 = por %p131, %p132
      %s134 = ssub.s32 %s27, %s39
      %s135 = ssub.s32 %s28, %s35
      %s136 = sor.u32 %s134, %s135
      %p137 = scmp.eq.s32.totalorder %s136, 0
      %s139 = sadd.s32 %s138, 1
      %s140 = scalar_select %p137, %s138, %s139
      %p143 = pneg %p137
      %p144 = scmp.eq.s32.totalorder %s20, 3
      %p145 = por %p143, %p144
      %p146 = scmp.ne.s32.totalorder %s138, %s141
      %p147 = scmp.eq.s32.totalorder %s20, 0
      %p148 = por %p146, %p147
      %p149 = scmp.ne.s32.totalorder %s138, %s141
      %p150 = scmp.eq.s32.totalorder %s25, 3
      %p151 = por %p149, %p150
      %p152 = scmp.ne.s32.totalorder %s141, %s142
      %p153 = scmp.eq.s32.totalorder %s25, 0
      %p154 = por %p152, %p153
      %p155 = scmp.ne.s32.totalorder %s141, %s142
      %p156 = scmp.eq.s32.totalorder %s26, 3
      %p157 = por %p155, %p156
      %p159 = scmp.ne.s32.totalorder %s142, %s158
      %p160 = scmp.eq.s32.totalorder %s26, 0
      %p161 = por %p159, %p160
      %s162 = ssub.s32 %s27, %s39
      %p163 = scmp.eq.s32.totalorder %s162, 0
      %s165 = sadd.s32 %s164, 1
      %s166 = scalar_select %p163, %s164, %s165
      %p169 = pneg %p163
      %p170 = scmp.eq.s32.totalorder %s20, 3
      %p171 = por %p169, %p170
      %p172 = scmp.ne.s32.totalorder %s164, %s167
      %p173 = scmp.eq.s32.totalorder %s20, 0
      %p174 = por %p172, %p173
      %p175 = scmp.ne.s32.totalorder %s164, %s167
      %p176 = scmp.eq.s32.totalorder %s25, 3
      %p177 = por %p175, %p176
      %p178 = scmp.ne.s32.totalorder %s167, %s168
      %p179 = scmp.eq.s32.totalorder %s25, 0
      %p180 = por %p178, %p179
      %p181 = scmp.ne.s32.totalorder %s167, %s168
      %p182 = scmp.eq.s32.totalorder %s26, 3
      %p183 = por %p181, %p182
      %p185 = scmp.ne.s32.totalorder %s168, %s184
      %p186 = scmp.eq.s32.totalorder %s26, 0
      %p187 = por %p185, %p186
      %p188 = scmp.le.s32.totalorder 1, %s20
      %p189 = scmp.lt.s32.totalorder %s20, 5
      %p190 = pnand %p188, %p189
      %p191 = pneg %p190
      // Predicated region
      $region9: #{tpu_custom_call.1} parent=5 // pred_check
        _
      $region10: #{tpu_custom_call.1} parent=5 // pred_check_branch
        %193 = sbr.rel (%p190) target = $region12
      $region11: #{tpu_custom_call.1} parent=5 // pred_region
        %s194 = ssub.s32 %s20, 1
        // Predicated region
        $region13: #{tpu_custom_call.1} parent=11 // pred_check
          %p195 = pneg %p105
        $region14: #{tpu_custom_call.1} parent=11 // pred_check_branch
          %197 = sbr.rel (%p195) target = $region16
        $region15: #{tpu_custom_call.1} parent=11 // pred_region
          _
        $region16: #{tpu_custom_call.1} parent=11 // pred_fallthru
          _
        // Predicated region
        $region17: #{tpu_custom_call.1} parent=11 // pred_check
          %p198 = pneg %p126
        $region18: #{tpu_custom_call.1} parent=11 // pred_check_branch
          %200 = sbr.rel (%p198) target = $region20
        $region19: #{tpu_custom_call.1} parent=11 // pred_region
          _
        $region20: #{tpu_custom_call.1} parent=11 // pred_fallthru
          _
      $region12: #{tpu_custom_call.1} parent=5 // pred_fallthru
        _
      %p201 = scmp.lt.s32.totalorder %s20, 4
      // Predicated region
      $region21: #{tpu_custom_call.1} parent=5 // pred_check
        %p202 = pneg %p201
      $region22: #{tpu_custom_call.1} parent=5 // pred_check_branch
        %204 = sbr.rel (%p202) target = $region24
      $region23: #{tpu_custom_call.1} parent=5 // pred_region
        // Predicated region
        $region25: #{tpu_custom_call.1} parent=23 // pred_check
          %p205 = pneg %p52
        $region26: #{tpu_custom_call.1} parent=23 // pred_check_branch
          %207 = sbr.rel (%p205) target = $region28
        $region27: #{tpu_custom_call.1} parent=23 // pred_region
          %s208 = sand.u32 %s42, 1
          %s209 = scalar_lea.sflag [#allocation6], %s208
          %s210 = sand.u32 %s42, 1
          %s211 = smul.addr %s210, 32
          %s212 = scalar_lea.vmem [#allocation5], %s211
          %s214 = ssub.s32 512, 512
          %215 = vsyncadd %s209, %s214
          %s216 = smul.addr %s27, 128
          %s217 = scalar_lea.hbm %s0, %s216
          %s218 = sshll.u32 %s212, 4
          %s219 = int_to_ptr.vmem [resolvable:$true] %s218
          %224 = dma.hbm_to_vmem [thread:$0]  %s217, 512, %s219, %s209, 256, 128, 8
        $region28: #{tpu_custom_call.1} parent=23 // pred_fallthru
          _
        // Predicated region
        $region29: #{tpu_custom_call.1} parent=23 // pred_check
          %p225 = pneg %p78
        $region30: #{tpu_custom_call.1} parent=23 // pred_check_branch
          %227 = sbr.rel (%p225) target = $region32
        $region31: #{tpu_custom_call.1} parent=23 // pred_region
          %s228 = sand.u32 %s20, 1
          %s229 = scalar_lea.sflag [#allocation9], %s228
          %s230 = sand.u32 %s68, 1
          %s231 = smul.addr %s230, 32
          %s232 = scalar_lea.vmem [#allocation8], %s231
          %s234 = ssub.s32 512, 512
          %235 = vsyncadd %s229, %s234
          %s236 = smul.addr %s28, 128
          %s237 = scalar_lea.hbm %s1, %s236
          %s238 = sshll.u32 %s232, 4
          %s239 = int_to_ptr.vmem [resolvable:$true] %s238
          %244 = dma.hbm_to_vmem [thread:$0]  %s237, 512, %s239, %s229, 256, 128, 8
        $region32: #{tpu_custom_call.1} parent=23 // pred_fallthru
          _
        // Predicated region
        $region33: #{tpu_custom_call.1} parent=23 // pred_check
          %p245 = pneg %p148
        $region34: #{tpu_custom_call.1} parent=23 // pred_check_branch
          %247 = sbr.rel (%p245) target = $region36
        $region35: #{tpu_custom_call.1} parent=23 // pred_region
          %s248 = sand.u32 %s20, 1
          %s249 = scalar_lea.sflag [#allocation9], %s248
          %s250 = sand.u32 %s138, 1
          %s251 = smul.addr %s250, 64
          %s252 = scalar_lea.vmem [#allocation10], %s251
          %s253 = smul.u32 16, %s27
          %s255 = ssub.s32 1024, 1024
          %256 = vsyncadd %s249, %s255
          %s257 = smul.addr %s253, 2
          %s258 = sadd.s32 %s28, %s257
          %s259 = smul.addr %s258, 64
          %s260 = scalar_lea.hbm %s4, %s259
          %s261 = sshll.u32 %s252, 4
          %s262 = int_to_ptr.vmem [resolvable:$true] %s261
          %267 = dma.hbm_to_vmem [thread:$0]  %s260, 1024, %s262, %s249, 128, 64, 4
        $region36: #{tpu_custom_call.1} parent=23 // pred_fallthru
          _
      $region24: #{tpu_custom_call.1} parent=5 // pred_fallthru
        _
      %p268 = scmp.le.s32.totalorder 1, %s20
      %p269 = scmp.lt.s32.totalorder %s20, 5
      %p270 = pnand %p268, %p269
      %p271 = pneg %p270
      // Predicated region
      $region37: #{tpu_custom_call.1} parent=5 // pred_check
        _
      $region38: #{tpu_custom_call.1} parent=5 // pred_check_branch
        %273 = sbr.rel (%p270) target = $region40
      $region39: #{tpu_custom_call.1} parent=5 // pred_region
        %s274 = ssub.s32 %s20, 1
        %s275 = sand.u32 %s45, 1
        %s276 = scalar_lea.sflag [#allocation6], %s275
        %s277 = sand.u32 %s45, 1
        %s278 = smul.addr %s277, 32
        %s279 = scalar_lea.vmem [#allocation5], %s278
        // Predicated region
        $region41: #{tpu_custom_call.1} parent=39 // pred_check
          %p280 = pneg %p58
        $region42: #{tpu_custom_call.1} parent=39 // pred_check_branch
          %282 = sbr.rel (%p280) target = $region44
        $region43: #{tpu_custom_call.1} parent=39 // pred_region
          %283 = dma.done %s276, 512
        $region44: #{tpu_custom_call.1} parent=39 // pred_fallthru
          _
        %s284 = sand.u32 %s25, 1
        %s285 = scalar_lea.sflag [#allocation9], %s284
        %s286 = sand.u32 %s71, 1
        %s287 = smul.addr %s286, 32
        %s288 = scalar_lea.vmem [#allocation8], %s287
        // Predicated region
        $region45: #{tpu_custom_call.1} parent=39 // pred_check
          %p289 = pneg %p84
        $region46: #{tpu_custom_call.1} parent=39 // pred_check_branch
          %291 = sbr.rel (%p289) target = $region48
        $region47: #{tpu_custom_call.1} parent=39 // pred_region
          %292 = dma.done %s285, 512
        $region48: #{tpu_custom_call.1} parent=39 // pred_fallthru
          _
        %s293 = sand.u32 %s25, 1
        %s294 = scalar_lea.sflag [#allocation9], %s293
        %s295 = sand.u32 %s141, 1
        %s296 = smul.addr %s295, 64
        %s297 = scalar_lea.vmem [#allocation10], %s296
        // Predicated region
        $region49: #{tpu_custom_call.1} parent=39 // pred_check
          %p298 = pneg %p154
        $region50: #{tpu_custom_call.1} parent=39 // pred_check_branch
          %300 = sbr.rel (%p298) target = $region52
        $region51: #{tpu_custom_call.1} parent=39 // pred_region
          %301 = dma.done %s294, 1024
        $region52: #{tpu_custom_call.1} parent=39 // pred_fallthru
          _
        %s302 = sand.u32 %s45, 1
        %s303 = scalar_lea.sflag [#allocation6], %s302
        %s304 = sand.u32 %s45, 1
        %s305 = smul.addr %s304, 32
        %s306 = scalar_lea.vmem [#allocation5], %s305
        %p307 = pneg %p58
        %p308 = pneg %p55
        %s309 = sand.u32 %s25, 1
        %s310 = scalar_lea.sflag [#allocation9], %s309
        %s311 = sand.u32 %s71, 1
        %s312 = smul.addr %s311, 32
        %s313 = scalar_lea.vmem [#allocation8], %s312
        %p314 = pneg %p84
        %p315 = pneg %p81
        %p316 = pneg %p105
        %p317 = pneg %p102
        %p318 = pneg %p126
        %p319 = pneg %p123
        %s320 = sand.u32 %s25, 1
        %s321 = scalar_lea.sflag [#allocation9], %s320
        %s322 = sand.u32 %s141, 1
        %s323 = smul.addr %s322, 64
        %s324 = scalar_lea.vmem [#allocation10], %s323
        %p325 = pneg %p154
        %p326 = pneg %p151
        %p327 = pneg %p180
        %p328 = pneg %p177
        %s329 = sand.u32 %s167, 1
        %s330 = scalar_lea.sflag [#allocation7], %s329
        %s331 = sand.u32 %s167, 1
        %s332 = smul.addr %s331, 32
        %s333 = scalar_lea.vmem [#allocation11], %s332
        %s334 = smul.u32 16, %s29
        %p338 = scmp.eq.s32.totalorder %s30, 0
        // Predicated region
        $region53: #{tpu_custom_call.1} parent=39 // pred_check
          %p339 = pneg %p338
        $region54: #{tpu_custom_call.1} parent=39 // pred_check_branch
          %341 = sbr.rel (%p339) target = $region56
        $region55: #{tpu_custom_call.1} parent=39 // pred_region
          %342 = vst [vmem:[#allocation2] sm:$0xf] -1e+30
          %343 = vst [vmem:[#allocation3] sm:$0xf] 0.0
          %344 = vst [vmem:[#allocation4] sm:$0xff] 0.0
          %345 = vst [vmem:[#allocation4 + $0x8] sm:$0xff] 0.0
          %346 = vst [vmem:[#allocation4 + $0x10] sm:$0xff] 0.0
          %347 = vst [vmem:[#allocation4 + $0x18] sm:$0xff] 0.0
        $region56: #{tpu_custom_call.1} parent=39 // pred_fallthru
          _
        %v348 = vld [vmem:[%s279] sm:$0xff]
        %v349 = vld [vmem:[%s279 + $0x8] sm:$0xff]
        %v350 = vld [vmem:[%s279 + $0x10] sm:$0xff]
        %v351 = vld [vmem:[%s279 + $0x18] sm:$0xff]
        %v352 = vld [vmem:[%s288] sm:$0xff]
        %v353 = vld [vmem:[%s288 + $0x8] sm:$0xff]
        %v354 = vld [vmem:[%s288 + $0x10] sm:$0xff]
        %v355 = vld [vmem:[%s288 + $0x18] sm:$0xff]
        %v356 = vld [vmem:[%s3] sm:$0xf]
        %v357 = vlaneseq
        %v358 = vshrl.u32 %v357, 7
        %v359 = vsub.s32 0, %v358
        %v360 = vrot.slane %v356, %v359
        %362 = vbcast.lane.b32.xlu0 %v360, 256
        %v363 = vpop.permute.xlu0 %362
        %v364 = vlaneseq
        %v365 = vshrl.u32 %v364, 7
        %v366 = vsub.s32 1, %v365
        %v367 = vrot.slane %v356, %v366
        %369 = vbcast.lane.b32.xlu0 %v367, 256
        %v370 = vpop.permute.xlu0 %369
        %v371 = vlaneseq
        %v372 = vshrl.u32 %v371, 7
        %v373 = vsub.s32 2, %v372
        %v374 = vrot.slane %v356, %v373
        %376 = vbcast.lane.b32.xlu0 %v374, 256
        %v377 = vpop.permute.xlu0 %376
        %v378 = vlaneseq
        %v379 = vshrl.u32 %v378, 7
        %v380 = vsub.s32 3, %v379
        %v381 = vrot.slane %v356, %v380
        %383 = vbcast.lane.b32.xlu0 %v381, 256
        %v384 = vpop.permute.xlu0 %383
        %v385 = vmul.f32 %v348, %v363
        %v386 = vmul.f32 %v349, %v370
        %v387 = vmul.f32 %v350, %v377
        %v388 = vmul.f32 %v351, %v384
        %v389 = vrot.slane %v385, 4
        %v390 = vadd.f32 %v385, %v389
        %v391 = vrot.slane %v390, 2
        %v392 = vadd.f32 %v390, %v391
        %v393 = vrot.slane %v392, 1
        %v394 = vadd.f32 %v392, %v393
        %v395 = vrot.slane %v386, 4
        %v396 = vadd.f32 %v386, %v395
        %v397 = vrot.slane %v396, 2
        %v398 = vadd.f32 %v396, %v397
        %v399 = vrot.slane %v398, 1
        %v400 = vadd.f32 %v398, %v399
        %v401 = vrot.slane %v387, 4
        %v402 = vadd.f32 %v387, %v401
        %v403 = vrot.slane %v402, 2
        %v404 = vadd.f32 %v402, %v403
        %v405 = vrot.slane %v404, 1
        %v406 = vadd.f32 %v404, %v405
        %v407 = vrot.slane %v388, 4
        %v408 = vadd.f32 %v388, %v407
        %v409 = vrot.slane %v408, 2
        %v410 = vadd.f32 %v408, %v409
        %v411 = vrot.slane %v410, 1
        %v412 = vadd.f32 %v410, %v411
        %v413 = vld [vmem:[%s2] sm:$0xf]
        %v414 = vlaneseq
        %v415 = vshrl.u32 %v414, 7
        %v416 = vsub.s32 0, %v415
        %v417 = vrot.slane %v413, %v416
        %419 = vbcast.lane.b32.xlu0 %v417, 256
        %v420 = vpop.permute.xlu0 %419
        %v421 = vlaneseq
        %v422 = vshrl.u32 %v421, 7
        %v423 = vsub.s32 1, %v422
        %v424 = vrot.slane %v413, %v423
        %426 = vbcast.lane.b32.xlu0 %v424, 256
        %v427 = vpop.permute.xlu0 %426
        %v428 = vlaneseq
        %v429 = vshrl.u32 %v428, 7
        %v430 = vsub.s32 2, %v429
        %v431 = vrot.slane %v413, %v430
        %433 = vbcast.lane.b32.xlu0 %v431, 256
        %v434 = vpop.permute.xlu0 %433
        %v435 = vlaneseq
        %v436 = vshrl.u32 %v435, 7
        %v437 = vsub.s32 3, %v436
        %v438 = vrot.slane %v413, %v437
        %440 = vbcast.lane.b32.xlu0 %v438, 256
        %v441 = vpop.permute.xlu0 %440
        %v442 = vmul.f32 %v352, %v420
        %v443 = vmul.f32 %v353, %v427
        %v444 = vmul.f32 %v354, %v434
        %v445 = vmul.f32 %v355, %v441
        %v446 = vrot.slane %v442, 4
        %v447 = vadd.f32 %v442, %v446
        %v448 = vrot.slane %v447, 2
        %v449 = vadd.f32 %v447, %v448
        %v450 = vrot.slane %v449, 1
        %v451 = vadd.f32 %v449, %v450
        %v452 = vrot.slane %v443, 4
        %v453 = vadd.f32 %v443, %v452
        %v454 = vrot.slane %v453, 2
        %v455 = vadd.f32 %v453, %v454
        %v456 = vrot.slane %v455, 1
        %v457 = vadd.f32 %v455, %v456
        %v458 = vrot.slane %v444, 4
        %v459 = vadd.f32 %v444, %v458
        %v460 = vrot.slane %v459, 2
        %v461 = vadd.f32 %v459, %v460
        %v462 = vrot.slane %v461, 1
        %v463 = vadd.f32 %v461, %v462
        %v464 = vrot.slane %v445, 4
        %v465 = vadd.f32 %v445, %v464
        %v466 = vrot.slane %v465, 2
        %v467 = vadd.f32 %v465, %v466
        %v468 = vrot.slane %v467, 1
        %v469 = vadd.f32 %v467, %v468
        %471 = vbcast.lane.b32.xlu0 %v394, 256
        %v472 = vpop.permute.xlu0 %471
        %s474 = sor.u32 256, 8
        %475 = vbcast.lane.b32.xlu0 %v394, %s474
        %v476 = vpop.permute.xlu0 %475
        %s478 = sor.u32 256, 16
        %479 = vbcast.lane.b32.xlu0 %v394, %s478
        %v480 = vpop.permute.xlu0 %479
        %s482 = sor.u32 256, 24
        %483 = vbcast.lane.b32.xlu0 %v394, %s482
        %v484 = vpop.permute.xlu0 %483
        %s486 = sor.u32 256, 32
        %487 = vbcast.lane.b32.xlu0 %v394, %s486
        %v488 = vpop.permute.xlu0 %487
        %s490 = sor.u32 256, 40
        %491 = vbcast.lane.b32.xlu0 %v394, %s490
        %v492 = vpop.permute.xlu0 %491
        %s494 = sor.u32 256, 48
        %495 = vbcast.lane.b32.xlu0 %v394, %s494
        %v496 = vpop.permute.xlu0 %495
        %s498 = sor.u32 256, 56
        %499 = vbcast.lane.b32.xlu0 %v394, %s498
        %v500 = vpop.permute.xlu0 %499
        %s502 = sor.u32 256, 64
        %503 = vbcast.lane.b32.xlu0 %v394, %s502
        %v504 = vpop.permute.xlu0 %503
        %s506 = sor.u32 256, 72
        %507 = vbcast.lane.b32.xlu0 %v394, %s506
        %v508 = vpop.permute.xlu0 %507
        %s510 = sor.u32 256, 80
        %511 = vbcast.lane.b32.xlu0 %v394, %s510
        %v512 = vpop.permute.xlu0 %511
        %s514 = sor.u32 256, 88
        %515 = vbcast.lane.b32.xlu0 %v394, %s514
        %v516 = vpop.permute.xlu0 %515
        %s518 = sor.u32 256, 96
        %519 = vbcast.lane.b32.xlu0 %v394, %s518
        %v520 = vpop.permute.xlu0 %519
        %s522 = sor.u32 256, 104
        %523 = vbcast.lane.b32.xlu0 %v394, %s522
        %v524 = vpop.permute.xlu0 %523
        %s526 = sor.u32 256, 112
        %527 = vbcast.lane.b32.xlu0 %v394, %s526
        %v528 = vpop.permute.xlu0 %527
        %s530 = sor.u32 256, 120
        %531 = vbcast.lane.b32.xlu0 %v394, %s530
        %v532 = vpop.permute.xlu0 %531
        %534 = vbcast.lane.b32.xlu0 %v400, 256
        %v535 = vpop.permute.xlu0 %534
        %s537 = sor.u32 256, 8
        %538 = vbcast.lane.b32.xlu0 %v400, %s537
        %v539 = vpop.permute.xlu0 %538
        %s541 = sor.u32 256, 16
        %542 = vbcast.lane.b32.xlu0 %v400, %s541
        %v543 = vpop.permute.xlu0 %542
        %s545 = sor.u32 256, 24
        %546 = vbcast.lane.b32.xlu0 %v400, %s545
        %v547 = vpop.permute.xlu0 %546
        %s549 = sor.u32 256, 32
        %550 = vbcast.lane.b32.xlu0 %v400, %s549
        %v551 = vpop.permute.xlu0 %550
        %s553 = sor.u32 256, 40
        %554 = vbcast.lane.b32.xlu0 %v400, %s553
        %v555 = vpop.permute.xlu0 %554
        %s557 = sor.u32 256, 48
        %558 = vbcast.lane.b32.xlu0 %v400, %s557
        %v559 = vpop.permute.xlu0 %558
        %s561 = sor.u32 256, 56
        %562 = vbcast.lane.b32.xlu0 %v400, %s561
        %v563 = vpop.permute.xlu0 %562
        %s565 = sor.u32 256, 64
        %566 = vbcast.lane.b32.xlu0 %v400, %s565
        %v567 = vpop.permute.xlu0 %566
        %s569 = sor.u32 256, 72
        %570 = vbcast.lane.b32.xlu0 %v400, %s569
        %v571 = vpop.permute.xlu0 %570
        %s573 = sor.u32 256, 80
        %574 = vbcast.lane.b32.xlu0 %v400, %s573
        %v575 = vpop.permute.xlu0 %574
        %s577 = sor.u32 256, 88
        %578 = vbcast.lane.b32.xlu0 %v400, %s577
        %v579 = vpop.permute.xlu0 %578
        %s581 = sor.u32 256, 96
        %582 = vbcast.lane.b32.xlu0 %v400, %s581
        %v583 = vpop.permute.xlu0 %582
        %s585 = sor.u32 256, 104
        %586 = vbcast.lane.b32.xlu0 %v400, %s585
        %v587 = vpop.permute.xlu0 %586
        %s589 = sor.u32 256, 112
        %590 = vbcast.lane.b32.xlu0 %v400, %s589
        %v591 = vpop.permute.xlu0 %590
        %s593 = sor.u32 256, 120
        %594 = vbcast.lane.b32.xlu0 %v400, %s593
        %v595 = vpop.permute.xlu0 %594
        %597 = vbcast.lane.b32.xlu0 %v406, 256
        %v598 = vpop.permute.xlu0 %597
        %s600 = sor.u32 256, 8
        %601 = vbcast.lane.b32.xlu0 %v406, %s600
        %v602 = vpop.permute.xlu0 %601
        %s604 = sor.u32 256, 16
        %605 = vbcast.lane.b32.xlu0 %v406, %s604
        %v606 = vpop.permute.xlu0 %605
        %s608 = sor.u32 256, 24
        %609 = vbcast.lane.b32.xlu0 %v406, %s608
        %v610 = vpop.permute.xlu0 %609
        %s612 = sor.u32 256, 32
        %613 = vbcast.lane.b32.xlu0 %v406, %s612
        %v614 = vpop.permute.xlu0 %613
        %s616 = sor.u32 256, 40
        %617 = vbcast.lane.b32.xlu0 %v406, %s616
        %v618 = vpop.permute.xlu0 %617
        %s620 = sor.u32 256, 48
        %621 = vbcast.lane.b32.xlu0 %v406, %s620
        %v622 = vpop.permute.xlu0 %621
        %s624 = sor.u32 256, 56
        %625 = vbcast.lane.b32.xlu0 %v406, %s624
        %v626 = vpop.permute.xlu0 %625
        %s628 = sor.u32 256, 64
        %629 = vbcast.lane.b32.xlu0 %v406, %s628
        %v630 = vpop.permute.xlu0 %629
        %s632 = sor.u32 256, 72
        %633 = vbcast.lane.b32.xlu0 %v406, %s632
        %v634 = vpop.permute.xlu0 %633
        %s636 = sor.u32 256, 80
        %637 = vbcast.lane.b32.xlu0 %v406, %s636
        %v638 = vpop.permute.xlu0 %637
        %s640 = sor.u32 256, 88
        %641 = vbcast.lane.b32.xlu0 %v406, %s640
        %v642 = vpop.permute.xlu0 %641
        %s644 = sor.u32 256, 96
        %645 = vbcast.lane.b32.xlu0 %v406, %s644
        %v646 = vpop.permute.xlu0 %645
        %s648 = sor.u32 256, 104
        %649 = vbcast.lane.b32.xlu0 %v406, %s648
        %v650 = vpop.permute.xlu0 %649
        %s652 = sor.u32 256, 112
        %653 = vbcast.lane.b32.xlu0 %v406, %s652
        %v654 = vpop.permute.xlu0 %653
        %s656 = sor.u32 256, 120
        %657 = vbcast.lane.b32.xlu0 %v406, %s656
        %v658 = vpop.permute.xlu0 %657
        %660 = vbcast.lane.b32.xlu0 %v412, 256
        %v661 = vpop.permute.xlu0 %660
        %s663 = sor.u32 256, 8
        %664 = vbcast.lane.b32.xlu0 %v412, %s663
        %v665 = vpop.permute.xlu0 %664
        %s667 = sor.u32 256, 16
        %668 = vbcast.lane.b32.xlu0 %v412, %s667
        %v669 = vpop.permute.xlu0 %668
        %s671 = sor.u32 256, 24
        %672 = vbcast.lane.b32.xlu0 %v412, %s671
        %v673 = vpop.permute.xlu0 %672
        %s675 = sor.u32 256, 32
        %676 = vbcast.lane.b32.xlu0 %v412, %s675
        %v677 = vpop.permute.xlu0 %676
        %s679 = sor.u32 256, 40
        %680 = vbcast.lane.b32.xlu0 %v412, %s679
        %v681 = vpop.permute.xlu0 %680
        %s683 = sor.u32 256, 48
        %684 = vbcast.lane.b32.xlu0 %v412, %s683
        %v685 = vpop.permute.xlu0 %684
        %s687 = sor.u32 256, 56
        %688 = vbcast.lane.b32.xlu0 %v412, %s687
        %v689 = vpop.permute.xlu0 %688
        %s691 = sor.u32 256, 64
        %692 = vbcast.lane.b32.xlu0 %v412, %s691
        %v693 = vpop.permute.xlu0 %692
        %s695 = sor.u32 256, 72
        %696 = vbcast.lane.b32.xlu0 %v412, %s695
        %v697 = vpop.permute.xlu0 %696
        %s699 = sor.u32 256, 80
        %700 = vbcast.lane.b32.xlu0 %v412, %s699
        %v701 = vpop.permute.xlu0 %700
        %s703 = sor.u32 256, 88
        %704 = vbcast.lane.b32.xlu0 %v412, %s703
        %v705 = vpop.permute.xlu0 %704
        %s707 = sor.u32 256, 96
        %708 = vbcast.lane.b32.xlu0 %v412, %s707
        %v709 = vpop.permute.xlu0 %708
        %s711 = sor.u32 256, 104
        %712 = vbcast.lane.b32.xlu0 %v412, %s711
        %v713 = vpop.permute.xlu0 %712
        %s715 = sor.u32 256, 112
        %716 = vbcast.lane.b32.xlu0 %v412, %s715
        %v717 = vpop.permute.xlu0 %716
        %s719 = sor.u32 256, 120
        %720 = vbcast.lane.b32.xlu0 %v412, %s719
        %v721 = vpop.permute.xlu0 %720
        %v722 = vadd.f32 %v472, %v451
        %v723 = vadd.f32 %v476, %v451
        %v724 = vadd.f32 %v480, %v451
        %v725 = vadd.f32 %v484, %v451
        %v726 = vadd.f32 %v488, %v451
        %v727 = vadd.f32 %v492, %v451
        %v728 = vadd.f32 %v496, %v451
        %v729 = vadd.f32 %v500, %v451
        %v730 = vadd.f32 %v504, %v451
        %v731 = vadd.f32 %v508, %v451
        %v732 = vadd.f32 %v512, %v451
        %v733 = vadd.f32 %v516, %v451
        %v734 = vadd.f32 %v520, %v451
        %v735 = vadd.f32 %v524, %v451
        %v736 = vadd.f32 %v528, %v451
        %v737 = vadd.f32 %v532, %v451
        %v738 = vadd.f32 %v535, %v457
        %v739 = vadd.f32 %v539, %v457
        %v740 = vadd.f32 %v543, %v457
        %v741 = vadd.f32 %v547, %v457
        %v742 = vadd.f32 %v551, %v457
        %v743 = vadd.f32 %v555, %v457
        %v744 = vadd.f32 %v559, %v457
        %v745 = vadd.f32 %v563, %v457
        %v746 = vadd.f32 %v567, %v457
        %v747 = vadd.f32 %v571, %v457
        %v748 = vadd.f32 %v575, %v457
        %v749 = vadd.f32 %v579, %v457
        %v750 = vadd.f32 %v583, %v457
        %v751 = vadd.f32 %v587, %v457
        %v752 = vadd.f32 %v591, %v457
        %v753 = vadd.f32 %v595, %v457
        %v754 = vadd.f32 %v598, %v463
        %v755 = vadd.f32 %v602, %v463
        %v756 = vadd.f32 %v606, %v463
        %v757 = vadd.f32 %v610, %v463
        %v758 = vadd.f32 %v614, %v463
        %v759 = vadd.f32 %v618, %v463
        %v760 = vadd.f32 %v622, %v463
        %v761 = vadd.f32 %v626, %v463
        %v762 = vadd.f32 %v630, %v463
        %v763 = vadd.f32 %v634, %v463
        %v764 = vadd.f32 %v638, %v463
        %v765 = vadd.f32 %v642, %v463
        %v766 = vadd.f32 %v646, %v463
        %v767 = vadd.f32 %v650, %v463
        %v768 = vadd.f32 %v654, %v463
        %v769 = vadd.f32 %v658, %v463
        %v770 = vadd.f32 %v661, %v469
        %v771 = vadd.f32 %v665, %v469
        %v772 = vadd.f32 %v669, %v469
        %v773 = vadd.f32 %v673, %v469
        %v774 = vadd.f32 %v677, %v469
        %v775 = vadd.f32 %v681, %v469
        %v776 = vadd.f32 %v685, %v469
        %v777 = vadd.f32 %v689, %v469
        %v778 = vadd.f32 %v693, %v469
        %v779 = vadd.f32 %v697, %v469
        %v780 = vadd.f32 %v701, %v469
        %v781 = vadd.f32 %v705, %v469
        %v782 = vadd.f32 %v709, %v469
        %v783 = vadd.f32 %v713, %v469
        %v784 = vadd.f32 %v717, %v469
        %v785 = vadd.f32 %v721, %v469
        %vm786 = vcmp.gt.f32.partialorder %v722, 0.0
        %vm787 = vcmp.gt.f32.partialorder %v723, 0.0
        %vm788 = vcmp.gt.f32.partialorder %v724, 0.0
        %vm789 = vcmp.gt.f32.partialorder %v725, 0.0
        %vm790 = vcmp.gt.f32.partialorder %v726, 0.0
        %vm791 = vcmp.gt.f32.partialorder %v727, 0.0
        %vm792 = vcmp.gt.f32.partialorder %v728, 0.0
        %vm793 = vcmp.gt.f32.partialorder %v729, 0.0
        %vm794 = vcmp.gt.f32.partialorder %v730, 0.0
        %vm795 = vcmp.gt.f32.partialorder %v731, 0.0
        %vm796 = vcmp.gt.f32.partialorder %v732, 0.0
        %vm797 = vcmp.gt.f32.partialorder %v733, 0.0
        %vm798 = vcmp.gt.f32.partialorder %v734, 0.0
        %vm799 = vcmp.gt.f32.partialorder %v735, 0.0
        %vm800 = vcmp.gt.f32.partialorder %v736, 0.0
        %vm801 = vcmp.gt.f32.partialorder %v737, 0.0
        %vm802 = vcmp.gt.f32.partialorder %v738, 0.0
        %vm803 = vcmp.gt.f32.partialorder %v739, 0.0
        %vm804 = vcmp.gt.f32.partialorder %v740, 0.0
        %vm805 = vcmp.gt.f32.partialorder %v741, 0.0
        %vm806 = vcmp.gt.f32.partialorder %v742, 0.0
        %vm807 = vcmp.gt.f32.partialorder %v743, 0.0
        %vm808 = vcmp.gt.f32.partialorder %v744, 0.0
        %vm809 = vcmp.gt.f32.partialorder %v745, 0.0
        %vm810 = vcmp.gt.f32.partialorder %v746, 0.0
        %vm811 = vcmp.gt.f32.partialorder %v747, 0.0
        %vm812 = vcmp.gt.f32.partialorder %v748, 0.0
        %vm813 = vcmp.gt.f32.partialorder %v749, 0.0
        %vm814 = vcmp.gt.f32.partialorder %v750, 0.0
        %vm815 = vcmp.gt.f32.partialorder %v751, 0.0
        %vm816 = vcmp.gt.f32.partialorder %v752, 0.0
        %vm817 = vcmp.gt.f32.partialorder %v753, 0.0
        %vm818 = vcmp.gt.f32.partialorder %v754, 0.0
        %vm819 = vcmp.gt.f32.partialorder %v755, 0.0
        %vm820 = vcmp.gt.f32.partialorder %v756, 0.0
        %vm821 = vcmp.gt.f32.partialorder %v757, 0.0
        %vm822 = vcmp.gt.f32.partialorder %v758, 0.0
        %vm823 = vcmp.gt.f32.partialorder %v759, 0.0
        %vm824 = vcmp.gt.f32.partialorder %v760, 0.0
        %vm825 = vcmp.gt.f32.partialorder %v761, 0.0
        %vm826 = vcmp.gt.f32.partialorder %v762, 0.0
        %vm827 = vcmp.gt.f32.partialorder %v763, 0.0
        %vm828 = vcmp.gt.f32.partialorder %v764, 0.0
        %vm829 = vcmp.gt.f32.partialorder %v765, 0.0
        %vm830 = vcmp.gt.f32.partialorder %v766, 0.0
        %vm831 = vcmp.gt.f32.partialorder %v767, 0.0
        %vm832 = vcmp.gt.f32.partialorder %v768, 0.0
        %vm833 = vcmp.gt.f32.partialorder %v769, 0.0
        %vm834 = vcmp.gt.f32.partialorder %v770, 0.0
        %vm835 = vcmp.gt.f32.partialorder %v771, 0.0
        %vm836 = vcmp.gt.f32.partialorder %v772, 0.0
        %vm837 = vcmp.gt.f32.partialorder %v773, 0.0
        %vm838 = vcmp.gt.f32.partialorder %v774, 0.0
        %vm839 = vcmp.gt.f32.partialorder %v775, 0.0
        %vm840 = vcmp.gt.f32.partialorder %v776, 0.0
        %vm841 = vcmp.gt.f32.partialorder %v777, 0.0
        %vm842 = vcmp.gt.f32.partialorder %v778, 0.0
        %vm843 = vcmp.gt.f32.partialorder %v779, 0.0
        %vm844 = vcmp.gt.f32.partialorder %v780, 0.0
        %vm845 = vcmp.gt.f32.partialorder %v781, 0.0
        %vm846 = vcmp.gt.f32.partialorder %v782, 0.0
        %vm847 = vcmp.gt.f32.partialorder %v783, 0.0
        %vm848 = vcmp.gt.f32.partialorder %v784, 0.0
        %vm849 = vcmp.gt.f32.partialorder %v785, 0.0
        %v850 = vmul.f32 %v722, 0.2
        %v851 = vmul.f32 %v723, 0.2
        %v852 = vmul.f32 %v724, 0.2
        %v853 = vmul.f32 %v725, 0.2
        %v854 = vmul.f32 %v726, 0.2
        %v855 = vmul.f32 %v727, 0.2
        %v856 = vmul.f32 %v728, 0.2
        %v857 = vmul.f32 %v729, 0.2
        %v858 = vmul.f32 %v730, 0.2
        %v859 = vmul.f32 %v731, 0.2
        %v860 = vmul.f32 %v732, 0.2
        %v861 = vmul.f32 %v733, 0.2
        %v862 = vmul.f32 %v734, 0.2
        %v863 = vmul.f32 %v735, 0.2
        %v864 = vmul.f32 %v736, 0.2
        %v865 = vmul.f32 %v737, 0.2
        %v866 = vmul.f32 %v738, 0.2
        %v867 = vmul.f32 %v739, 0.2
        %v868 = vmul.f32 %v740, 0.2
        %v869 = vmul.f32 %v741, 0.2
        %v870 = vmul.f32 %v742, 0.2
        %v871 = vmul.f32 %v743, 0.2
        %v872 = vmul.f32 %v744, 0.2
        %v873 = vmul.f32 %v745, 0.2
        %v874 = vmul.f32 %v746, 0.2
        %v875 = vmul.f32 %v747, 0.2
        %v876 = vmul.f32 %v748, 0.2
        %v877 = vmul.f32 %v749, 0.2
        %v878 = vmul.f32 %v750, 0.2
        %v879 = vmul.f32 %v751, 0.2
        %v880 = vmul.f32 %v752, 0.2
        %v881 = vmul.f32 %v753, 0.2
        %v882 = vmul.f32 %v754, 0.2
        %v883 = vmul.f32 %v755, 0.2
        %v884 = vmul.f32 %v756, 0.2
        %v885 = vmul.f32 %v757, 0.2
        %v886 = vmul.f32 %v758, 0.2
        %v887 = vmul.f32 %v759, 0.2
        %v888 = vmul.f32 %v760, 0.2
        %v889 = vmul.f32 %v761, 0.2
        %v890 = vmul.f32 %v762, 0.2
        %v891 = vmul.f32 %v763, 0.2
        %v892 = vmul.f32 %v764, 0.2
        %v893 = vmul.f32 %v765, 0.2
        %v894 = vmul.f32 %v766, 0.2
        %v895 = vmul.f32 %v767, 0.2
        %v896 = vmul.f32 %v768, 0.2
        %v897 = vmul.f32 %v769, 0.2
        %v898 = vmul.f32 %v770, 0.2
        %v899 = vmul.f32 %v771, 0.2
        %v900 = vmul.f32 %v772, 0.2
        %v901 = vmul.f32 %v773, 0.2
        %v902 = vmul.f32 %v774, 0.2
        %v903 = vmul.f32 %v775, 0.2
        %v904 = vmul.f32 %v776, 0.2
        %v905 = vmul.f32 %v777, 0.2
        %v906 = vmul.f32 %v778, 0.2
        %v907 = vmul.f32 %v779, 0.2
        %v908 = vmul.f32 %v780, 0.2
        %v909 = vmul.f32 %v781, 0.2
        %v910 = vmul.f32 %v782, 0.2
        %v911 = vmul.f32 %v783, 0.2
        %v912 = vmul.f32 %v784, 0.2
        %v913 = vmul.f32 %v785, 0.2
        %v914 = vsel %vm786, %v722, %v850
        %v915 = vsel %vm787, %v723, %v851
        %v916 = vsel %vm788, %v724, %v852
        %v917 = vsel %vm789, %v725, %v853
        %v918 = vsel %vm790, %v726, %v854
        %v919 = vsel %vm791, %v727, %v855
        %v920 = vsel %vm792, %v728, %v856
        %v921 = vsel %vm793, %v729, %v857
        %v922 = vsel %vm794, %v730, %v858
        %v923 = vsel %vm795, %v731, %v859
        %v924 = vsel %vm796, %v732, %v860
        %v925 = vsel %vm797, %v733, %v861
        %v926 = vsel %vm798, %v734, %v862
        %v927 = vsel %vm799, %v735, %v863
        %v928 = vsel %vm800, %v736, %v864
        %v929 = vsel %vm801, %v737, %v865
        %v930 = vsel %vm802, %v738, %v866
        %v931 = vsel %vm803, %v739, %v867
        %v932 = vsel %vm804, %v740, %v868
        %v933 = vsel %vm805, %v741, %v869
        %v934 = vsel %vm806, %v742, %v870
        %v935 = vsel %vm807, %v743, %v871
        %v936 = vsel %vm808, %v744, %v872
        %v937 = vsel %vm809, %v745, %v873
        %v938 = vsel %vm810, %v746, %v874
        %v939 = vsel %vm811, %v747, %v875
        %v940 = vsel %vm812, %v748, %v876
        %v941 = vsel %vm813, %v749, %v877
        %v942 = vsel %vm814, %v750, %v878
        %v943 = vsel %vm815, %v751, %v879
        %v944 = vsel %vm816, %v752, %v880
        %v945 = vsel %vm817, %v753, %v881
        %v946 = vsel %vm818, %v754, %v882
        %v947 = vsel %vm819, %v755, %v883
        %v948 = vsel %vm820, %v756, %v884
        %v949 = vsel %vm821, %v757, %v885
        %v950 = vsel %vm822, %v758, %v886
        %v951 = vsel %vm823, %v759, %v887
        %v952 = vsel %vm824, %v760, %v888
        %v953 = vsel %vm825, %v761, %v889
        %v954 = vsel %vm826, %v762, %v890
        %v955 = vsel %vm827, %v763, %v891
        %v956 = vsel %vm828, %v764, %v892
        %v957 = vsel %vm829, %v765, %v893
        %v958 = vsel %vm830, %v766, %v894
        %v959 = vsel %vm831, %v767, %v895
        %v960 = vsel %vm832, %v768, %v896
        %v961 = vsel %vm833, %v769, %v897
        %v962 = vsel %vm834, %v770, %v898
        %v963 = vsel %vm835, %v771, %v899
        %v964 = vsel %vm836, %v772, %v900
        %v965 = vsel %vm837, %v773, %v901
        %v966 = vsel %vm838, %v774, %v902
        %v967 = vsel %vm839, %v775, %v903
        %v968 = vsel %vm840, %v776, %v904
        %v969 = vsel %vm841, %v777, %v905
        %v970 = vsel %vm842, %v778, %v906
        %v971 = vsel %vm843, %v779, %v907
        %v972 = vsel %vm844, %v780, %v908
        %v973 = vsel %vm845, %v781, %v909
        %v974 = vsel %vm846, %v782, %v910
        %v975 = vsel %vm847, %v783, %v911
        %v976 = vsel %vm848, %v784, %v912
        %v977 = vsel %vm849, %v785, %v913
        %v978 = vld [vmem:[%s297] sm:$0xf]
        %v979 = vld [vmem:[%s297 + $0x4] sm:$0xf]
        %v980 = vld [vmem:[%s297 + $0x8] sm:$0xf]
        %v981 = vld [vmem:[%s297 + $0xc] sm:$0xf]
        %v982 = vld [vmem:[%s297 + $0x10] sm:$0xf]
        %v983 = vld [vmem:[%s297 + $0x14] sm:$0xf]
        %v984 = vld [vmem:[%s297 + $0x18] sm:$0xf]
        %v985 = vld [vmem:[%s297 + $0x1c] sm:$0xf]
        %v986 = vld [vmem:[%s297 + $0x20] sm:$0xf]
        %v987 = vld [vmem:[%s297 + $0x24] sm:$0xf]
        %v988 = vld [vmem:[%s297 + $0x28] sm:$0xf]
        %v989 = vld [vmem:[%s297 + $0x2c] sm:$0xf]
        %v990 = vld [vmem:[%s297 + $0x30] sm:$0xf]
        %v991 = vld [vmem:[%s297 + $0x34] sm:$0xf]
        %v992 = vld [vmem:[%s297 + $0x38] sm:$0xf]
        %v993 = vld [vmem:[%s297 + $0x3c] sm:$0xf]
        %vm994 = vcmp.gt.bf16.partialorder %v978, 0
        %vm995 = vcmp.gt.bf16.partialorder %v979, 0
        %vm996 = vcmp.gt.bf16.partialorder %v980, 0
        %vm997 = vcmp.gt.bf16.partialorder %v981, 0
        %vm998 = vcmp.gt.bf16.partialorder %v982, 0
        %vm999 = vcmp.gt.bf16.partialorder %v983, 0
        %vm1000 = vcmp.gt.bf16.partialorder %v984, 0
        %vm1001 = vcmp.gt.bf16.partialorder %v985, 0
        %vm1002 = vcmp.gt.bf16.partialorder %v986, 0
        %vm1003 = vcmp.gt.bf16.partialorder %v987, 0
        %vm1004 = vcmp.gt.bf16.partialorder %v988, 0
        %vm1005 = vcmp.gt.bf16.partialorder %v989, 0
        %vm1006 = vcmp.gt.bf16.partialorder %v990, 0
        %vm1007 = vcmp.gt.bf16.partialorder %v991, 0
        %vm1008 = vcmp.gt.bf16.partialorder %v992, 0
        %vm1009 = vcmp.gt.bf16.partialorder %v993, 0
        %v1010 = vsel %vm994, 65537, 0
        %v1011 = vsel %vm995, 65537, 0
        %v1012 = vsel %vm996, 65537, 0
        %v1013 = vsel %vm997, 65537, 0
        %v1014 = vsel %vm998, 65537, 0
        %v1015 = vsel %vm999, 65537, 0
        %v1016 = vsel %vm1000, 65537, 0
        %v1017 = vsel %vm1001, 65537, 0
        %v1018 = vsel %vm1002, 65537, 0
        %v1019 = vsel %vm1003, 65537, 0
        %v1020 = vsel %vm1004, 65537, 0
        %v1021 = vsel %vm1005, 65537, 0
        %v1022 = vsel %vm1006, 65537, 0
        %v1023 = vsel %vm1007, 65537, 0
        %v1024 = vsel %vm1008, 65537, 0
        %v1025 = vsel %vm1009, 65537, 0
        %v1026 = vunpack.c.l.b16 %v1010
        %v1027 = vunpack.c.l.b16 %v1011
        %v1028 = vunpack.c.l.b16 %v1012
        %v1029 = vunpack.c.l.b16 %v1013
        %v1030 = vunpack.c.l.b16 %v1014
        %v1031 = vunpack.c.l.b16 %v1015
        %v1032 = vunpack.c.l.b16 %v1016
        %v1033 = vunpack.c.l.b16 %v1017
        %v1034 = vunpack.c.l.b16 %v1018
        %v1035 = vunpack.c.l.b16 %v1019
        %v1036 = vunpack.c.l.b16 %v1020
        %v1037 = vunpack.c.l.b16 %v1021
        %v1038 = vunpack.c.l.b16 %v1022
        %v1039 = vunpack.c.l.b16 %v1023
        %v1040 = vunpack.c.l.b16 %v1024
        %v1041 = vunpack.c.l.b16 %v1025
        %vm1042 = vcmp.ne.s32.totalorder %v1026, 0
        %vm1043 = vcmp.ne.s32.totalorder %v1027, 0
        %vm1044 = vcmp.ne.s32.totalorder %v1028, 0
        %vm1045 = vcmp.ne.s32.totalorder %v1029, 0
        %vm1046 = vcmp.ne.s32.totalorder %v1030, 0
        %vm1047 = vcmp.ne.s32.totalorder %v1031, 0
        %vm1048 = vcmp.ne.s32.totalorder %v1032, 0
        %vm1049 = vcmp.ne.s32.totalorder %v1033, 0
        %vm1050 = vcmp.ne.s32.totalorder %v1034, 0
        %vm1051 = vcmp.ne.s32.totalorder %v1035, 0
        %vm1052 = vcmp.ne.s32.totalorder %v1036, 0
        %vm1053 = vcmp.ne.s32.totalorder %v1037, 0
        %vm1054 = vcmp.ne.s32.totalorder %v1038, 0
        %vm1055 = vcmp.ne.s32.totalorder %v1039, 0
        %vm1056 = vcmp.ne.s32.totalorder %v1040, 0
        %vm1057 = vcmp.ne.s32.totalorder %v1041, 0
        %v1058 = vsel %vm1042, 1, 0
        %v1059 = vsel %vm1043, 1, 0
        %v1060 = vsel %vm1044, 1, 0
        %v1061 = vsel %vm1045, 1, 0
        %v1062 = vsel %vm1046, 1, 0
        %v1063 = vsel %vm1047, 1, 0
        %v1064 = vsel %vm1048, 1, 0
        %v1065 = vsel %vm1049, 1, 0
        %v1066 = vsel %vm1050, 1, 0
        %v1067 = vsel %vm1051, 1, 0
        %v1068 = vsel %vm1052, 1, 0
        %v1069 = vsel %vm1053, 1, 0
        %v1070 = vsel %vm1054, 1, 0
        %v1071 = vsel %vm1055, 1, 0
        %v1072 = vsel %vm1056, 1, 0
        %v1073 = vsel %vm1057, 1, 0
        %vm1074 = vcmp.eq.s32.totalorder %v1058, 1
        %vm1075 = vcmp.eq.s32.totalorder %v1059, 1
        %vm1076 = vcmp.eq.s32.totalorder %v1060, 1
        %vm1077 = vcmp.eq.s32.totalorder %v1061, 1
        %vm1078 = vcmp.eq.s32.totalorder %v1062, 1
        %vm1079 = vcmp.eq.s32.totalorder %v1063, 1
        %vm1080 = vcmp.eq.s32.totalorder %v1064, 1
        %vm1081 = vcmp.eq.s32.totalorder %v1065, 1
        %vm1082 = vcmp.eq.s32.totalorder %v1066, 1
        %vm1083 = vcmp.eq.s32.totalorder %v1067, 1
        %vm1084 = vcmp.eq.s32.totalorder %v1068, 1
        %vm1085 = vcmp.eq.s32.totalorder %v1069, 1
        %vm1086 = vcmp.eq.s32.totalorder %v1070, 1
        %vm1087 = vcmp.eq.s32.totalorder %v1071, 1
        %vm1088 = vcmp.eq.s32.totalorder %v1072, 1
        %vm1089 = vcmp.eq.s32.totalorder %v1073, 1
        %v1090 = vsel %vm1074, %v914, -1e+38
        %v1091 = vsel %vm1075, %v915, -1e+38
        %v1092 = vsel %vm1076, %v916, -1e+38
        %v1093 = vsel %vm1077, %v917, -1e+38
        %v1094 = vsel %vm1078, %v918, -1e+38
        %v1095 = vsel %vm1079, %v919, -1e+38
        %v1096 = vsel %vm1080, %v920, -1e+38
        %v1097 = vsel %vm1081, %v921, -1e+38
        %v1098 = vsel %vm1082, %v922, -1e+38
        %v1099 = vsel %vm1083, %v923, -1e+38
        %v1100 = vsel %vm1084, %v924, -1e+38
        %v1101 = vsel %vm1085, %v925, -1e+38
        %v1102 = vsel %vm1086, %v926, -1e+38
        %v1103 = vsel %vm1087, %v927, -1e+38
        %v1104 = vsel %vm1088, %v928, -1e+38
        %v1105 = vsel %vm1089, %v929, -1e+38
        %v1106 = vsel %vm1074, %v930, -1e+38
        %v1107 = vsel %vm1075, %v931, -1e+38
        %v1108 = vsel %vm1076, %v932, -1e+38
        %v1109 = vsel %vm1077, %v933, -1e+38
        %v1110 = vsel %vm1078, %v934, -1e+38
        %v1111 = vsel %vm1079, %v935, -1e+38
        %v1112 = vsel %vm1080, %v936, -1e+38
        %v1113 = vsel %vm1081, %v937, -1e+38
        %v1114 = vsel %vm1082, %v938, -1e+38
        %v1115 = vsel %vm1083, %v939, -1e+38
        %v1116 = vsel %vm1084, %v940, -1e+38
        %v1117 = vsel %vm1085, %v941, -1e+38
        %v1118 = vsel %vm1086, %v942, -1e+38
        %v1119 = vsel %vm1087, %v943, -1e+38
        %v1120 = vsel %vm1088, %v944, -1e+38
        %v1121 = vsel %vm1089, %v945, -1e+38
        %v1122 = vsel %vm1074, %v946, -1e+38
        %v1123 = vsel %vm1075, %v947, -1e+38
        %v1124 = vsel %vm1076, %v948, -1e+38
        %v1125 = vsel %vm1077, %v949, -1e+38
        %v1126 = vsel %vm1078, %v950, -1e+38
        %v1127 = vsel %vm1079, %v951, -1e+38
        %v1128 = vsel %vm1080, %v952, -1e+38
        %v1129 = vsel %vm1081, %v953, -1e+38
        %v1130 = vsel %vm1082, %v954, -1e+38
        %v1131 = vsel %vm1083, %v955, -1e+38
        %v1132 = vsel %vm1084, %v956, -1e+38
        %v1133 = vsel %vm1085, %v957, -1e+38
        %v1134 = vsel %vm1086, %v958, -1e+38
        %v1135 = vsel %vm1087, %v959, -1e+38
        %v1136 = vsel %vm1088, %v960, -1e+38
        %v1137 = vsel %vm1089, %v961, -1e+38
        %v1138 = vsel %vm1074, %v962, -1e+38
        %v1139 = vsel %vm1075, %v963, -1e+38
        %v1140 = vsel %vm1076, %v964, -1e+38
        %v1141 = vsel %vm1077, %v965, -1e+38
        %v1142 = vsel %vm1078, %v966, -1e+38
        %v1143 = vsel %vm1079, %v967, -1e+38
        %v1144 = vsel %vm1080, %v968, -1e+38
        %v1145 = vsel %vm1081, %v969, -1e+38
        %v1146 = vsel %vm1082, %v970, -1e+38
        %v1147 = vsel %vm1083, %v971, -1e+38
        %v1148 = vsel %vm1084, %v972, -1e+38
        %v1149 = vsel %vm1085, %v973, -1e+38
        %v1150 = vsel %vm1086, %v974, -1e+38
        %v1151 = vsel %vm1087, %v975, -1e+38
        %v1152 = vsel %vm1088, %v976, -1e+38
        %v1153 = vsel %vm1089, %v977, -1e+38
        %1154 = vmax.xlane.f32.xlu0 %v1090
        %v1155 = vpop.xlane.xlu0 %1154
        %1156 = vmax.xlane.f32.xlu0 %v1091
        %v1157 = vpop.xlane.xlu0 %1156
        %1158 = vmax.xlane.f32.xlu0 %v1092
        %v1159 = vpop.xlane.xlu0 %1158
        %1160 = vmax.xlane.f32.xlu0 %v1093
        %v1161 = vpop.xlane.xlu0 %1160
        %1162 = vmax.xlane.f32.xlu0 %v1094
        %v1163 = vpop.xlane.xlu0 %1162
        %1164 = vmax.xlane.f32.xlu0 %v1095
        %v1165 = vpop.xlane.xlu0 %1164
        %1166 = vmax.xlane.f32.xlu0 %v1096
        %v1167 = vpop.xlane.xlu0 %1166
        %1168 = vmax.xlane.f32.xlu0 %v1097
        %v1169 = vpop.xlane.xlu0 %1168
        %1170 = vmax.xlane.f32.xlu0 %v1098
        %v1171 = vpop.xlane.xlu0 %1170
        %1172 = vmax.xlane.f32.xlu0 %v1099
        %v1173 = vpop.xlane.xlu0 %1172
        %1174 = vmax.xlane.f32.xlu0 %v1100
        %v1175 = vpop.xlane.xlu0 %1174
        %1176 = vmax.xlane.f32.xlu0 %v1101
        %v1177 = vpop.xlane.xlu0 %1176
        %1178 = vmax.xlane.f32.xlu0 %v1102
        %v1179 = vpop.xlane.xlu0 %1178
        %1180 = vmax.xlane.f32.xlu0 %v1103
        %v1181 = vpop.xlane.xlu0 %1180
        %1182 = vmax.xlane.f32.xlu0 %v1104
        %v1183 = vpop.xlane.xlu0 %1182
        %1184 = vmax.xlane.f32.xlu0 %v1105
        %v1185 = vpop.xlane.xlu0 %1184
        %1186 = vmax.xlane.f32.xlu0 %v1106
        %v1187 = vpop.xlane.xlu0 %1186
        %1188 = vmax.xlane.f32.xlu0 %v1107
        %v1189 = vpop.xlane.xlu0 %1188
        %1190 = vmax.xlane.f32.xlu0 %v1108
        %v1191 = vpop.xlane.xlu0 %1190
        %1192 = vmax.xlane.f32.xlu0 %v1109
        %v1193 = vpop.xlane.xlu0 %1192
        %1194 = vmax.xlane.f32.xlu0 %v1110
        %v1195 = vpop.xlane.xlu0 %1194
        %1196 = vmax.xlane.f32.xlu0 %v1111
        %v1197 = vpop.xlane.xlu0 %1196
        %1198 = vmax.xlane.f32.xlu0 %v1112
        %v1199 = vpop.xlane.xlu0 %1198
        %1200 = vmax.xlane.f32.xlu0 %v1113
        %v1201 = vpop.xlane.xlu0 %1200
        %1202 = vmax.xlane.f32.xlu0 %v1114
        %v1203 = vpop.xlane.xlu0 %1202
        %1204 = vmax.xlane.f32.xlu0 %v1115
        %v1205 = vpop.xlane.xlu0 %1204
        %1206 = vmax.xlane.f32.xlu0 %v1116
        %v1207 = vpop.xlane.xlu0 %1206
        %1208 = vmax.xlane.f32.xlu0 %v1117
        %v1209 = vpop.xlane.xlu0 %1208
        %1210 = vmax.xlane.f32.xlu0 %v1118
        %v1211 = vpop.xlane.xlu0 %1210
        %1212 = vmax.xlane.f32.xlu0 %v1119
        %v1213 = vpop.xlane.xlu0 %1212
        %1214 = vmax.xlane.f32.xlu0 %v1120
        %v1215 = vpop.xlane.xlu0 %1214
        %1216 = vmax.xlane.f32.xlu0 %v1121
        %v1217 = vpop.xlane.xlu0 %1216
        %1218 = vmax.xlane.f32.xlu0 %v1122
        %v1219 = vpop.xlane.xlu0 %1218
        %1220 = vmax.xlane.f32.xlu0 %v1123
        %v1221 = vpop.xlane.xlu0 %1220
        %1222 = vmax.xlane.f32.xlu0 %v1124
        %v1223 = vpop.xlane.xlu0 %1222
        %1224 = vmax.xlane.f32.xlu0 %v1125
        %v1225 = vpop.xlane.xlu0 %1224
        %1226 = vmax.xlane.f32.xlu0 %v1126
        %v1227 = vpop.xlane.xlu0 %1226
        %1228 = vmax.xlane.f32.xlu0 %v1127
        %v1229 = vpop.xlane.xlu0 %1228
        %1230 = vmax.xlane.f32.xlu0 %v1128
        %v1231 = vpop.xlane.xlu0 %1230
        %1232 = vmax.xlane.f32.xlu0 %v1129
        %v1233 = vpop.xlane.xlu0 %1232
        %1234 = vmax.xlane.f32.xlu0 %v1130
        %v1235 = vpop.xlane.xlu0 %1234
        %1236 = vmax.xlane.f32.xlu0 %v1131
        %v1237 = vpop.xlane.xlu0 %1236
        %1238 = vmax.xlane.f32.xlu0 %v1132
        %v1239 = vpop.xlane.xlu0 %1238
        %1240 = vmax.xlane.f32.xlu0 %v1133
        %v1241 = vpop.xlane.xlu0 %1240
        %1242 = vmax.xlane.f32.xlu0 %v1134
        %v1243 = vpop.xlane.xlu0 %1242
        %1244 = vmax.xlane.f32.xlu0 %v1135
        %v1245 = vpop.xlane.xlu0 %1244
        %1246 = vmax.xlane.f32.xlu0 %v1136
        %v1247 = vpop.xlane.xlu0 %1246
        %1248 = vmax.xlane.f32.xlu0 %v1137
        %v1249 = vpop.xlane.xlu0 %1248
        %1250 = vmax.xlane.f32.xlu0 %v1138
        %v1251 = vpop.xlane.xlu0 %1250
        %1252 = vmax.xlane.f32.xlu0 %v1139
        %v1253 = vpop.xlane.xlu0 %1252
        %1254 = vmax.xlane.f32.xlu0 %v1140
        %v1255 = vpop.xlane.xlu0 %1254
        %1256 = vmax.xlane.f32.xlu0 %v1141
        %v1257 = vpop.xlane.xlu0 %1256
        %1258 = vmax.xlane.f32.xlu0 %v1142
        %v1259 = vpop.xlane.xlu0 %1258
        %1260 = vmax.xlane.f32.xlu0 %v1143
        %v1261 = vpop.xlane.xlu0 %1260
        %1262 = vmax.xlane.f32.xlu0 %v1144
        %v1263 = vpop.xlane.xlu0 %1262
        %1264 = vmax.xlane.f32.xlu0 %v1145
        %v1265 = vpop.xlane.xlu0 %1264
        %1266 = vmax.xlane.f32.xlu0 %v1146
        %v1267 = vpop.xlane.xlu0 %1266
        %1268 = vmax.xlane.f32.xlu0 %v1147
        %v1269 = vpop.xlane.xlu0 %1268
        %1270 = vmax.xlane.f32.xlu0 %v1148
        %v1271 = vpop.xlane.xlu0 %1270
        %1272 = vmax.xlane.f32.xlu0 %v1149
        %v1273 = vpop.xlane.xlu0 %1272
        %1274 = vmax.xlane.f32.xlu0 %v1150
        %v1275 = vpop.xlane.xlu0 %1274
        %1276 = vmax.xlane.f32.xlu0 %v1151
        %v1277 = vpop.xlane.xlu0 %1276
        %1278 = vmax.xlane.f32.xlu0 %v1152
        %v1279 = vpop.xlane.xlu0 %1278
        %1280 = vmax.xlane.f32.xlu0 %v1153
        %v1281 = vpop.xlane.xlu0 %1280
        %v1282 = vld [vmem:[#allocation2] sm:$0xf]
        %v1347 = vlaneseq
        %v1348 = vand.u32 %v1347, 127
        %v1349 = vlaneseq
        %v1350 = vshrl.u32 %v1349, 7
        %v1351 = vsub.s32 %v1348, %v1350
        %v1352 = vrot.slane %v1155, %v1351
        %v1353 = vadd.s32 %v1348, 4294967288
        %v1354 = vlaneseq
        %v1355 = vshrl.u32 %v1354, 7
        %v1356 = vsub.s32 %v1353, %v1355
        %v1357 = vrot.slane %v1157, %v1356
        %vm1358 = vcmask 130112
        %v1359 = vsel %vm1358, %v1357, %v1352
        %v1360 = vadd.s32 %v1348, 4294967280
        %v1361 = vlaneseq
        %v1362 = vshrl.u32 %v1361, 7
        %v1363 = vsub.s32 %v1360, %v1362
        %v1364 = vrot.slane %v1159, %v1363
        %vm1365 = vcmask 195712
        %v1366 = vsel %vm1365, %v1364, %v1359
        %v1367 = vadd.s32 %v1348, 4294967272
        %v1368 = vlaneseq
        %v1369 = vshrl.u32 %v1368, 7
        %v1370 = vsub.s32 %v1367, %v1369
        %v1371 = vrot.slane %v1161, %v1370
        %vm1372 = vcmask 261312
        %v1373 = vsel %vm1372, %v1371, %v1366
        %v1374 = vadd.s32 %v1348, 4294967264
        %v1375 = vlaneseq
        %v1376 = vshrl.u32 %v1375, 7
        %v1377 = vsub.s32 %v1374, %v1376
        %v1378 = vrot.slane %v1163, %v1377
        %vm1379 = vcmask 326912
        %v1380 = vsel %vm1379, %v1378, %v1373
        %v1381 = vadd.s32 %v1348, 4294967256
        %v1382 = vlaneseq
        %v1383 = vshrl.u32 %v1382, 7
        %v1384 = vsub.s32 %v1381, %v1383
        %v1385 = vrot.slane %v1165, %v1384
        %vm1386 = vcmask 392512
        %v1387 = vsel %vm1386, %v1385, %v1380
        %v1388 = vadd.s32 %v1348, 4294967248
        %v1389 = vlaneseq
        %v1390 = vshrl.u32 %v1389, 7
        %v1391 = vsub.s32 %v1388, %v1390
        %v1392 = vrot.slane %v1167, %v1391
        %vm1393 = vcmask 458112
        %v1394 = vsel %vm1393, %v1392, %v1387
        %v1395 = vadd.s32 %v1348, 4294967240
        %v1396 = vlaneseq
        %v1397 = vshrl.u32 %v1396, 7
        %v1398 = vsub.s32 %v1395, %v1397
        %v1399 = vrot.slane %v1169, %v1398
        %vm1400 = vcmask 523712
        %v1401 = vsel %vm1400, %v1399, %v1394
        %v1402 = vadd.s32 %v1348, 4294967232
        %v1403 = vlaneseq
        %v1404 = vshrl.u32 %v1403, 7
        %v1405 = vsub.s32 %v1402, %v1404
        %v1406 = vrot.slane %v1171, %v1405
        %vm1407 = vcmask 589312
        %v1408 = vsel %vm1407, %v1406, %v1401
        %v1409 = vadd.s32 %v1348, 4294967224
        %v1410 = vlaneseq
        %v1411 = vshrl.u32 %v1410, 7
        %v1412 = vsub.s32 %v1409, %v1411
        %v1413 = vrot.slane %v1173, %v1412
        %vm1414 = vcmask 654912
        %v1415 = vsel %vm1414, %v1413, %v1408
        %v1416 = vadd.s32 %v1348, 4294967216
        %v1417 = vlaneseq
        %v1418 = vshrl.u32 %v1417, 7
        %v1419 = vsub.s32 %v1416, %v1418
        %v1420 = vrot.slane %v1175, %v1419
        %vm1421 = vcmask 720512
        %v1422 = vsel %vm1421, %v1420, %v1415
        %v1423 = vadd.s32 %v1348, 4294967208
        %v1424 = vlaneseq
        %v1425 = vshrl.u32 %v1424, 7
        %v1426 = vsub.s32 %v1423, %v1425
        %v1427 = vrot.slane %v1177, %v1426
        %vm1428 = vcmask 786112
        %v1429 = vsel %vm1428, %v1427, %v1422
        %v1430 = vadd.s32 %v1348, 4294967200
        %v1431 = vlaneseq
        %v1432 = vshrl.u32 %v1431, 7
        %v1433 = vsub.s32 %v1430, %v1432
        %v1434 = vrot.slane %v1179, %v1433
        %vm1435 = vcmask 851712
        %v1436 = vsel %vm1435, %v1434, %v1429
        %v1437 = vadd.s32 %v1348, 4294967192
        %v1438 = vlaneseq
        %v1439 = vshrl.u32 %v1438, 7
        %v1440 = vsub.s32 %v1437, %v1439
        %v1441 = vrot.slane %v1181, %v1440
        %vm1442 = vcmask 917312
        %v1443 = vsel %vm1442, %v1441, %v1436
        %v1444 = vadd.s32 %v1348, 4294967184
        %v1445 = vlaneseq
        %v1446 = vshrl.u32 %v1445, 7
        %v1447 = vsub.s32 %v1444, %v1446
        %v1448 = vrot.slane %v1183, %v1447
        %vm1449 = vcmask 982912
        %v1450 = vsel %vm1449, %v1448, %v1443
        %v1451 = vadd.s32 %v1348, 4294967176
        %v1452 = vlaneseq
        %v1453 = vshrl.u32 %v1452, 7
        %v1454 = vsub.s32 %v1451, %v1453
        %v1455 = vrot.slane %v1185, %v1454
        %vm1456 = vcmask 1048512
        %v1457 = vsel %vm1456, %v1455, %v1450
        %v1458 = vlaneseq
        %v1459 = vshrl.u32 %v1458, 7
        %v1460 = vsub.s32 %v1348, %v1459
        %v1461 = vrot.slane %v1187, %v1460
        %v1462 = vlaneseq
        %v1463 = vshrl.u32 %v1462, 7
        %v1464 = vsub.s32 %v1353, %v1463
        %v1465 = vrot.slane %v1189, %v1464
        %v1466 = vsel %vm1358, %v1465, %v1461
        %v1467 = vlaneseq
        %v1468 = vshrl.u32 %v1467, 7
        %v1469 = vsub.s32 %v1360, %v1468
        %v1470 = vrot.slane %v1191, %v1469
        %v1471 = vsel %vm1365, %v1470, %v1466
        %v1472 = vlaneseq
        %v1473 = vshrl.u32 %v1472, 7
        %v1474 = vsub.s32 %v1367, %v1473
        %v1475 = vrot.slane %v1193, %v1474
        %v1476 = vsel %vm1372, %v1475, %v1471
        %v1477 = vlaneseq
        %v1478 = vshrl.u32 %v1477, 7
        %v1479 = vsub.s32 %v1374, %v1478
        %v1480 = vrot.slane %v1195, %v1479
        %v1481 = vsel %vm1379, %v1480, %v1476
        %v1482 = vlaneseq
        %v1483 = vshrl.u32 %v1482, 7
        %v1484 = vsub.s32 %v1381, %v1483
        %v1485 = vrot.slane %v1197, %v1484
        %v1486 = vsel %vm1386, %v1485, %v1481
        %v1487 = vlaneseq
        %v1488 = vshrl.u32 %v1487, 7
        %v1489 = vsub.s32 %v1388, %v1488
        %v1490 = vrot.slane %v1199, %v1489
        %v1491 = vsel %vm1393, %v1490, %v1486
        %v1492 = vlaneseq
        %v1493 = vshrl.u32 %v1492, 7
        %v1494 = vsub.s32 %v1395, %v1493
        %v1495 = vrot.slane %v1201, %v1494
        %v1496 = vsel %vm1400, %v1495, %v1491
        %v1497 = vlaneseq
        %v1498 = vshrl.u32 %v1497, 7
        %v1499 = vsub.s32 %v1402, %v1498
        %v1500 = vrot.slane %v1203, %v1499
        %v1501 = vsel %vm1407, %v1500, %v1496
        %v1502 = vlaneseq
        %v1503 = vshrl.u32 %v1502, 7
        %v1504 = vsub.s32 %v1409, %v1503
        %v1505 = vrot.slane %v1205, %v1504
        %v1506 = vsel %vm1414, %v1505, %v1501
        %v1507 = vlaneseq
        %v1508 = vshrl.u32 %v1507, 7
        %v1509 = vsub.s32 %v1416, %v1508
        %v1510 = vrot.slane %v1207, %v1509
        %v1511 = vsel %vm1421, %v1510, %v1506
        %v1512 = vlaneseq
        %v1513 = vshrl.u32 %v1512, 7
        %v1514 = vsub.s32 %v1423, %v1513
        %v1515 = vrot.slane %v1209, %v1514
        %v1516 = vsel %vm1428, %v1515, %v1511
        %v1517 = vlaneseq
        %v1518 = vshrl.u32 %v1517, 7
        %v1519 = vsub.s32 %v1430, %v1518
        %v1520 = vrot.slane %v1211, %v1519
        %v1521 = vsel %vm1435, %v1520, %v1516
        %v1522 = vlaneseq
        %v1523 = vshrl.u32 %v1522, 7
        %v1524 = vsub.s32 %v1437, %v1523
        %v1525 = vrot.slane %v1213, %v1524
        %v1526 = vsel %vm1442, %v1525, %v1521
        %v1527 = vlaneseq
        %v1528 = vshrl.u32 %v1527, 7
        %v1529 = vsub.s32 %v1444, %v1528
        %v1530 = vrot.slane %v1215, %v1529
        %v1531 = vsel %vm1449, %v1530, %v1526
        %v1532 = vlaneseq
        %v1533 = vshrl.u32 %v1532, 7
        %v1534 = vsub.s32 %v1451, %v1533
        %v1535 = vrot.slane %v1217, %v1534
        %v1536 = vsel %vm1456, %v1535, %v1531
        %v1537 = vlaneseq
        %v1538 = vshrl.u32 %v1537, 7
        %v1539 = vsub.s32 %v1348, %v1538
        %v1540 = vrot.slane %v1219, %v1539
        %v1541 = vlaneseq
        %v1542 = vshrl.u32 %v1541, 7
        %v1543 = vsub.s32 %v1353, %v1542
        %v1544 = vrot.slane %v1221, %v1543
        %v1545 = vsel %vm1358, %v1544, %v1540
        %v1546 = vlaneseq
        %v1547 = vshrl.u32 %v1546, 7
        %v1548 = vsub.s32 %v1360, %v1547
        %v1549 = vrot.slane %v1223, %v1548
        %v1550 = vsel %vm1365, %v1549, %v1545
        %v1551 = vlaneseq
        %v1552 = vshrl.u32 %v1551, 7
        %v1553 = vsub.s32 %v1367, %v1552
        %v1554 = vrot.slane %v1225, %v1553
        %v1555 = vsel %vm1372, %v1554, %v1550
        %v1556 = vlaneseq
        %v1557 = vshrl.u32 %v1556, 7
        %v1558 = vsub.s32 %v1374, %v1557
        %v1559 = vrot.slane %v1227, %v1558
        %v1560 = vsel %vm1379, %v1559, %v1555
        %v1561 = vlaneseq
        %v1562 = vshrl.u32 %v1561, 7
        %v1563 = vsub.s32 %v1381, %v1562
        %v1564 = vrot.slane %v1229, %v1563
        %v1565 = vsel %vm1386, %v1564, %v1560
        %v1566 = vlaneseq
        %v1567 = vshrl.u32 %v1566, 7
        %v1568 = vsub.s32 %v1388, %v1567
        %v1569 = vrot.slane %v1231, %v1568
        %v1570 = vsel %vm1393, %v1569, %v1565
        %v1571 = vlaneseq
        %v1572 = vshrl.u32 %v1571, 7
        %v1573 = vsub.s32 %v1395, %v1572
        %v1574 = vrot.slane %v1233, %v1573
        %v1575 = vsel %vm1400, %v1574, %v1570
        %v1576 = vlaneseq
        %v1577 = vshrl.u32 %v1576, 7
        %v1578 = vsub.s32 %v1402, %v1577
        %v1579 = vrot.slane %v1235, %v1578
        %v1580 = vsel %vm1407, %v1579, %v1575
        %v1581 = vlaneseq
        %v1582 = vshrl.u32 %v1581, 7
        %v1583 = vsub.s32 %v1409, %v1582
        %v1584 = vrot.slane %v1237, %v1583
        %v1585 = vsel %vm1414, %v1584, %v1580
        %v1586 = vlaneseq
        %v1587 = vshrl.u32 %v1586, 7
        %v1588 = vsub.s32 %v1416, %v1587
        %v1589 = vrot.slane %v1239, %v1588
        %v1590 = vsel %vm1421, %v1589, %v1585
        %v1591 = vlaneseq
        %v1592 = vshrl.u32 %v1591, 7
        %v1593 = vsub.s32 %v1423, %v1592
        %v1594 = vrot.slane %v1241, %v1593
        %v1595 = vsel %vm1428, %v1594, %v1590
        %v1596 = vlaneseq
        %v1597 = vshrl.u32 %v1596, 7
        %v1598 = vsub.s32 %v1430, %v1597
        %v1599 = vrot.slane %v1243, %v1598
        %v1600 = vsel %vm1435, %v1599, %v1595
        %v1601 = vlaneseq
        %v1602 = vshrl.u32 %v1601, 7
        %v1603 = vsub.s32 %v1437, %v1602
        %v1604 = vrot.slane %v1245, %v1603
        %v1605 = vsel %vm1442, %v1604, %v1600
        %v1606 = vlaneseq
        %v1607 = vshrl.u32 %v1606, 7
        %v1608 = vsub.s32 %v1444, %v1607
        %v1609 = vrot.slane %v1247, %v1608
        %v1610 = vsel %vm1449, %v1609, %v1605
        %v1611 = vlaneseq
        %v1612 = vshrl.u32 %v1611, 7
        %v1613 = vsub.s32 %v1451, %v1612
        %v1614 = vrot.slane %v1249, %v1613
        %v1615 = vsel %vm1456, %v1614, %v1610
        %v1616 = vlaneseq
        %v1617 = vshrl.u32 %v1616, 7
        %v1618 = vsub.s32 %v1348, %v1617
        %v1619 = vrot.slane %v1251, %v1618
        %v1620 = vlaneseq
        %v1621 = vshrl.u32 %v1620, 7
        %v1622 = vsub.s32 %v1353, %v1621
        %v1623 = vrot.slane %v1253, %v1622
        %v1624 = vsel %vm1358, %v1623, %v1619
        %v1625 = vlaneseq
        %v1626 = vshrl.u32 %v1625, 7
        %v1627 = vsub.s32 %v1360, %v1626
        %v1628 = vrot.slane %v1255, %v1627
        %v1629 = vsel %vm1365, %v1628, %v1624
        %v1630 = vlaneseq
        %v1631 = vshrl.u32 %v1630, 7
        %v1632 = vsub.s32 %v1367, %v1631
        %v1633 = vrot.slane %v1257, %v1632
        %v1634 = vsel %vm1372, %v1633, %v1629
        %v1635 = vlaneseq
        %v1636 = vshrl.u32 %v1635, 7
        %v1637 = vsub.s32 %v1374, %v1636
        %v1638 = vrot.slane %v1259, %v1637
        %v1639 = vsel %vm1379, %v1638, %v1634
        %v1640 = vlaneseq
        %v1641 = vshrl.u32 %v1640, 7
        %v1642 = vsub.s32 %v1381, %v1641
        %v1643 = vrot.slane %v1261, %v1642
        %v1644 = vsel %vm1386, %v1643, %v1639
        %v1645 = vlaneseq
        %v1646 = vshrl.u32 %v1645, 7
        %v1647 = vsub.s32 %v1388, %v1646
        %v1648 = vrot.slane %v1263, %v1647
        %v1649 = vsel %vm1393, %v1648, %v1644
        %v1650 = vlaneseq
        %v1651 = vshrl.u32 %v1650, 7
        %v1652 = vsub.s32 %v1395, %v1651
        %v1653 = vrot.slane %v1265, %v1652
        %v1654 = vsel %vm1400, %v1653, %v1649
        %v1655 = vlaneseq
        %v1656 = vshrl.u32 %v1655, 7
        %v1657 = vsub.s32 %v1402, %v1656
        %v1658 = vrot.slane %v1267, %v1657
        %v1659 = vsel %vm1407, %v1658, %v1654
        %v1660 = vlaneseq
        %v1661 = vshrl.u32 %v1660, 7
        %v1662 = vsub.s32 %v1409, %v1661
        %v1663 = vrot.slane %v1269, %v1662
        %v1664 = vsel %vm1414, %v1663, %v1659
        %v1665 = vlaneseq
        %v1666 = vshrl.u32 %v1665, 7
        %v1667 = vsub.s32 %v1416, %v1666
        %v1668 = vrot.slane %v1271, %v1667
        %v1669 = vsel %vm1421, %v1668, %v1664
        %v1670 = vlaneseq
        %v1671 = vshrl.u32 %v1670, 7
        %v1672 = vsub.s32 %v1423, %v1671
        %v1673 = vrot.slane %v1273, %v1672
        %v1674 = vsel %vm1428, %v1673, %v1669
        %v1675 = vlaneseq
        %v1676 = vshrl.u32 %v1675, 7
        %v1677 = vsub.s32 %v1430, %v1676
        %v1678 = vrot.slane %v1275, %v1677
        %v1679 = vsel %vm1435, %v1678, %v1674
        %v1680 = vlaneseq
        %v1681 = vshrl.u32 %v1680, 7
        %v1682 = vsub.s32 %v1437, %v1681
        %v1683 = vrot.slane %v1277, %v1682
        %v1684 = vsel %vm1442, %v1683, %v1679
        %v1685 = vlaneseq
        %v1686 = vshrl.u32 %v1685, 7
        %v1687 = vsub.s32 %v1444, %v1686
        %v1688 = vrot.slane %v1279, %v1687
        %v1689 = vsel %vm1449, %v1688, %v1684
        %v1690 = vlaneseq
        %v1691 = vshrl.u32 %v1690, 7
        %v1692 = vsub.s32 %v1451, %v1691
        %v1693 = vrot.slane %v1281, %v1692
        %v1694 = vsel %vm1456, %v1693, %v1689
        %vm1695 = vcmask 1041409
        %v1696 = vsel %vm1695, %v1536, %v1457
        %vm1697 = vcmask 1042434
        %v1698 = vsel %vm1697, %v1615, %v1696
        %vm1699 = vcmask 1043459
        %v1700 = vsel %vm1699, %v1694, %v1698
        %v1702 = vmax.f32 %v1282, %v1700
        %v1703 = vsub.f32 %v1282, %v1702
        %v1704 = vmul.f32 %v1703, 1.442695
        %v1705 = vpow.pop %v1704
        %v1706 = vlaneseq
        %v1707 = vshrl.u32 %v1706, 7
        %v1708 = vsub.s32 0, %v1707
        %v1709 = vrot.slane %v1702, %v1708
        %1711 = vbcast.lane.b32.xlu0 %v1709, 256
        %v1712 = vpop.permute.xlu0 %1711
        %s1714 = sor.u32 256, 8
        %1715 = vbcast.lane.b32.xlu0 %v1709, %s1714
        %v1716 = vpop.permute.xlu0 %1715
        %s1718 = sor.u32 256, 16
        %1719 = vbcast.lane.b32.xlu0 %v1709, %s1718
        %v1720 = vpop.permute.xlu0 %1719
        %s1722 = sor.u32 256, 24
        %1723 = vbcast.lane.b32.xlu0 %v1709, %s1722
        %v1724 = vpop.permute.xlu0 %1723
        %s1726 = sor.u32 256, 32
        %1727 = vbcast.lane.b32.xlu0 %v1709, %s1726
        %v1728 = vpop.permute.xlu0 %1727
        %s1730 = sor.u32 256, 40
        %1731 = vbcast.lane.b32.xlu0 %v1709, %s1730
        %v1732 = vpop.permute.xlu0 %1731
        %s1734 = sor.u32 256, 48
        %1735 = vbcast.lane.b32.xlu0 %v1709, %s1734
        %v1736 = vpop.permute.xlu0 %1735
        %s1738 = sor.u32 256, 56
        %1739 = vbcast.lane.b32.xlu0 %v1709, %s1738
        %v1740 = vpop.permute.xlu0 %1739
        %s1742 = sor.u32 256, 64
        %1743 = vbcast.lane.b32.xlu0 %v1709, %s1742
        %v1744 = vpop.permute.xlu0 %1743
        %s1746 = sor.u32 256, 72
        %1747 = vbcast.lane.b32.xlu0 %v1709, %s1746
        %v1748 = vpop.permute.xlu0 %1747
        %s1750 = sor.u32 256, 80
        %1751 = vbcast.lane.b32.xlu0 %v1709, %s1750
        %v1752 = vpop.permute.xlu0 %1751
        %s1754 = sor.u32 256, 88
        %1755 = vbcast.lane.b32.xlu0 %v1709, %s1754
        %v1756 = vpop.permute.xlu0 %1755
        %s1758 = sor.u32 256, 96
        %1759 = vbcast.lane.b32.xlu0 %v1709, %s1758
        %v1760 = vpop.permute.xlu0 %1759
        %s1762 = sor.u32 256, 104
        %1763 = vbcast.lane.b32.xlu0 %v1709, %s1762
        %v1764 = vpop.permute.xlu0 %1763
        %s1766 = sor.u32 256, 112
        %1767 = vbcast.lane.b32.xlu0 %v1709, %s1766
        %v1768 = vpop.permute.xlu0 %1767
        %s1770 = sor.u32 256, 120
        %1771 = vbcast.lane.b32.xlu0 %v1709, %s1770
        %v1772 = vpop.permute.xlu0 %1771
        %v1773 = vlaneseq
        %v1774 = vshrl.u32 %v1773, 7
        %v1775 = vsub.s32 1, %v1774
        %v1776 = vrot.slane %v1702, %v1775
        %1778 = vbcast.lane.b32.xlu0 %v1776, 256
        %v1779 = vpop.permute.xlu0 %1778
        %s1781 = sor.u32 256, 8
        %1782 = vbcast.lane.b32.xlu0 %v1776, %s1781
        %v1783 = vpop.permute.xlu0 %1782
        %s1785 = sor.u32 256, 16
        %1786 = vbcast.lane.b32.xlu0 %v1776, %s1785
        %v1787 = vpop.permute.xlu0 %1786
        %s1789 = sor.u32 256, 24
        %1790 = vbcast.lane.b32.xlu0 %v1776, %s1789
        %v1791 = vpop.permute.xlu0 %1790
        %s1793 = sor.u32 256, 32
        %1794 = vbcast.lane.b32.xlu0 %v1776, %s1793
        %v1795 = vpop.permute.xlu0 %1794
        %s1797 = sor.u32 256, 40
        %1798 = vbcast.lane.b32.xlu0 %v1776, %s1797
        %v1799 = vpop.permute.xlu0 %1798
        %s1801 = sor.u32 256, 48
        %1802 = vbcast.lane.b32.xlu0 %v1776, %s1801
        %v1803 = vpop.permute.xlu0 %1802
        %s1805 = sor.u32 256, 56
        %1806 = vbcast.lane.b32.xlu0 %v1776, %s1805
        %v1807 = vpop.permute.xlu0 %1806
        %s1809 = sor.u32 256, 64
        %1810 = vbcast.lane.b32.xlu0 %v1776, %s1809
        %v1811 = vpop.permute.xlu0 %1810
        %s1813 = sor.u32 256, 72
        %1814 = vbcast.lane.b32.xlu0 %v1776, %s1813
        %v1815 = vpop.permute.xlu0 %1814
        %s1817 = sor.u32 256, 80
        %1818 = vbcast.lane.b32.xlu0 %v1776, %s1817
        %v1819 = vpop.permute.xlu0 %1818
        %s1821 = sor.u32 256, 88
        %1822 = vbcast.lane.b32.xlu0 %v1776, %s1821
        %v1823 = vpop.permute.xlu0 %1822
        %s1825 = sor.u32 256, 96
        %1826 = vbcast.lane.b32.xlu0 %v1776, %s1825
        %v1827 = vpop.permute.xlu0 %1826
        %s1829 = sor.u32 256, 104
        %1830 = vbcast.lane.b32.xlu0 %v1776, %s1829
        %v1831 = vpop.permute.xlu0 %1830
        %s1833 = sor.u32 256, 112
        %1834 = vbcast.lane.b32.xlu0 %v1776, %s1833
        %v1835 = vpop.permute.xlu0 %1834
        %s1837 = sor.u32 256, 120
        %1838 = vbcast.lane.b32.xlu0 %v1776, %s1837
        %v1839 = vpop.permute.xlu0 %1838
        %v1840 = vlaneseq
        %v1841 = vshrl.u32 %v1840, 7
        %v1842 = vsub.s32 2, %v1841
        %v1843 = vrot.slane %v1702, %v1842
        %1845 = vbcast.lane.b32.xlu0 %v1843, 256
        %v1846 = vpop.permute.xlu0 %1845
        %s1848 = sor.u32 256, 8
        %1849 = vbcast.lane.b32.xlu0 %v1843, %s1848
        %v1850 = vpop.permute.xlu0 %1849
        %s1852 = sor.u32 256, 16
        %1853 = vbcast.lane.b32.xlu0 %v1843, %s1852
        %v1854 = vpop.permute.xlu0 %1853
        %s1856 = sor.u32 256, 24
        %1857 = vbcast.lane.b32.xlu0 %v1843, %s1856
        %v1858 = vpop.permute.xlu0 %1857
        %s1860 = sor.u32 256, 32
        %1861 = vbcast.lane.b32.xlu0 %v1843, %s1860
        %v1862 = vpop.permute.xlu0 %1861
        %s1864 = sor.u32 256, 40
        %1865 = vbcast.lane.b32.xlu0 %v1843, %s1864
        %v1866 = vpop.permute.xlu0 %1865
        %s1868 = sor.u32 256, 48
        %1869 = vbcast.lane.b32.xlu0 %v1843, %s1868
        %v1870 = vpop.permute.xlu0 %1869
        %s1872 = sor.u32 256, 56
        %1873 = vbcast.lane.b32.xlu0 %v1843, %s1872
        %v1874 = vpop.permute.xlu0 %1873
        %s1876 = sor.u32 256, 64
        %1877 = vbcast.lane.b32.xlu0 %v1843, %s1876
        %v1878 = vpop.permute.xlu0 %1877
        %s1880 = sor.u32 256, 72
        %1881 = vbcast.lane.b32.xlu0 %v1843, %s1880
        %v1882 = vpop.permute.xlu0 %1881
        %s1884 = sor.u32 256, 80
        %1885 = vbcast.lane.b32.xlu0 %v1843, %s1884
        %v1886 = vpop.permute.xlu0 %1885
        %s1888 = sor.u32 256, 88
        %1889 = vbcast.lane.b32.xlu0 %v1843, %s1888
        %v1890 = vpop.permute.xlu0 %1889
        %s1892 = sor.u32 256, 96
        %1893 = vbcast.lane.b32.xlu0 %v1843, %s1892
        %v1894 = vpop.permute.xlu0 %1893
        %s1896 = sor.u32 256, 104
        %1897 = vbcast.lane.b32.xlu0 %v1843, %s1896
        %v1898 = vpop.permute.xlu0 %1897
        %s1900 = sor.u32 256, 112
        %1901 = vbcast.lane.b32.xlu0 %v1843, %s1900
        %v1902 = vpop.permute.xlu0 %1901
        %s1904 = sor.u32 256, 120
        %1905 = vbcast.lane.b32.xlu0 %v1843, %s1904
        %v1906 = vpop.permute.xlu0 %1905
        %v1907 = vlaneseq
        %v1908 = vshrl.u32 %v1907, 7
        %v1909 = vsub.s32 3, %v1908
        %v1910 = vrot.slane %v1702, %v1909
        %1912 = vbcast.lane.b32.xlu0 %v1910, 256
        %v1913 = vpop.permute.xlu0 %1912
        %s1915 = sor.u32 256, 8
        %1916 = vbcast.lane.b32.xlu0 %v1910, %s1915
        %v1917 = vpop.permute.xlu0 %1916
        %s1919 = sor.u32 256, 16
        %1920 = vbcast.lane.b32.xlu0 %v1910, %s1919
        %v1921 = vpop.permute.xlu0 %1920
        %s1923 = sor.u32 256, 24
        %1924 = vbcast.lane.b32.xlu0 %v1910, %s1923
        %v1925 = vpop.permute.xlu0 %1924
        %s1927 = sor.u32 256, 32
        %1928 = vbcast.lane.b32.xlu0 %v1910, %s1927
        %v1929 = vpop.permute.xlu0 %1928
        %s1931 = sor.u32 256, 40
        %1932 = vbcast.lane.b32.xlu0 %v1910, %s1931
        %v1933 = vpop.permute.xlu0 %1932
        %s1935 = sor.u32 256, 48
        %1936 = vbcast.lane.b32.xlu0 %v1910, %s1935
        %v1937 = vpop.permute.xlu0 %1936
        %s1939 = sor.u32 256, 56
        %1940 = vbcast.lane.b32.xlu0 %v1910, %s1939
        %v1941 = vpop.permute.xlu0 %1940
        %s1943 = sor.u32 256, 64
        %1944 = vbcast.lane.b32.xlu0 %v1910, %s1943
        %v1945 = vpop.permute.xlu0 %1944
        %s1947 = sor.u32 256, 72
        %1948 = vbcast.lane.b32.xlu0 %v1910, %s1947
        %v1949 = vpop.permute.xlu0 %1948
        %s1951 = sor.u32 256, 80
        %1952 = vbcast.lane.b32.xlu0 %v1910, %s1951
        %v1953 = vpop.permute.xlu0 %1952
        %s1955 = sor.u32 256, 88
        %1956 = vbcast.lane.b32.xlu0 %v1910, %s1955
        %v1957 = vpop.permute.xlu0 %1956
        %s1959 = sor.u32 256, 96
        %1960 = vbcast.lane.b32.xlu0 %v1910, %s1959
        %v1961 = vpop.permute.xlu0 %1960
        %s1963 = sor.u32 256, 104
        %1964 = vbcast.lane.b32.xlu0 %v1910, %s1963
        %v1965 = vpop.permute.xlu0 %1964
        %s1967 = sor.u32 256, 112
        %1968 = vbcast.lane.b32.xlu0 %v1910, %s1967
        %v1969 = vpop.permute.xlu0 %1968
        %s1971 = sor.u32 256, 120
        %1972 = vbcast.lane.b32.xlu0 %v1910, %s1971
        %v1973 = vpop.permute.xlu0 %1972
        %v1974 = vsub.f32 %v1090, %v1712
        %v1975 = vsub.f32 %v1091, %v1716
        %v1976 = vsub.f32 %v1092, %v1720
        %v1977 = vsub.f32 %v1093, %v1724
        %v1978 = vsub.f32 %v1094, %v1728
        %v1979 = vsub.f32 %v1095, %v1732
        %v1980 = vsub.f32 %v1096, %v1736
        %v1981 = vsub.f32 %v1097, %v1740
        %v1982 = vsub.f32 %v1098, %v1744
        %v1983 = vsub.f32 %v1099, %v1748
        %v1984 = vsub.f32 %v1100, %v1752
        %v1985 = vsub.f32 %v1101, %v1756
        %v1986 = vsub.f32 %v1102, %v1760
        %v1987 = vsub.f32 %v1103, %v1764
        %v1988 = vsub.f32 %v1104, %v1768
        %v1989 = vsub.f32 %v1105, %v1772
        %v1990 = vsub.f32 %v1106, %v1779
        %v1991 = vsub.f32 %v1107, %v1783
        %v1992 = vsub.f32 %v1108, %v1787
        %v1993 = vsub.f32 %v1109, %v1791
        %v1994 = vsub.f32 %v1110, %v1795
        %v1995 = vsub.f32 %v1111, %v1799
        %v1996 = vsub.f32 %v1112, %v1803
        %v1997 = vsub.f32 %v1113, %v1807
        %v1998 = vsub.f32 %v1114, %v1811
        %v1999 = vsub.f32 %v1115, %v1815
        %v2000 = vsub.f32 %v1116, %v1819
        %v2001 = vsub.f32 %v1117, %v1823
        %v2002 = vsub.f32 %v1118, %v1827
        %v2003 = vsub.f32 %v1119, %v1831
        %v2004 = vsub.f32 %v1120, %v1835
        %v2005 = vsub.f32 %v1121, %v1839
        %v2006 = vsub.f32 %v1122, %v1846
        %v2007 = vsub.f32 %v1123, %v1850
        %v2008 = vsub.f32 %v1124, %v1854
        %v2009 = vsub.f32 %v1125, %v1858
        %v2010 = vsub.f32 %v1126, %v1862
        %v2011 = vsub.f32 %v1127, %v1866
        %v2012 = vsub.f32 %v1128, %v1870
        %v2013 = vsub.f32 %v1129, %v1874
        %v2014 = vsub.f32 %v1130, %v1878
        %v2015 = vsub.f32 %v1131, %v1882
        %v2016 = vsub.f32 %v1132, %v1886
        %v2017 = vsub.f32 %v1133, %v1890
        %v2018 = vsub.f32 %v1134, %v1894
        %v2019 = vsub.f32 %v1135, %v1898
        %v2020 = vsub.f32 %v1136, %v1902
        %v2021 = vsub.f32 %v1137, %v1906
        %v2022 = vsub.f32 %v1138, %v1913
        %v2023 = vsub.f32 %v1139, %v1917
        %v2024 = vsub.f32 %v1140, %v1921
        %v2025 = vsub.f32 %v1141, %v1925
        %v2026 = vsub.f32 %v1142, %v1929
        %v2027 = vsub.f32 %v1143, %v1933
        %v2028 = vsub.f32 %v1144, %v1937
        %v2029 = vsub.f32 %v1145, %v1941
        %v2030 = vsub.f32 %v1146, %v1945
        %v2031 = vsub.f32 %v1147, %v1949
        %v2032 = vsub.f32 %v1148, %v1953
        %v2033 = vsub.f32 %v1149, %v1957
        %v2034 = vsub.f32 %v1150, %v1961
        %v2035 = vsub.f32 %v1151, %v1965
        %v2036 = vsub.f32 %v1152, %v1969
        %v2037 = vsub.f32 %v1153, %v1973
        %v2038 = vmul.f32 %v1974, 1.442695
        %v2039 = vpow.pop %v2038
        %v2040 = vmul.f32 %v1975, 1.442695
        %v2041 = vpow.pop %v2040
        %v2042 = vmul.f32 %v1976, 1.442695
        %v2043 = vpow.pop %v2042
        %v2044 = vmul.f32 %v1977, 1.442695
        %v2045 = vpow.pop %v2044
        %v2046 = vmul.f32 %v1978, 1.442695
        %v2047 = vpow.pop %v2046
        %v2048 = vmul.f32 %v1979, 1.442695
        %v2049 = vpow.pop %v2048
        %v2050 = vmul.f32 %v1980, 1.442695
        %v2051 = vpow.pop %v2050
        %v2052 = vmul.f32 %v1981, 1.442695
        %v2053 = vpow.pop %v2052
        %v2054 = vmul.f32 %v1982, 1.442695
        %v2055 = vpow.pop %v2054
        %v2056 = vmul.f32 %v1983, 1.442695
        %v2057 = vpow.pop %v2056
        %v2058 = vmul.f32 %v1984, 1.442695
        %v2059 = vpow.pop %v2058
        %v2060 = vmul.f32 %v1985, 1.442695
        %v2061 = vpow.pop %v2060
        %v2062 = vmul.f32 %v1986, 1.442695
        %v2063 = vpow.pop %v2062
        %v2064 = vmul.f32 %v1987, 1.442695
        %v2065 = vpow.pop %v2064
        %v2066 = vmul.f32 %v1988, 1.442695
        %v2067 = vpow.pop %v2066
        %v2068 = vmul.f32 %v1989, 1.442695
        %v2069 = vpow.pop %v2068
        %v2070 = vmul.f32 %v1990, 1.442695
        %v2071 = vpow.pop %v2070
        %v2072 = vmul.f32 %v1991, 1.442695
        %v2073 = vpow.pop %v2072
        %v2074 = vmul.f32 %v1992, 1.442695
        %v2075 = vpow.pop %v2074
        %v2076 = vmul.f32 %v1993, 1.442695
        %v2077 = vpow.pop %v2076
        %v2078 = vmul.f32 %v1994, 1.442695
        %v2079 = vpow.pop %v2078
        %v2080 = vmul.f32 %v1995, 1.442695
        %v2081 = vpow.pop %v2080
        %v2082 = vmul.f32 %v1996, 1.442695
        %v2083 = vpow.pop %v2082
        %v2084 = vmul.f32 %v1997, 1.442695
        %v2085 = vpow.pop %v2084
        %v2086 = vmul.f32 %v1998, 1.442695
        %v2087 = vpow.pop %v2086
        %v2088 = vmul.f32 %v1999, 1.442695
        %v2089 = vpow.pop %v2088
        %v2090 = vmul.f32 %v2000, 1.442695
        %v2091 = vpow.pop %v2090
        %v2092 = vmul.f32 %v2001, 1.442695
        %v2093 = vpow.pop %v2092
        %v2094 = vmul.f32 %v2002, 1.442695
        %v2095 = vpow.pop %v2094
        %v2096 = vmul.f32 %v2003, 1.442695
        %v2097 = vpow.pop %v2096
        %v2098 = vmul.f32 %v2004, 1.442695
        %v2099 = vpow.pop %v2098
        %v2100 = vmul.f32 %v2005, 1.442695
        %v2101 = vpow.pop %v2100
        %v2102 = vmul.f32 %v2006, 1.442695
        %v2103 = vpow.pop %v2102
        %v2104 = vmul.f32 %v2007, 1.442695
        %v2105 = vpow.pop %v2104
        %v2106 = vmul.f32 %v2008, 1.442695
        %v2107 = vpow.pop %v2106
        %v2108 = vmul.f32 %v2009, 1.442695
        %v2109 = vpow.pop %v2108
        %v2110 = vmul.f32 %v2010, 1.442695
        %v2111 = vpow.pop %v2110
        %v2112 = vmul.f32 %v2011, 1.442695
        %v2113 = vpow.pop %v2112
        %v2114 = vmul.f32 %v2012, 1.442695
        %v2115 = vpow.pop %v2114
        %v2116 = vmul.f32 %v2013, 1.442695
        %v2117 = vpow.pop %v2116
        %v2118 = vmul.f32 %v2014, 1.442695
        %v2119 = vpow.pop %v2118
        %v2120 = vmul.f32 %v2015, 1.442695
        %v2121 = vpow.pop %v2120
        %v2122 = vmul.f32 %v2016, 1.442695
        %v2123 = vpow.pop %v2122
        %v2124 = vmul.f32 %v2017, 1.442695
        %v2125 = vpow.pop %v2124
        %v2126 = vmul.f32 %v2018, 1.442695
        %v2127 = vpow.pop %v2126
        %v2128 = vmul.f32 %v2019, 1.442695
        %v2129 = vpow.pop %v2128
        %v2130 = vmul.f32 %v2020, 1.442695
        %v2131 = vpow.pop %v2130
        %v2132 = vmul.f32 %v2021, 1.442695
        %v2133 = vpow.pop %v2132
        %v2134 = vmul.f32 %v2022, 1.442695
        %v2135 = vpow.pop %v2134
        %v2136 = vmul.f32 %v2023, 1.442695
        %v2137 = vpow.pop %v2136
        %v2138 = vmul.f32 %v2024, 1.442695
        %v2139 = vpow.pop %v2138
        %v2140 = vmul.f32 %v2025, 1.442695
        %v2141 = vpow.pop %v2140
        %v2142 = vmul.f32 %v2026, 1.442695
        %v2143 = vpow.pop %v2142
        %v2144 = vmul.f32 %v2027, 1.442695
        %v2145 = vpow.pop %v2144
        %v2146 = vmul.f32 %v2028, 1.442695
        %v2147 = vpow.pop %v2146
        %v2148 = vmul.f32 %v2029, 1.442695
        %v2149 = vpow.pop %v2148
        %v2150 = vmul.f32 %v2030, 1.442695
        %v2151 = vpow.pop %v2150
        %v2152 = vmul.f32 %v2031, 1.442695
        %v2153 = vpow.pop %v2152
        %v2154 = vmul.f32 %v2032, 1.442695
        %v2155 = vpow.pop %v2154
        %v2156 = vmul.f32 %v2033, 1.442695
        %v2157 = vpow.pop %v2156
        %v2158 = vmul.f32 %v2034, 1.442695
        %v2159 = vpow.pop %v2158
        %v2160 = vmul.f32 %v2035, 1.442695
        %v2161 = vpow.pop %v2160
        %v2162 = vmul.f32 %v2036, 1.442695
        %v2163 = vpow.pop %v2162
        %v2164 = vmul.f32 %v2037, 1.442695
        %v2165 = vpow.pop %v2164
        %v2166 = vld [vmem:[#allocation3] sm:$0xf]
        %v2167 = vmul.f32 %v1705, %v2166
        %2168 = vadd.xlane.f32.xlu0 %v2039
        %v2169 = vpop.xlane.xlu0 %2168
        %2170 = vadd.xlane.f32.xlu0 %v2041
        %v2171 = vpop.xlane.xlu0 %2170
        %2172 = vadd.xlane.f32.xlu0 %v2043
        %v2173 = vpop.xlane.xlu0 %2172
        %2174 = vadd.xlane.f32.xlu0 %v2045
        %v2175 = vpop.xlane.xlu0 %2174
        %2176 = vadd.xlane.f32.xlu0 %v2047
        %v2177 = vpop.xlane.xlu0 %2176
        %2178 = vadd.xlane.f32.xlu0 %v2049
        %v2179 = vpop.xlane.xlu0 %2178
        %2180 = vadd.xlane.f32.xlu0 %v2051
        %v2181 = vpop.xlane.xlu0 %2180
        %2182 = vadd.xlane.f32.xlu0 %v2053
        %v2183 = vpop.xlane.xlu0 %2182
        %2184 = vadd.xlane.f32.xlu0 %v2055
        %v2185 = vpop.xlane.xlu0 %2184
        %2186 = vadd.xlane.f32.xlu0 %v2057
        %v2187 = vpop.xlane.xlu0 %2186
        %2188 = vadd.xlane.f32.xlu0 %v2059
        %v2189 = vpop.xlane.xlu0 %2188
        %2190 = vadd.xlane.f32.xlu0 %v2061
        %v2191 = vpop.xlane.xlu0 %2190
        %2192 = vadd.xlane.f32.xlu0 %v2063
        %v2193 = vpop.xlane.xlu0 %2192
        %2194 = vadd.xlane.f32.xlu0 %v2065
        %v2195 = vpop.xlane.xlu0 %2194
        %2196 = vadd.xlane.f32.xlu0 %v2067
        %v2197 = vpop.xlane.xlu0 %2196
        %2198 = vadd.xlane.f32.xlu0 %v2069
        %v2199 = vpop.xlane.xlu0 %2198
        %2200 = vadd.xlane.f32.xlu0 %v2071
        %v2201 = vpop.xlane.xlu0 %2200
        %2202 = vadd.xlane.f32.xlu0 %v2073
        %v2203 = vpop.xlane.xlu0 %2202
        %2204 = vadd.xlane.f32.xlu0 %v2075
        %v2205 = vpop.xlane.xlu0 %2204
        %2206 = vadd.xlane.f32.xlu0 %v2077
        %v2207 = vpop.xlane.xlu0 %2206
        %2208 = vadd.xlane.f32.xlu0 %v2079
        %v2209 = vpop.xlane.xlu0 %2208
        %2210 = vadd.xlane.f32.xlu0 %v2081
        %v2211 = vpop.xlane.xlu0 %2210
        %2212 = vadd.xlane.f32.xlu0 %v2083
        %v2213 = vpop.xlane.xlu0 %2212
        %2214 = vadd.xlane.f32.xlu0 %v2085
        %v2215 = vpop.xlane.xlu0 %2214
        %2216 = vadd.xlane.f32.xlu0 %v2087
        %v2217 = vpop.xlane.xlu0 %2216
        %2218 = vadd.xlane.f32.xlu0 %v2089
        %v2219 = vpop.xlane.xlu0 %2218
        %2220 = vadd.xlane.f32.xlu0 %v2091
        %v2221 = vpop.xlane.xlu0 %2220
        %2222 = vadd.xlane.f32.xlu0 %v2093
        %v2223 = vpop.xlane.xlu0 %2222
        %2224 = vadd.xlane.f32.xlu0 %v2095
        %v2225 = vpop.xlane.xlu0 %2224
        %2226 = vadd.xlane.f32.xlu0 %v2097
        %v2227 = vpop.xlane.xlu0 %2226
        %2228 = vadd.xlane.f32.xlu0 %v2099
        %v2229 = vpop.xlane.xlu0 %2228
        %2230 = vadd.xlane.f32.xlu0 %v2101
        %v2231 = vpop.xlane.xlu0 %2230
        %2232 = vadd.xlane.f32.xlu0 %v2103
        %v2233 = vpop.xlane.xlu0 %2232
        %2234 = vadd.xlane.f32.xlu0 %v2105
        %v2235 = vpop.xlane.xlu0 %2234
        %2236 = vadd.xlane.f32.xlu0 %v2107
        %v2237 = vpop.xlane.xlu0 %2236
        %2238 = vadd.xlane.f32.xlu0 %v2109
        %v2239 = vpop.xlane.xlu0 %2238
        %2240 = vadd.xlane.f32.xlu0 %v2111
        %v2241 = vpop.xlane.xlu0 %2240
        %2242 = vadd.xlane.f32.xlu0 %v2113
        %v2243 = vpop.xlane.xlu0 %2242
        %2244 = vadd.xlane.f32.xlu0 %v2115
        %v2245 = vpop.xlane.xlu0 %2244
        %2246 = vadd.xlane.f32.xlu0 %v2117
        %v2247 = vpop.xlane.xlu0 %2246
        %2248 = vadd.xlane.f32.xlu0 %v2119
        %v2249 = vpop.xlane.xlu0 %2248
        %2250 = vadd.xlane.f32.xlu0 %v2121
        %v2251 = vpop.xlane.xlu0 %2250
        %2252 = vadd.xlane.f32.xlu0 %v2123
        %v2253 = vpop.xlane.xlu0 %2252
        %2254 = vadd.xlane.f32.xlu0 %v2125
        %v2255 = vpop.xlane.xlu0 %2254
        %2256 = vadd.xlane.f32.xlu0 %v2127
        %v2257 = vpop.xlane.xlu0 %2256
        %2258 = vadd.xlane.f32.xlu0 %v2129
        %v2259 = vpop.xlane.xlu0 %2258
        %2260 = vadd.xlane.f32.xlu0 %v2131
        %v2261 = vpop.xlane.xlu0 %2260
        %2262 = vadd.xlane.f32.xlu0 %v2133
        %v2263 = vpop.xlane.xlu0 %2262
        %2264 = vadd.xlane.f32.xlu0 %v2135
        %v2265 = vpop.xlane.xlu0 %2264
        %2266 = vadd.xlane.f32.xlu0 %v2137
        %v2267 = vpop.xlane.xlu0 %2266
        %2268 = vadd.xlane.f32.xlu0 %v2139
        %v2269 = vpop.xlane.xlu0 %2268
        %2270 = vadd.xlane.f32.xlu0 %v2141
        %v2271 = vpop.xlane.xlu0 %2270
        %2272 = vadd.xlane.f32.xlu0 %v2143
        %v2273 = vpop.xlane.xlu0 %2272
        %2274 = vadd.xlane.f32.xlu0 %v2145
        %v2275 = vpop.xlane.xlu0 %2274
        %2276 = vadd.xlane.f32.xlu0 %v2147
        %v2277 = vpop.xlane.xlu0 %2276
        %2278 = vadd.xlane.f32.xlu0 %v2149
        %v2279 = vpop.xlane.xlu0 %2278
        %2280 = vadd.xlane.f32.xlu0 %v2151
        %v2281 = vpop.xlane.xlu0 %2280
        %2282 = vadd.xlane.f32.xlu0 %v2153
        %v2283 = vpop.xlane.xlu0 %2282
        %2284 = vadd.xlane.f32.xlu0 %v2155
        %v2285 = vpop.xlane.xlu0 %2284
        %2286 = vadd.xlane.f32.xlu0 %v2157
        %v2287 = vpop.xlane.xlu0 %2286
        %2288 = vadd.xlane.f32.xlu0 %v2159
        %v2289 = vpop.xlane.xlu0 %2288
        %2290 = vadd.xlane.f32.xlu0 %v2161
        %v2291 = vpop.xlane.xlu0 %2290
        %2292 = vadd.xlane.f32.xlu0 %v2163
        %v2293 = vpop.xlane.xlu0 %2292
        %2294 = vadd.xlane.f32.xlu0 %v2165
        %v2295 = vpop.xlane.xlu0 %2294
        %v2360 = vlaneseq
        %v2361 = vshrl.u32 %v2360, 7
        %v2362 = vsub.s32 %v1348, %v2361
        %v2363 = vrot.slane %v2169, %v2362
        %v2364 = vlaneseq
        %v2365 = vshrl.u32 %v2364, 7
        %v2366 = vsub.s32 %v1353, %v2365
        %v2367 = vrot.slane %v2171, %v2366
        %v2368 = vsel %vm1358, %v2367, %v2363
        %v2369 = vlaneseq
        %v2370 = vshrl.u32 %v2369, 7
        %v2371 = vsub.s32 %v1360, %v2370
        %v2372 = vrot.slane %v2173, %v2371
        %v2373 = vsel %vm1365, %v2372, %v2368
        %v2374 = vlaneseq
        %v2375 = vshrl.u32 %v2374, 7
        %v2376 = vsub.s32 %v1367, %v2375
        %v2377 = vrot.slane %v2175, %v2376
        %v2378 = vsel %vm1372, %v2377, %v2373
        %v2379 = vlaneseq
        %v2380 = vshrl.u32 %v2379, 7
        %v2381 = vsub.s32 %v1374, %v2380
        %v2382 = vrot.slane %v2177, %v2381
        %v2383 = vsel %vm1379, %v2382, %v2378
        %v2384 = vlaneseq
        %v2385 = vshrl.u32 %v2384, 7
        %v2386 = vsub.s32 %v1381, %v2385
        %v2387 = vrot.slane %v2179, %v2386
        %v2388 = vsel %vm1386, %v2387, %v2383
        %v2389 = vlaneseq
        %v2390 = vshrl.u32 %v2389, 7
        %v2391 = vsub.s32 %v1388, %v2390
        %v2392 = vrot.slane %v2181, %v2391
        %v2393 = vsel %vm1393, %v2392, %v2388
        %v2394 = vlaneseq
        %v2395 = vshrl.u32 %v2394, 7
        %v2396 = vsub.s32 %v1395, %v2395
        %v2397 = vrot.slane %v2183, %v2396
        %v2398 = vsel %vm1400, %v2397, %v2393
        %v2399 = vlaneseq
        %v2400 = vshrl.u32 %v2399, 7
        %v2401 = vsub.s32 %v1402, %v2400
        %v2402 = vrot.slane %v2185, %v2401
        %v2403 = vsel %vm1407, %v2402, %v2398
        %v2404 = vlaneseq
        %v2405 = vshrl.u32 %v2404, 7
        %v2406 = vsub.s32 %v1409, %v2405
        %v2407 = vrot.slane %v2187, %v2406
        %v2408 = vsel %vm1414, %v2407, %v2403
        %v2409 = vlaneseq
        %v2410 = vshrl.u32 %v2409, 7
        %v2411 = vsub.s32 %v1416, %v2410
        %v2412 = vrot.slane %v2189, %v2411
        %v2413 = vsel %vm1421, %v2412, %v2408
        %v2414 = vlaneseq
        %v2415 = vshrl.u32 %v2414, 7
        %v2416 = vsub.s32 %v1423, %v2415
        %v2417 = vrot.slane %v2191, %v2416
        %v2418 = vsel %vm1428, %v2417, %v2413
        %v2419 = vlaneseq
        %v2420 = vshrl.u32 %v2419, 7
        %v2421 = vsub.s32 %v1430, %v2420
        %v2422 = vrot.slane %v2193, %v2421
        %v2423 = vsel %vm1435, %v2422, %v2418
        %v2424 = vlaneseq
        %v2425 = vshrl.u32 %v2424, 7
        %v2426 = vsub.s32 %v1437, %v2425
        %v2427 = vrot.slane %v2195, %v2426
        %v2428 = vsel %vm1442, %v2427, %v2423
        %v2429 = vlaneseq
        %v2430 = vshrl.u32 %v2429, 7
        %v2431 = vsub.s32 %v1444, %v2430
        %v2432 = vrot.slane %v2197, %v2431
        %v2433 = vsel %vm1449, %v2432, %v2428
        %v2434 = vlaneseq
        %v2435 = vshrl.u32 %v2434, 7
        %v2436 = vsub.s32 %v1451, %v2435
        %v2437 = vrot.slane %v2199, %v2436
        %v2438 = vsel %vm1456, %v2437, %v2433
        %v2439 = vlaneseq
        %v2440 = vshrl.u32 %v2439, 7
        %v2441 = vsub.s32 %v1348, %v2440
        %v2442 = vrot.slane %v2201, %v2441
        %v2443 = vlaneseq
        %v2444 = vshrl.u32 %v2443, 7
        %v2445 = vsub.s32 %v1353, %v2444
        %v2446 = vrot.slane %v2203, %v2445
        %v2447 = vsel %vm1358, %v2446, %v2442
        %v2448 = vlaneseq
        %v2449 = vshrl.u32 %v2448, 7
        %v2450 = vsub.s32 %v1360, %v2449
        %v2451 = vrot.slane %v2205, %v2450
        %v2452 = vsel %vm1365, %v2451, %v2447
        %v2453 = vlaneseq
        %v2454 = vshrl.u32 %v2453, 7
        %v2455 = vsub.s32 %v1367, %v2454
        %v2456 = vrot.slane %v2207, %v2455
        %v2457 = vsel %vm1372, %v2456, %v2452
        %v2458 = vlaneseq
        %v2459 = vshrl.u32 %v2458, 7
        %v2460 = vsub.s32 %v1374, %v2459
        %v2461 = vrot.slane %v2209, %v2460
        %v2462 = vsel %vm1379, %v2461, %v2457
        %v2463 = vlaneseq
        %v2464 = vshrl.u32 %v2463, 7
        %v2465 = vsub.s32 %v1381, %v2464
        %v2466 = vrot.slane %v2211, %v2465
        %v2467 = vsel %vm1386, %v2466, %v2462
        %v2468 = vlaneseq
        %v2469 = vshrl.u32 %v2468, 7
        %v2470 = vsub.s32 %v1388, %v2469
        %v2471 = vrot.slane %v2213, %v2470
        %v2472 = vsel %vm1393, %v2471, %v2467
        %v2473 = vlaneseq
        %v2474 = vshrl.u32 %v2473, 7
        %v2475 = vsub.s32 %v1395, %v2474
        %v2476 = vrot.slane %v2215, %v2475
        %v2477 = vsel %vm1400, %v2476, %v2472
        %v2478 = vlaneseq
        %v2479 = vshrl.u32 %v2478, 7
        %v2480 = vsub.s32 %v1402, %v2479
        %v2481 = vrot.slane %v2217, %v2480
        %v2482 = vsel %vm1407, %v2481, %v2477
        %v2483 = vlaneseq
        %v2484 = vshrl.u32 %v2483, 7
        %v2485 = vsub.s32 %v1409, %v2484
        %v2486 = vrot.slane %v2219, %v2485
        %v2487 = vsel %vm1414, %v2486, %v2482
        %v2488 = vlaneseq
        %v2489 = vshrl.u32 %v2488, 7
        %v2490 = vsub.s32 %v1416, %v2489
        %v2491 = vrot.slane %v2221, %v2490
        %v2492 = vsel %vm1421, %v2491, %v2487
        %v2493 = vlaneseq
        %v2494 = vshrl.u32 %v2493, 7
        %v2495 = vsub.s32 %v1423, %v2494
        %v2496 = vrot.slane %v2223, %v2495
        %v2497 = vsel %vm1428, %v2496, %v2492
        %v2498 = vlaneseq
        %v2499 = vshrl.u32 %v2498, 7
        %v2500 = vsub.s32 %v1430, %v2499
        %v2501 = vrot.slane %v2225, %v2500
        %v2502 = vsel %vm1435, %v2501, %v2497
        %v2503 = vlaneseq
        %v2504 = vshrl.u32 %v2503, 7
        %v2505 = vsub.s32 %v1437, %v2504
        %v2506 = vrot.slane %v2227, %v2505
        %v2507 = vsel %vm1442, %v2506, %v2502
        %v2508 = vlaneseq
        %v2509 = vshrl.u32 %v2508, 7
        %v2510 = vsub.s32 %v1444, %v2509
        %v2511 = vrot.slane %v2229, %v2510
        %v2512 = vsel %vm1449, %v2511, %v2507
        %v2513 = vlaneseq
        %v2514 = vshrl.u32 %v2513, 7
        %v2515 = vsub.s32 %v1451, %v2514
        %v2516 = vrot.slane %v2231, %v2515
        %v2517 = vsel %vm1456, %v2516, %v2512
        %v2518 = vlaneseq
        %v2519 = vshrl.u32 %v2518, 7
        %v2520 = vsub.s32 %v1348, %v2519
        %v2521 = vrot.slane %v2233, %v2520
        %v2522 = vlaneseq
        %v2523 = vshrl.u32 %v2522, 7
        %v2524 = vsub.s32 %v1353, %v2523
        %v2525 = vrot.slane %v2235, %v2524
        %v2526 = vsel %vm1358, %v2525, %v2521
        %v2527 = vlaneseq
        %v2528 = vshrl.u32 %v2527, 7
        %v2529 = vsub.s32 %v1360, %v2528
        %v2530 = vrot.slane %v2237, %v2529
        %v2531 = vsel %vm1365, %v2530, %v2526
        %v2532 = vlaneseq
        %v2533 = vshrl.u32 %v2532, 7
        %v2534 = vsub.s32 %v1367, %v2533
        %v2535 = vrot.slane %v2239, %v2534
        %v2536 = vsel %vm1372, %v2535, %v2531
        %v2537 = vlaneseq
        %v2538 = vshrl.u32 %v2537, 7
        %v2539 = vsub.s32 %v1374, %v2538
        %v2540 = vrot.slane %v2241, %v2539
        %v2541 = vsel %vm1379, %v2540, %v2536
        %v2542 = vlaneseq
        %v2543 = vshrl.u32 %v2542, 7
        %v2544 = vsub.s32 %v1381, %v2543
        %v2545 = vrot.slane %v2243, %v2544
        %v2546 = vsel %vm1386, %v2545, %v2541
        %v2547 = vlaneseq
        %v2548 = vshrl.u32 %v2547, 7
        %v2549 = vsub.s32 %v1388, %v2548
        %v2550 = vrot.slane %v2245, %v2549
        %v2551 = vsel %vm1393, %v2550, %v2546
        %v2552 = vlaneseq
        %v2553 = vshrl.u32 %v2552, 7
        %v2554 = vsub.s32 %v1395, %v2553
        %v2555 = vrot.slane %v2247, %v2554
        %v2556 = vsel %vm1400, %v2555, %v2551
        %v2557 = vlaneseq
        %v2558 = vshrl.u32 %v2557, 7
        %v2559 = vsub.s32 %v1402, %v2558
        %v2560 = vrot.slane %v2249, %v2559
        %v2561 = vsel %vm1407, %v2560, %v2556
        %v2562 = vlaneseq
        %v2563 = vshrl.u32 %v2562, 7
        %v2564 = vsub.s32 %v1409, %v2563
        %v2565 = vrot.slane %v2251, %v2564
        %v2566 = vsel %vm1414, %v2565, %v2561
        %v2567 = vlaneseq
        %v2568 = vshrl.u32 %v2567, 7
        %v2569 = vsub.s32 %v1416, %v2568
        %v2570 = vrot.slane %v2253, %v2569
        %v2571 = vsel %vm1421, %v2570, %v2566
        %v2572 = vlaneseq
        %v2573 = vshrl.u32 %v2572, 7
        %v2574 = vsub.s32 %v1423, %v2573
        %v2575 = vrot.slane %v2255, %v2574
        %v2576 = vsel %vm1428, %v2575, %v2571
        %v2577 = vlaneseq
        %v2578 = vshrl.u32 %v2577, 7
        %v2579 = vsub.s32 %v1430, %v2578
        %v2580 = vrot.slane %v2257, %v2579
        %v2581 = vsel %vm1435, %v2580, %v2576
        %v2582 = vlaneseq
        %v2583 = vshrl.u32 %v2582, 7
        %v2584 = vsub.s32 %v1437, %v2583
        %v2585 = vrot.slane %v2259, %v2584
        %v2586 = vsel %vm1442, %v2585, %v2581
        %v2587 = vlaneseq
        %v2588 = vshrl.u32 %v2587, 7
        %v2589 = vsub.s32 %v1444, %v2588
        %v2590 = vrot.slane %v2261, %v2589
        %v2591 = vsel %vm1449, %v2590, %v2586
        %v2592 = vlaneseq
        %v2593 = vshrl.u32 %v2592, 7
        %v2594 = vsub.s32 %v1451, %v2593
        %v2595 = vrot.slane %v2263, %v2594
        %v2596 = vsel %vm1456, %v2595, %v2591
        %v2597 = vlaneseq
        %v2598 = vshrl.u32 %v2597, 7
        %v2599 = vsub.s32 %v1348, %v2598
        %v2600 = vrot.slane %v2265, %v2599
        %v2601 = vlaneseq
        %v2602 = vshrl.u32 %v2601, 7
        %v2603 = vsub.s32 %v1353, %v2602
        %v2604 = vrot.slane %v2267, %v2603
        %v2605 = vsel %vm1358, %v2604, %v2600
        %v2606 = vlaneseq
        %v2607 = vshrl.u32 %v2606, 7
        %v2608 = vsub.s32 %v1360, %v2607
        %v2609 = vrot.slane %v2269, %v2608
        %v2610 = vsel %vm1365, %v2609, %v2605
        %v2611 = vlaneseq
        %v2612 = vshrl.u32 %v2611, 7
        %v2613 = vsub.s32 %v1367, %v2612
        %v2614 = vrot.slane %v2271, %v2613
        %v2615 = vsel %vm1372, %v2614, %v2610
        %v2616 = vlaneseq
        %v2617 = vshrl.u32 %v2616, 7
        %v2618 = vsub.s32 %v1374, %v2617
        %v2619 = vrot.slane %v2273, %v2618
        %v2620 = vsel %vm1379, %v2619, %v2615
        %v2621 = vlaneseq
        %v2622 = vshrl.u32 %v2621, 7
        %v2623 = vsub.s32 %v1381, %v2622
        %v2624 = vrot.slane %v2275, %v2623
        %v2625 = vsel %vm1386, %v2624, %v2620
        %v2626 = vlaneseq
        %v2627 = vshrl.u32 %v2626, 7
        %v2628 = vsub.s32 %v1388, %v2627
        %v2629 = vrot.slane %v2277, %v2628
        %v2630 = vsel %vm1393, %v2629, %v2625
        %v2631 = vlaneseq
        %v2632 = vshrl.u32 %v2631, 7
        %v2633 = vsub.s32 %v1395, %v2632
        %v2634 = vrot.slane %v2279, %v2633
        %v2635 = vsel %vm1400, %v2634, %v2630
        %v2636 = vlaneseq
        %v2637 = vshrl.u32 %v2636, 7
        %v2638 = vsub.s32 %v1402, %v2637
        %v2639 = vrot.slane %v2281, %v2638
        %v2640 = vsel %vm1407, %v2639, %v2635
        %v2641 = vlaneseq
        %v2642 = vshrl.u32 %v2641, 7
        %v2643 = vsub.s32 %v1409, %v2642
        %v2644 = vrot.slane %v2283, %v2643
        %v2645 = vsel %vm1414, %v2644, %v2640
        %v2646 = vlaneseq
        %v2647 = vshrl.u32 %v2646, 7
        %v2648 = vsub.s32 %v1416, %v2647
        %v2649 = vrot.slane %v2285, %v2648
        %v2650 = vsel %vm1421, %v2649, %v2645
        %v2651 = vlaneseq
        %v2652 = vshrl.u32 %v2651, 7
        %v2653 = vsub.s32 %v1423, %v2652
        %v2654 = vrot.slane %v2287, %v2653
        %v2655 = vsel %vm1428, %v2654, %v2650
        %v2656 = vlaneseq
        %v2657 = vshrl.u32 %v2656, 7
        %v2658 = vsub.s32 %v1430, %v2657
        %v2659 = vrot.slane %v2289, %v2658
        %v2660 = vsel %vm1435, %v2659, %v2655
        %v2661 = vlaneseq
        %v2662 = vshrl.u32 %v2661, 7
        %v2663 = vsub.s32 %v1437, %v2662
        %v2664 = vrot.slane %v2291, %v2663
        %v2665 = vsel %vm1442, %v2664, %v2660
        %v2666 = vlaneseq
        %v2667 = vshrl.u32 %v2666, 7
        %v2668 = vsub.s32 %v1444, %v2667
        %v2669 = vrot.slane %v2293, %v2668
        %v2670 = vsel %vm1449, %v2669, %v2665
        %v2671 = vlaneseq
        %v2672 = vshrl.u32 %v2671, 7
        %v2673 = vsub.s32 %v1451, %v2672
        %v2674 = vrot.slane %v2295, %v2673
        %v2675 = vsel %vm1456, %v2674, %v2670
        %v2676 = vsel %vm1695, %v2517, %v2438
        %v2677 = vsel %vm1697, %v2596, %v2676
        %v2678 = vsel %vm1699, %v2675, %v2677
        %v2680 = vadd.f32 %v2167, %v2678
        %2681 = vst [vmem:[#allocation3] sm:$0xf] %v2680
        %v2684 = vunpack.c.l.s4 1966171168
        %v2685 = vunpack.c.0.s8 %v2684
        %v2686 = vlaneseq
        %v2687 = vshrl.u32 %v2686, 7
        %v2688 = vsub.s32 %v2685, %v2687
        %v2689 = vrot.slane %v1705, %v2688
        %v2690 = vcombine.high %v2689, %v2689
        %v2692 = vunpack.c.l.s4 1966171168
        %v2693 = vunpack.c.0.s8 %v2692
        %v2694 = vlaneseq
        %v2695 = vshrl.u32 %v2694, 7
        %v2696 = vsub.s32 %v2693, %v2695
        %v2697 = vrot.slane %v2689, %v2696
        %v2699 = vunpack.c.l.s4 1966171168
        %v2700 = vunpack.c.0.s8 %v2699
        %v2701 = vlaneseq
        %v2702 = vshrl.u32 %v2701, 7
        %v2703 = vsub.s32 %v2700, %v2702
        %v2704 = vrot.slane %v2690, %v2703
        %v2705 = vcombine.high %v2697, %v2697
        %v2706 = vcombine.high %v2704, %v2704
        %v2707 = vld [vmem:[#allocation4] sm:$0xff]
        %v2708 = vld [vmem:[#allocation4 + $0x8] sm:$0xff]
        %v2709 = vld [vmem:[#allocation4 + $0x10] sm:$0xff]
        %v2710 = vld [vmem:[#allocation4 + $0x18] sm:$0xff]
        %v2711 = vlaneseq
        %v2712 = vshrl.u32 %v2711, 7
        %v2713 = vsub.s32 0, %v2712
        %v2714 = vrot.slane %v2697, %v2713
        %v2715 = vlaneseq
        %v2716 = vshrl.u32 %v2715, 7
        %v2717 = vsub.s32 0, %v2716
        %v2718 = vrot.slane %v2704, %v2717
        %v2719 = vlaneseq
        %v2720 = vshrl.u32 %v2719, 7
        %v2721 = vsub.s32 0, %v2720
        %v2722 = vrot.slane %v2705, %v2721
        %v2723 = vlaneseq
        %v2724 = vshrl.u32 %v2723, 7
        %v2725 = vsub.s32 0, %v2724
        %v2726 = vrot.slane %v2706, %v2725
        %v2731 = vmul.f32 %v2714, %v2707
        %v2732 = vmul.f32 %v2718, %v2708
        %v2733 = vmul.f32 %v2722, %v2709
        %v2734 = vmul.f32 %v2726, %v2710
        %2735 = vmatprep.subr.mxu0 0.0
        %2736 = vmatpush1.xpose.msra.mxu0 %v2039
        %2737 = vmatprep.subr.mxu0 0.0
        %2738 = vmatpush1.xpose.msra.mxu0 %v2041
        %2739 = vmatprep.subr.mxu0 0.0
        %2740 = vmatpush1.xpose.msra.mxu0 %v2043
        %2741 = vmatprep.subr.mxu0 0.0
        %2742 = vmatpush1.xpose.msra.mxu0 %v2045
        %2743 = vmatprep.subr.mxu0 0.0
        %2744 = vmatpush1.xpose.msra.mxu0 %v2047
        %2745 = vmatprep.subr.mxu0 0.0
        %2746 = vmatpush1.xpose.msra.mxu0 %v2049
        %2747 = vmatprep.subr.mxu0 0.0
        %2748 = vmatpush1.xpose.msra.mxu0 %v2051
        %2749 = vmatprep.subr.mxu0 0.0
        %2750 = vmatpush1.xpose.msra.mxu0 %v2053
        %2751 = vmatprep.subr.mxu0 0.0
        %2752 = vmatpush1.xpose.msra.mxu0 %v2055
        %2753 = vmatprep.subr.mxu0 0.0
        %2754 = vmatpush1.xpose.msra.mxu0 %v2057
        %2755 = vmatprep.subr.mxu0 0.0
        %2756 = vmatpush1.xpose.msra.mxu0 %v2059
        %2757 = vmatprep.subr.mxu0 0.0
        %2758 = vmatpush1.xpose.msra.mxu0 %v2061
        %2759 = vmatprep.subr.mxu0 0.0
        %2760 = vmatpush1.xpose.msra.mxu0 %v2063
        %2761 = vmatprep.subr.mxu0 0.0
        %2762 = vmatpush1.xpose.msra.mxu0 %v2065
        %2763 = vmatprep.subr.mxu0 0.0
        %2764 = vmatpush1.xpose.msra.mxu0 %v2067
        %2765 = vmatprep.subr.mxu0 0.0
        %2766 = vmatpush1.xpose.msra.mxu0 %v2069
        %2767 = vmatprep.subr.mxu0 0.0
        %2768 = vmatpush1.xpose.msra.mxu0 0.0
        %2769 = vmatprep.subr.mxu0 0.0
        %2770 = vmatpush1.xpose.msra.mxu0 0.0
        %2771 = vmatprep.subr.mxu0 0.0
        %2772 = vmatpush1.xpose.msra.mxu0 0.0
        %2773 = vmatprep.subr.mxu0 0.0
        %2774 = vmatpush1.xpose.msra.mxu0 0.0
        %2775 = vmatprep.subr.mxu0 0.0
        %2776 = vmatpush1.xpose.msra.mxu0 0.0
        %2777 = vmatprep.subr.mxu0 0.0
        %2778 = vmatpush1.xpose.msra.mxu0 0.0
        %2779 = vmatprep.subr.mxu0 0.0
        %2780 = vmatpush1.xpose.msra.mxu0 0.0
        %2781 = vmatprep.subr.mxu0 0.0
        %2782 = vmatpush1.xpose.msra.mxu0 0.0
        %2783 = vmatprep.subr.mxu0 0.0
        %2784 = vmatpush1.xpose.msra.mxu0 0.0
        %2785 = vmatprep.subr.mxu0 0.0
        %2786 = vmatpush1.xpose.msra.mxu0 0.0
        %2787 = vmatprep.subr.mxu0 0.0
        %2788 = vmatpush1.xpose.msra.mxu0 0.0
        %2789 = vmatprep.subr.mxu0 0.0
        %2790 = vmatpush1.xpose.msra.mxu0 0.0
        %2791 = vmatprep.subr.mxu0 0.0
        %2792 = vmatpush1.xpose.msra.mxu0 0.0
        %2793 = vmatprep.subr.mxu0 0.0
        %2794 = vmatpush1.xpose.msra.mxu0 0.0
        %2795 = vmatprep.subr.mxu0 0.0
        %2796 = vmatpush1.xpose.msra.mxu0 0.0
        %2797 = vmatprep.subr.mxu0 0.0
        %2798 = vmatpush1.xpose.msra.mxu0 0.0
        %2799 = vmatprep.mubr.f32.mxu0 0.0
        %2800 = vmatmul.mubr.f32.gmra.mrb[0].mxu0 %v352
        %v2801 = vpop.f32.mrb[0].mxu0
        %v2802 = vadd.f32 0.0, %v2801
        %v2803 = vpop.f32.mrb[0].mxu0
        %2804 = vdwg.mxu0
        %2805 = vmatprep.subr.mxu0 0.0
        %2806 = vmatpush1.xpose.msra.mxu0 %v2071
        %2807 = vmatprep.subr.mxu0 0.0
        %2808 = vmatpush1.xpose.msra.mxu0 %v2073
        %2809 = vmatprep.subr.mxu0 0.0
        %2810 = vmatpush1.xpose.msra.mxu0 %v2075
        %2811 = vmatprep.subr.mxu0 0.0
        %2812 = vmatpush1.xpose.msra.mxu0 %v2077
        %2813 = vmatprep.subr.mxu0 0.0
        %2814 = vmatpush1.xpose.msra.mxu0 %v2079
        %2815 = vmatprep.subr.mxu0 0.0
        %2816 = vmatpush1.xpose.msra.mxu0 %v2081
        %2817 = vmatprep.subr.mxu0 0.0
        %2818 = vmatpush1.xpose.msra.mxu0 %v2083
        %2819 = vmatprep.subr.mxu0 0.0
        %2820 = vmatpush1.xpose.msra.mxu0 %v2085
        %2821 = vmatprep.subr.mxu0 0.0
        %2822 = vmatpush1.xpose.msra.mxu0 %v2087
        %2823 = vmatprep.subr.mxu0 0.0
        %2824 = vmatpush1.xpose.msra.mxu0 %v2089
        %2825 = vmatprep.subr.mxu0 0.0
        %2826 = vmatpush1.xpose.msra.mxu0 %v2091
        %2827 = vmatprep.subr.mxu0 0.0
        %2828 = vmatpush1.xpose.msra.mxu0 %v2093
        %2829 = vmatprep.subr.mxu0 0.0
        %2830 = vmatpush1.xpose.msra.mxu0 %v2095
        %2831 = vmatprep.subr.mxu0 0.0
        %2832 = vmatpush1.xpose.msra.mxu0 %v2097
        %2833 = vmatprep.subr.mxu0 0.0
        %2834 = vmatpush1.xpose.msra.mxu0 %v2099
        %2835 = vmatprep.subr.mxu0 0.0
        %2836 = vmatpush1.xpose.msra.mxu0 %v2101
        %2837 = vmatprep.subr.mxu0 0.0
        %2838 = vmatpush1.xpose.msra.mxu0 0.0
        %2839 = vmatprep.subr.mxu0 0.0
        %2840 = vmatpush1.xpose.msra.mxu0 0.0
        %2841 = vmatprep.subr.mxu0 0.0
        %2842 = vmatpush1.xpose.msra.mxu0 0.0
        %2843 = vmatprep.subr.mxu0 0.0
        %2844 = vmatpush1.xpose.msra.mxu0 0.0
        %2845 = vmatprep.subr.mxu0 0.0
        %2846 = vmatpush1.xpose.msra.mxu0 0.0
        %2847 = vmatprep.subr.mxu0 0.0
        %2848 = vmatpush1.xpose.msra.mxu0 0.0
        %2849 = vmatprep.subr.mxu0 0.0
        %2850 = vmatpush1.xpose.msra.mxu0 0.0
        %2851 = vmatprep.subr.mxu0 0.0
        %2852 = vmatpush1.xpose.msra.mxu0 0.0
        %2853 = vmatprep.subr.mxu0 0.0
        %2854 = vmatpush1.xpose.msra.mxu0 0.0
        %2855 = vmatprep.subr.mxu0 0.0
        %2856 = vmatpush1.xpose.msra.mxu0 0.0
        %2857 = vmatprep.subr.mxu0 0.0
        %2858 = vmatpush1.xpose.msra.mxu0 0.0
        %2859 = vmatprep.subr.mxu0 0.0
        %2860 = vmatpush1.xpose.msra.mxu0 0.0
        %2861 = vmatprep.subr.mxu0 0.0
        %2862 = vmatpush1.xpose.msra.mxu0 0.0
        %2863 = vmatprep.subr.mxu0 0.0
        %2864 = vmatpush1.xpose.msra.mxu0 0.0
        %2865 = vmatprep.subr.mxu0 0.0
        %2866 = vmatpush1.xpose.msra.mxu0 0.0
        %2867 = vmatprep.subr.mxu0 0.0
        %2868 = vmatpush1.xpose.msra.mxu0 0.0
        %2869 = vmatprep.mubr.f32.mxu0 0.0
        %2870 = vmatmul.mubr.f32.gmra.mrb[0].mxu0 %v353
        %v2871 = vpop.f32.mrb[0].mxu0
        %v2872 = vadd.f32 0.0, %v2871
        %v2873 = vpop.f32.mrb[0].mxu0
        %2874 = vdwg.mxu0
        %2875 = vmatprep.subr.mxu0 0.0
        %2876 = vmatpush1.xpose.msra.mxu0 %v2103
        %2877 = vmatprep.subr.mxu0 0.0
        %2878 = vmatpush1.xpose.msra.mxu0 %v2105
        %2879 = vmatprep.subr.mxu0 0.0
        %2880 = vmatpush1.xpose.msra.mxu0 %v2107
        %2881 = vmatprep.subr.mxu0 0.0
        %2882 = vmatpush1.xpose.msra.mxu0 %v2109
        %2883 = vmatprep.subr.mxu0 0.0
        %2884 = vmatpush1.xpose.msra.mxu0 %v2111
        %2885 = vmatprep.subr.mxu0 0.0
        %2886 = vmatpush1.xpose.msra.mxu0 %v2113
        %2887 = vmatprep.subr.mxu0 0.0
        %2888 = vmatpush1.xpose.msra.mxu0 %v2115
        %2889 = vmatprep.subr.mxu0 0.0
        %2890 = vmatpush1.xpose.msra.mxu0 %v2117
        %2891 = vmatprep.subr.mxu0 0.0
        %2892 = vmatpush1.xpose.msra.mxu0 %v2119
        %2893 = vmatprep.subr.mxu0 0.0
        %2894 = vmatpush1.xpose.msra.mxu0 %v2121
        %2895 = vmatprep.subr.mxu0 0.0
        %2896 = vmatpush1.xpose.msra.mxu0 %v2123
        %2897 = vmatprep.subr.mxu0 0.0
        %2898 = vmatpush1.xpose.msra.mxu0 %v2125
        %2899 = vmatprep.subr.mxu0 0.0
        %2900 = vmatpush1.xpose.msra.mxu0 %v2127
        %2901 = vmatprep.subr.mxu0 0.0
        %2902 = vmatpush1.xpose.msra.mxu0 %v2129
        %2903 = vmatprep.subr.mxu0 0.0
        %2904 = vmatpush1.xpose.msra.mxu0 %v2131
        %2905 = vmatprep.subr.mxu0 0.0
        %2906 = vmatpush1.xpose.msra.mxu0 %v2133
        %2907 = vmatprep.subr.mxu0 0.0
        %2908 = vmatpush1.xpose.msra.mxu0 0.0
        %2909 = vmatprep.subr.mxu0 0.0
        %2910 = vmatpush1.xpose.msra.mxu0 0.0
        %2911 = vmatprep.subr.mxu0 0.0
        %2912 = vmatpush1.xpose.msra.mxu0 0.0
        %2913 = vmatprep.subr.mxu0 0.0
        %2914 = vmatpush1.xpose.msra.mxu0 0.0
        %2915 = vmatprep.subr.mxu0 0.0
        %2916 = vmatpush1.xpose.msra.mxu0 0.0
        %2917 = vmatprep.subr.mxu0 0.0
        %2918 = vmatpush1.xpose.msra.mxu0 0.0
        %2919 = vmatprep.subr.mxu0 0.0
        %2920 = vmatpush1.xpose.msra.mxu0 0.0
        %2921 = vmatprep.subr.mxu0 0.0
        %2922 = vmatpush1.xpose.msra.mxu0 0.0
        %2923 = vmatprep.subr.mxu0 0.0
        %2924 = vmatpush1.xpose.msra.mxu0 0.0
        %2925 = vmatprep.subr.mxu0 0.0
        %2926 = vmatpush1.xpose.msra.mxu0 0.0
        %2927 = vmatprep.subr.mxu0 0.0
        %2928 = vmatpush1.xpose.msra.mxu0 0.0
        %2929 = vmatprep.subr.mxu0 0.0
        %2930 = vmatpush1.xpose.msra.mxu0 0.0
        %2931 = vmatprep.subr.mxu0 0.0
        %2932 = vmatpush1.xpose.msra.mxu0 0.0
        %2933 = vmatprep.subr.mxu0 0.0
        %2934 = vmatpush1.xpose.msra.mxu0 0.0
        %2935 = vmatprep.subr.mxu0 0.0
        %2936 = vmatpush1.xpose.msra.mxu0 0.0
        %2937 = vmatprep.subr.mxu0 0.0
        %2938 = vmatpush1.xpose.msra.mxu0 0.0
        %2939 = vmatprep.mubr.f32.mxu0 0.0
        %2940 = vmatmul.mubr.f32.gmra.mrb[0].mxu0 %v354
        %v2941 = vpop.f32.mrb[0].mxu0
        %v2942 = vadd.f32 0.0, %v2941
        %v2943 = vpop.f32.mrb[0].mxu0
        %2944 = vdwg.mxu0
        %2945 = vmatprep.subr.mxu0 0.0
        %2946 = vmatpush1.xpose.msra.mxu0 %v2135
        %2947 = vmatprep.subr.mxu0 0.0
        %2948 = vmatpush1.xpose.msra.mxu0 %v2137
        %2949 = vmatprep.subr.mxu0 0.0
        %2950 = vmatpush1.xpose.msra.mxu0 %v2139
        %2951 = vmatprep.subr.mxu0 0.0
        %2952 = vmatpush1.xpose.msra.mxu0 %v2141
        %2953 = vmatprep.subr.mxu0 0.0
        %2954 = vmatpush1.xpose.msra.mxu0 %v2143
        %2955 = vmatprep.subr.mxu0 0.0
        %2956 = vmatpush1.xpose.msra.mxu0 %v2145
        %2957 = vmatprep.subr.mxu0 0.0
        %2958 = vmatpush1.xpose.msra.mxu0 %v2147
        %2959 = vmatprep.subr.mxu0 0.0
        %2960 = vmatpush1.xpose.msra.mxu0 %v2149
        %2961 = vmatprep.subr.mxu0 0.0
        %2962 = vmatpush1.xpose.msra.mxu0 %v2151
        %2963 = vmatprep.subr.mxu0 0.0
        %2964 = vmatpush1.xpose.msra.mxu0 %v2153
        %2965 = vmatprep.subr.mxu0 0.0
        %2966 = vmatpush1.xpose.msra.mxu0 %v2155
        %2967 = vmatprep.subr.mxu0 0.0
        %2968 = vmatpush1.xpose.msra.mxu0 %v2157
        %2969 = vmatprep.subr.mxu0 0.0
        %2970 = vmatpush1.xpose.msra.mxu0 %v2159
        %2971 = vmatprep.subr.mxu0 0.0
        %2972 = vmatpush1.xpose.msra.mxu0 %v2161
        %2973 = vmatprep.subr.mxu0 0.0
        %2974 = vmatpush1.xpose.msra.mxu0 %v2163
        %2975 = vmatprep.subr.mxu0 0.0
        %2976 = vmatpush1.xpose.msra.mxu0 %v2165
        %2977 = vmatprep.subr.mxu0 0.0
        %2978 = vmatpush1.xpose.msra.mxu0 0.0
        %2979 = vmatprep.subr.mxu0 0.0
        %2980 = vmatpush1.xpose.msra.mxu0 0.0
        %2981 = vmatprep.subr.mxu0 0.0
        %2982 = vmatpush1.xpose.msra.mxu0 0.0
        %2983 = vmatprep.subr.mxu0 0.0
        %2984 = vmatpush1.xpose.msra.mxu0 0.0
        %2985 = vmatprep.subr.mxu0 0.0
        %2986 = vmatpush1.xpose.msra.mxu0 0.0
        %2987 = vmatprep.subr.mxu0 0.0
        %2988 = vmatpush1.xpose.msra.mxu0 0.0
        %2989 = vmatprep.subr.mxu0 0.0
        %2990 = vmatpush1.xpose.msra.mxu0 0.0
        %2991 = vmatprep.subr.mxu0 0.0
        %2992 = vmatpush1.xpose.msra.mxu0 0.0
        %2993 = vmatprep.subr.mxu0 0.0
        %2994 = vmatpush1.xpose.msra.mxu0 0.0
        %2995 = vmatprep.subr.mxu0 0.0
        %2996 = vmatpush1.xpose.msra.mxu0 0.0
        %2997 = vmatprep.subr.mxu0 0.0
        %2998 = vmatpush1.xpose.msra.mxu0 0.0
        %2999 = vmatprep.subr.mxu0 0.0
        %3000 = vmatpush1.xpose.msra.mxu0 0.0
        %3001 = vmatprep.subr.mxu0 0.0
        %3002 = vmatpush1.xpose.msra.mxu0 0.0
        %3003 = vmatprep.subr.mxu0 0.0
        %3004 = vmatpush1.xpose.msra.mxu0 0.0
        %3005 = vmatprep.subr.mxu0 0.0
        %3006 = vmatpush1.xpose.msra.mxu0 0.0
        %3007 = vmatprep.subr.mxu0 0.0
        %3008 = vmatpush1.xpose.msra.mxu0 0.0
        %3009 = vmatprep.mubr.f32.mxu0 0.0
        %3010 = vmatmul.mubr.f32.gmra.mrb[0].mxu0 %v355
        %v3011 = vpop.f32.mrb[0].mxu0
        %v3012 = vadd.f32 0.0, %v3011
        %v3013 = vpop.f32.mrb[0].mxu0
        %3014 = vdwg.mxu0
        %v3015 = vadd.f32 %v2731, %v2802
        %v3016 = vadd.f32 %v2732, %v2872
        %v3017 = vadd.f32 %v2733, %v2942
        %v3018 = vadd.f32 %v2734, %v3012
        %3019 = vst [vmem:[#allocation4] sm:$0xff] %v3015
        %3020 = vst [vmem:[#allocation4 + $0x8] sm:$0xff] %v3016
        %3021 = vst [vmem:[#allocation4 + $0x10] sm:$0xff] %v3017
        %3022 = vst [vmem:[#allocation4 + $0x18] sm:$0xff] %v3018
        %3023 = vst [vmem:[#allocation2] sm:$0xf] %v1702
        %p3024 = scmp.eq.s32.totalorder %s30, 1
        // Predicated region
        $region57: #{tpu_custom_call.1} parent=39 // pred_check
          %p3025 = pneg %p3024
        $region58: #{tpu_custom_call.1} parent=39 // pred_check_branch
          %3027 = sbr.rel (%p3025) target = $region60
        $region59: #{tpu_custom_call.1} parent=39 // pred_region
          %v3028 = vld [vmem:[#allocation4] sm:$0xff]
          %v3029 = vld [vmem:[#allocation4 + $0x8] sm:$0xff]
          %v3030 = vld [vmem:[#allocation4 + $0x10] sm:$0xff]
          %v3031 = vld [vmem:[#allocation4 + $0x18] sm:$0xff]
          %v3032 = vld [vmem:[#allocation3] sm:$0xf]
          %v3033 = vmax.f32 %v3032, 1e-30
          %v3036 = vunpack.c.l.s4 1966171168
          %v3037 = vunpack.c.0.s8 %v3036
          %v3038 = vlaneseq
          %v3039 = vshrl.u32 %v3038, 7
          %v3040 = vsub.s32 %v3037, %v3039
          %v3041 = vrot.slane %v3033, %v3040
          %v3042 = vcombine.high %v3041, %v3041
          %v3044 = vunpack.c.l.s4 1966171168
          %v3045 = vunpack.c.0.s8 %v3044
          %v3046 = vlaneseq
          %v3047 = vshrl.u32 %v3046, 7
          %v3048 = vsub.s32 %v3045, %v3047
          %v3049 = vrot.slane %v3041, %v3048
          %v3051 = vunpack.c.l.s4 1966171168
          %v3052 = vunpack.c.0.s8 %v3051
          %v3053 = vlaneseq
          %v3054 = vshrl.u32 %v3053, 7
          %v3055 = vsub.s32 %v3052, %v3054
          %v3056 = vrot.slane %v3042, %v3055
          %v3057 = vcombine.high %v3049, %v3049
          %v3058 = vcombine.high %v3056, %v3056
          %v3059 = vlaneseq
          %v3060 = vshrl.u32 %v3059, 7
          %v3061 = vsub.s32 0, %v3060
          %v3062 = vrot.slane %v3049, %v3061
          %v3063 = vlaneseq
          %v3064 = vshrl.u32 %v3063, 7
          %v3065 = vsub.s32 0, %v3064
          %v3066 = vrot.slane %v3056, %v3065
          %v3067 = vlaneseq
          %v3068 = vshrl.u32 %v3067, 7
          %v3069 = vsub.s32 0, %v3068
          %v3070 = vrot.slane %v3057, %v3069
          %v3071 = vlaneseq
          %v3072 = vshrl.u32 %v3071, 7
          %v3073 = vsub.s32 0, %v3072
          %v3074 = vrot.slane %v3058, %v3073
          %v3079 = vrcp.pop %v3062
          %v3080 = vmul.f32 %v3028, %v3079
          %v3081 = vrcp.pop %v3066
          %v3082 = vmul.f32 %v3029, %v3081
          %v3083 = vrcp.pop %v3070
          %v3084 = vmul.f32 %v3030, %v3083
          %v3085 = vrcp.pop %v3074
          %v3086 = vmul.f32 %v3031, %v3085
          %vm3087 = vcmp.gt.f32.partialorder %v3080, 0.0
          %vm3088 = vcmp.gt.f32.partialorder %v3082, 0.0
          %vm3089 = vcmp.gt.f32.partialorder %v3084, 0.0
          %vm3090 = vcmp.gt.f32.partialorder %v3086, 0.0
          %v3091 = vmin.f32 %v3080, 0.0
          %v3092 = vmin.f32 %v3082, 0.0
          %v3093 = vmin.f32 %v3084, 0.0
          %v3094 = vmin.f32 %v3086, 0.0
          %v3095 = vmul.f32 %v3091, 1.442695
          %v3096 = vpow.pop %v3095
          %v3097 = vmul.f32 %v3092, 1.442695
          %v3098 = vpow.pop %v3097
          %v3099 = vmul.f32 %v3093, 1.442695
          %v3100 = vpow.pop %v3099
          %v3101 = vmul.f32 %v3094, 1.442695
          %v3102 = vpow.pop %v3101
          %v3103 = vsub.f32 %v3096, 1.0
          %v3104 = vsub.f32 %v3098, 1.0
          %v3105 = vsub.f32 %v3100, 1.0
          %v3106 = vsub.f32 %v3102, 1.0
          %v3107 = vsel %vm3087, %v3080, %v3103
          %v3108 = vsel %vm3088, %v3082, %v3104
          %v3109 = vsel %vm3089, %v3084, %v3105
          %v3110 = vsel %vm3090, %v3086, %v3106
          %3111 = vst [vmem:[%s333] sm:$0xff] %v3107
          %3112 = vst [vmem:[%s333 + $0x8] sm:$0xff] %v3108
          %3113 = vst [vmem:[%s333 + $0x10] sm:$0xff] %v3109
          %3114 = vst [vmem:[%s333 + $0x18] sm:$0xff] %v3110
        $region60: #{tpu_custom_call.1} parent=39 // pred_fallthru
          _
        %s3115 = sand.u32 %s167, 1
        %s3116 = scalar_lea.sflag [#allocation7], %s3115
        %s3117 = sand.u32 %s167, 1
        %s3118 = smul.addr %s3117, 32
        %s3119 = scalar_lea.vmem [#allocation11], %s3118
        // Predicated region
        $region61: #{tpu_custom_call.1} parent=39 // pred_check
          %p3120 = pneg %p177
        $region62: #{tpu_custom_call.1} parent=39 // pred_check_branch
          %3122 = sbr.rel (%p3120) target = $region64
        $region63: #{tpu_custom_call.1} parent=39 // pred_region
          %s3124 = ssub.s32 512, 512
          %3125 = vsyncadd %s3116, %s3124
          %s3126 = smul.addr %s29, 128
          %s3127 = scalar_lea.hbm %s5, %s3126
          %s3128 = sshll.u32 %s3119, 4
          %s3129 = int_to_ptr.vmem [resolvable:$true] %s3128
          %3134 = dma.vmem_to_hbm [thread:$0]  %s3129, 512, %s3127, %s3116, 128, 256, 8
        $region64: #{tpu_custom_call.1} parent=39 // pred_fallthru
          _
      $region40: #{tpu_custom_call.1} parent=5 // pred_fallthru
        _
      %p3135 = scmp.le.s32.totalorder 2, %s20
      // Predicated region
      $region65: #{tpu_custom_call.1} parent=5 // pred_check
        %p3136 = pneg %p3135
      $region66: #{tpu_custom_call.1} parent=5 // pred_check_branch
        %3138 = sbr.rel (%p3136) target = $region68
      $region67: #{tpu_custom_call.1} parent=5 // pred_region
        %s3139 = ssub.s32 %s20, 2
        // Predicated region
        $region69: #{tpu_custom_call.1} parent=67 // pred_check
          %p3140 = pneg %p183
        $region70: #{tpu_custom_call.1} parent=67 // pred_check_branch
          %3142 = sbr.rel (%p3140) target = $region72
        $region71: #{tpu_custom_call.1} parent=67 // pred_region
          %s3143 = sand.u32 %s168, 1
          %s3144 = scalar_lea.sflag [#allocation7], %s3143
          %s3145 = sand.u32 %s168, 1
          %s3146 = smul.addr %s3145, 32
          %s3147 = scalar_lea.vmem [#allocation11], %s3146
          %3148 = dma.done %s3144, 512
        $region72: #{tpu_custom_call.1} parent=67 // pred_fallthru
          _
      $region68: #{tpu_custom_call.1} parent=5 // pred_fallthru
        _
    $region6: #{tpu_custom_call.1} parent=1 // loop_footer
      %s24 = sadd.s32 1, %s20
    $region7: #{tpu_custom_call.1} parent=1 // loop_footer_branch
      %19 = sbr.rel target = $region3
    $region8: #{tpu_custom_call.1} parent=1 // loop_exit
      _
    %3149 = vsyncpa [#allocation6], 1
    %s3150 = scalar_lea.sflag [#allocation6], 1
    %3151 = vsyncpa %s3150, 1
    %3152 = vsyncpa [#allocation9], 1
    %s3153 = scalar_lea.sflag [#allocation9], 1
    %3154 = vsyncpa %s3153, 1
    %3155 = vsyncpa [#allocation7], 1
    %s3156 = scalar_lea.sflag [#allocation7], 1
    %3157 = vsyncpa %s3156, 1

</llo_original>
